<compile_context>
chip_gen: v7x
topology: tpu7x:2x2x1
jax: 0.10.0
libtpu: 0.0.40
codegen_flags: <defaults>
</compile_context>

<pallas_src>
import functools
import math

import numpy as np
import jax
import jax.numpy as jnp
from jax import lax
from jax.experimental import pallas as pl
from jax.experimental.pallas import tpu as pltpu


# dot_general contracting the last dim of both operands: a (M,K) . b (N,K) -> a @ b.T
_CONTRACT_LAST = (((1,), (1,)), ((), ()))


# ---------------------------------------------------------------------------
# Per-generation VMEM budget (v5e/v6e: 128 MiB physical -> 64 MiB budget,
# v7x: 64 MiB physical -> 32 MiB budget; conservative fallback if query fails).
# ---------------------------------------------------------------------------

def _vmem_budget_bytes():
    try:
        cap = int(pltpu.get_tpu_info().vmem_capacity_bytes)
    except Exception:
        cap = 64 << 20
    return max(16 << 20, cap // 2)


_VMEM_BUDGET = _vmem_budget_bytes()


# ---------------------------------------------------------------------------
# Tile-size helpers (respect the (8,128) block constraint; dtype-aware sublane
# packing: bf16 rows come in 16s, int8/fp8 in 32s).
# ---------------------------------------------------------------------------

def _row_multiple(dtype):
    return {4: 8, 2: 16, 1: 32}.get(jnp.dtype(dtype).itemsize, 8)


def _pick_row_tile(dim, target, dtype=jnp.float32):
    """Sublane-dim tile: multiple of the dtype row-pack dividing dim, <= target; else full."""
    mult = _row_multiple(dtype)
    if dim <= target:
        return dim
    t = (int(target) // mult) * mult
    while t >= mult:
        if dim % t == 0:
            return t
        t -= mult
    return dim


def _pick_lane_tile(dim, target):
    """Lane-dim tile: multiple of 128 dividing dim, <= target; else full dim."""
    if dim <= target:
        return dim
    t = (int(target) // 128) * 128
    while t >= 128:
        if dim % t == 0:
            return t
        t -= 128
    return dim


# ---------------------------------------------------------------------------
# One-off probe: can Mosaic lower exact (erf-based) GELU inside a kernel?
# Run eagerly (outside jit) so a lowering failure is caught here, not later.
# ---------------------------------------------------------------------------

@functools.lru_cache(maxsize=1)
def _erf_supported_in_kernel():
    def _probe(x_ref, o_ref):
        o_ref[...] = jax.nn.gelu(x_ref[...], approximate=False)
    try:
        x = jnp.ones((8, 128), jnp.float32)
        out = pl.pallas_call(_probe, out_shape=jax.ShapeDtypeStruct((8, 128), jnp.float32))(x)
        jax.block_until_ready(out)
        return True
    except Exception:
        return False


# ---------------------------------------------------------------------------
# Tiled linear kernel: o = act(x @ w + b); w is stored pre-transposed as (K, N)
# so the MXU sees its native (M,K)x(K,N) layout.
# ---------------------------------------------------------------------------

def _linear_kernel(x_ref, w_ref, *rest, has_bias, activation):
    if has_bias:
        b_ref, o_ref, acc_ref = rest
    else:
        o_ref, acc_ref = rest

    k = pl.program_id(2)

    @pl.when(k == 0)
    def _():
        acc_ref[...] = jnp.zeros_like(acc_ref)

    acc_ref[...] += jnp.dot(x_ref[...], w_ref[...], preferred_element_type=jnp.float32)

    @pl.when(k == pl.num_programs(2) - 1)
    def _():
        y = acc_ref[...]
        if has_bias:
            y = y + b_ref[...].astype(jnp.float32)
        if activation == "gelu":
            # exact erf-based GELU fused into the epilogue (matches F.gelu default)
            y = jax.nn.gelu(y, approximate=False)
        o_ref[...] = y.astype(o_ref.dtype)


def pallas_linear(x, w, b=None, activation=None, out_dtype=None):
    """y = act(x @ w + b); x: (..., K), w: (K, N) [pre-transposed], b: (N,) or None."""
    lead = x.shape[:-1]
    K = x.shape[-1]
    N = w.shape[-1]
    M = int(np.prod(lead)) if lead else 1
    x2 = x.reshape(M, K)
    out_dtype = out_dtype or x.dtype

    itm = jnp.dtype(x.dtype).itemsize
    otm = jnp.dtype(out_dtype).itemsize

    # Budget-scaled tile targets: bigger blocks amortize per-step overhead on v6e,
    # capped so double-buffered tiles + f32 accumulator stay inside the v7x/v5e budget.
    tn_t = 1024 if _VMEM_BUDGET >= (48 << 20) else 512
    tk_t = tn_t
    tm_t = 512
    tm = tn = tk = None
    for _ in range(8):
        tm = _pick_row_tile(M, tm_t, x.dtype)
        tn = _pick_lane_tile(N, tn_t)
        tk = _pick_lane_tile(K, tk_t)
        est = 2 * (tm * tk + tk * tn) * itm + 2 * tm * tn * otm + tm * tn * 4
        if b is not None:
            est += 2 * tn * 4
        if est <= _VMEM_BUDGET:
            break
        if tk_t > 256:
            tk_t //= 2
        elif tn_t > 256:
            tn_t //= 2
        elif tm_t > 64:
            tm_t //= 2
        else:
            break
    grid = (M // tm, N // tn, K // tk)

    in_specs = [
        pl.BlockSpec((tm, tk), lambda i, j, k: (i, k)),
        pl.BlockSpec((tk, tn), lambda i, j, k: (k, j)),
    ]
    args = [x2, w]
    if b is not None:
        in_specs.append(pl.BlockSpec((1, tn), lambda i, j, k: (0, j)))
        args.append(b.reshape(1, N))

    out = pl.pallas_call(
        functools.partial(_linear_kernel, has_bias=b is not None, activation=activation),
        grid=grid,
        in_specs=in_specs,
        out_specs=pl.BlockSpec((tm, tn), lambda i, j, k: (i, j)),
        out_shape=jax.ShapeDtypeStruct((M, N), out_dtype),
        scratch_shapes=[pltpu.VMEM((tm, tn), jnp.float32)],
        compiler_params=pltpu.CompilerParams(
            dimension_semantics=("parallel", "parallel", "arbitrary"),
            vmem_limit_bytes=_VMEM_BUDGET),
    )(*args)
    return out.reshape(*lead, N)


# ---------------------------------------------------------------------------
# Fused residual-add + LayerNorm kernel (row tiled, f32 stats in-kernel).
# ---------------------------------------------------------------------------

def _add_ln_kernel(*refs, has_residual, affine, eps):
    idx = 0
    x_ref = refs[idx]; idx += 1
    if has_residual:
        r_ref = refs[idx]; idx += 1
    if affine:
        g_ref = refs[idx]; b_ref = refs[idx + 1]; idx += 2
    o_ref = refs[idx]

    v = x_ref[...].astype(jnp.float32)
    if has_residual:
        v = v + r_ref[...].astype(jnp.float32)
    mean = jnp.mean(v, axis=-1, keepdims=True)
    c = v - mean
    var = jnp.mean(c * c, axis=-1, keepdims=True)
    y = c * lax.rsqrt(var + eps)
    if affine:
        y = y * g_ref[...].astype(jnp.float32) + b_ref[...].astype(jnp.float32)
    o_ref[...] = y.astype(o_ref.dtype)


def pallas_add_layernorm(x, residual=None, gamma=None, beta=None, eps=1e-5):
    """LayerNorm(x + residual) over the last dim; optional affine params."""
    lead = x.shape[:-1]
    D = x.shape[-1]
    M = int(np.prod(lead)) if lead else 1
    itm = jnp.dtype(x.dtype).itemsize
    n_in = 1 + (residual is not None)
    # D-adaptive row tile: double-buffered inputs + output + f32 working copy per row.
    per_row = (2 * n_in + 2) * D * itm + 2 * D * 4
    target = max(_row_multiple(x.dtype), min(1024, _VMEM_BUDGET // max(per_row, 1)))
    tm = _pick_row_tile(M, target, x.dtype)
    grid = (M // tm,)

    in_specs = [pl.BlockSpec((tm, D), lambda i: (i, 0))]
    args = [x.reshape(M, D)]
    if residual is not None:
        in_specs.append(pl.BlockSpec((tm, D), lambda i: (i, 0)))
        args.append(residual.reshape(M, D))
    affine = gamma is not None
    if affine:
        in_specs.append(pl.BlockSpec((1, D), lambda i: (0, 0)))
        in_specs.append(pl.BlockSpec((1, D), lambda i: (0, 0)))
        args.append(gamma.reshape(1, D))
        args.append(beta.reshape(1, D))

    out = pl.pallas_call(
        functools.partial(_add_ln_kernel, has_residual=residual is not None,
                          affine=affine, eps=eps),
        grid=grid,
        in_specs=in_specs,
        out_specs=pl.BlockSpec((tm, D), lambda i: (i, 0)),
        out_shape=jax.ShapeDtypeStruct((M, D), x.dtype),
        compiler_params=pltpu.CompilerParams(
            dimension_semantics=("parallel",),
            vmem_limit_bytes=_VMEM_BUDGET),
    )(*args)
    return out.reshape(*lead, D)


# ---------------------------------------------------------------------------
# Fused ParameterAttention + GQA key/value projection kernel.
# Only the key/value slot rows are computed (grid=(2,)): the query-slot output of
# ParameterAttention is never consumed by the reference block, and the per-row
# attention is independent across the leading (3,) dim, so dropping row 0 is exact.
# All weights are (in, out) layout.
# ---------------------------------------------------------------------------

def _param_attn_kv_kernel(s_ref, wq_ref, wk_ref, wv_ref, wo_ref, kvw_ref, o_ref, *, scale):
    s = s_ref[0]                                                     # (ns, D)
    dt = s.dtype
    q = jnp.dot(s, wq_ref[...], preferred_element_type=jnp.float32).astype(dt)
    k = jnp.dot(s, wk_ref[...], preferred_element_type=jnp.float32).astype(dt)
    v = jnp.dot(s, wv_ref[...], preferred_element_type=jnp.float32).astype(dt)
    sc = lax.dot_general(q, k, _CONTRACT_LAST, preferred_element_type=jnp.float32) * scale
    m = jnp.max(sc, axis=-1, keepdims=True)
    p = jnp.exp(sc - m)
    p = (p / jnp.sum(p, axis=-1, keepdims=True)).astype(dt)          # exact softmax
    attn = jnp.dot(p, v, preferred_element_type=jnp.float32).astype(dt)
    slots = jnp.dot(attn, wo_ref[...], preferred_element_type=jnp.float32).astype(dt)
    # Fused GQA key/value projection (kvw_ref[0] selects key_proj for t=0, value_proj for t=1).
    o_ref[0] = jnp.dot(slots, kvw_ref[0], preferred_element_type=jnp.float32).astype(o_ref.dtype)


def pallas_parameter_attention_kv(kv_slots, wq, wk, wv, wo, kv_proj_w, scale):
    """kv_slots: (2, ns, D); kv_proj_w: (2, D, D) stacked [key_proj, value_proj] (in,out)."""
    T, ns, D = kv_slots.shape
    return pl.pallas_call(
        functools.partial(_param_attn_kv_kernel, scale=scale),
        grid=(T,),
        in_specs=[
            pl.BlockSpec((1, ns, D), lambda t: (t, 0, 0)),
            pl.BlockSpec((D, D), lambda t: (0, 0)),
            pl.BlockSpec((D, D), lambda t: (0, 0)),
            pl.BlockSpec((D, D), lambda t: (0, 0)),
            pl.BlockSpec((D, D), lambda t: (0, 0)),
            pl.BlockSpec((1, D, D), lambda t: (t, 0, 0)),
        ],
        out_specs=pl.BlockSpec((1, ns, D), lambda t: (t, 0, 0)),
        out_shape=jax.ShapeDtypeStruct((T, ns, D), kv_slots.dtype),
        compiler_params=pltpu.CompilerParams(
            dimension_semantics=("parallel",),
            vmem_limit_bytes=_VMEM_BUDGET),
    )(kv_slots, wq, wk, wv, wo, kv_proj_w)


# ---------------------------------------------------------------------------
# Fused Grouped-Query Attention kernel: q projection + rotary + per-group attention
# + out projection, all in one kernel. KV slots are batch-independent (ns, D).
# Per-group matmuls use static lane slices (no full-width lane masks); the per-group
# PV results are concatenated lane-densely in head order (matches the reference's
# view/transpose/reshape), then the out-proj matmul runs on the fused (ts, D) tile.
# ---------------------------------------------------------------------------

def _gqa_kernel(*refs, num_groups, scale, rotary_dim):
    if rotary_dim > 0:
        x_ref, cos_ref, sin_ref, k_ref, v_ref, wq_ref, wo_ref, o_ref = refs
    else:
        x_ref, k_ref, v_ref, wq_ref, wo_ref, o_ref = refs

    x = x_ref[0]                        # (ts, D)
    k = k_ref[...]                      # (ns, D)
    v = v_ref[...]                      # (ns, D)
    ts, D = x.shape
    dh = D // num_groups
    dt = x.dtype

    # q projection (f32 accumulate on the MXU)
    q = jnp.dot(x, wq_ref[...], preferred_element_type=jnp.float32)   # (ts, D) f32

    # rotary embedding on the query only (reference leaves the key untouched)
    if rotary_dim > 0:
        half = rotary_dim // 2
        cos = cos_ref[...].astype(jnp.float32)
        sin = sin_ref[...].astype(jnp.float32)
        q_rot = q[:, :rotary_dim]
        rot = jnp.concatenate([-q_rot[:, half:], q_rot[:, :half]], axis=-1)
        q_rot = q_rot * cos + rot * sin
        if rotary_dim < D:
            q = jnp.concatenate([q_rot, q[:, rotary_dim:]], axis=-1)
        else:
            q = q_rot
    q = q.astype(dt)

    outs = []
    for g in range(num_groups):         # static unroll; dense per-group MXU contractions
        lo = g * dh
        q_g = q[:, lo:lo + dh]          # (ts, dh)
        k_g = k[:, lo:lo + dh]          # (ns, dh)
        v_g = v[:, lo:lo + dh]          # (ns, dh)
        s = lax.dot_general(q_g, k_g, _CONTRACT_LAST,
                            preferred_element_type=jnp.float32) * scale     # (ts, ns)
        m = jnp.max(s, axis=-1, keepdims=True)
        p = jnp.exp(s - m)
        p = p / jnp.sum(p, axis=-1, keepdims=True)                          # exact softmax
        outs.append(jnp.dot(p.astype(dt), v_g, preferred_element_type=jnp.float32))
    attn = jnp.concatenate(outs, axis=-1).astype(dt)                        # (ts, D)

    out = jnp.dot(attn, wo_ref[...], preferred_element_type=jnp.float32)
    o_ref[0] = out.astype(o_ref.dtype)


def pallas_gqa_attention(x, cos, sin, k_slots, v_slots, wq, wo, num_groups, scale, rotary_dim):
    """x: (B, S, D); k_slots/v_slots: (ns, D) shared over batch; returns (B, S, D)."""
    B, S, D = x.shape
    ns = k_slots.shape[0]
    itm = jnp.dtype(x.dtype).itemsize
    wtm = jnp.dtype(wq.dtype).itemsize
    mult = _row_multiple(x.dtype)

    # VMEM sizing: the constant-index blocks (wq, wo, k/v slots) are double-buffered by
    # default; whatever budget remains sets the per-step row tile.
    # TODO(synk): single-buffer the constant weight blocks (pipeline_mode) and tile the
    # out-proj over N for very large D instead of loading full (D,D) weights.
    const_bytes = 2 * (2 * D * D * wtm + 2 * ns * D * itm)
    per_row = 4 * D * itm + 4 * max(rotary_dim, 1) * 4 + 6 * D * 4
    avail = max(_VMEM_BUDGET - const_bytes, per_row * mult)
    ts = _pick_row_tile(S, max(mult, min(512, avail // per_row)), x.dtype)
    grid = (B, S // ts)

    in_specs = [pl.BlockSpec((1, ts, D), lambda b, s: (b, s, 0))]
    args = [x]
    if rotary_dim > 0:
        in_specs += [pl.BlockSpec((ts, rotary_dim), lambda b, s: (s, 0)),
                     pl.BlockSpec((ts, rotary_dim), lambda b, s: (s, 0))]
        args += [cos, sin]
    in_specs += [
        pl.BlockSpec((ns, D), lambda b, s: (0, 0)),
        pl.BlockSpec((ns, D), lambda b, s: (0, 0)),
        pl.BlockSpec((D, D), lambda b, s: (0, 0)),
        pl.BlockSpec((D, D), lambda b, s: (0, 0)),
    ]
    args += [k_slots, v_slots, wq, wo]

    return pl.pallas_call(
        functools.partial(_gqa_kernel, num_groups=num_groups, scale=scale,
                          rotary_dim=rotary_dim),
        grid=grid,
        in_specs=in_specs,
        out_specs=pl.BlockSpec((1, ts, D), lambda b, s: (b, s, 0)),
        out_shape=jax.ShapeDtypeStruct((B, S, D), x.dtype),
        compiler_params=pltpu.CompilerParams(
            dimension_semantics=("parallel", "parallel"),
            vmem_limit_bytes=_VMEM_BUDGET),
    )(*args)


# ---------------------------------------------------------------------------
# JAX glue (rotary tables, embedding lookup, parameter setup)
# ---------------------------------------------------------------------------

def rotary_cos_sin(seq_len, rotary_dim):
    """cos/sin tables (S, rotary_dim), replicated x2 along the last dim like the reference."""
    positions = jnp.arange(seq_len, dtype=jnp.float32)
    freq = jnp.arange(0, rotary_dim, 2, dtype=jnp.float32)
    inv_freq = 1.0 / (10000.0 ** (freq / rotary_dim))
    pe = jnp.einsum("i,j->ij", positions, inv_freq)          # (S, rd/2)
    cos = jnp.tile(jnp.cos(pe), (1, 2))                      # (S, rd)
    sin = jnp.tile(jnp.sin(pe), (1, 2))
    return cos, sin


def init_params(key, cfg):
    D = cfg["d_model"]
    V = cfg["vocab_size"]
    ns = cfg["qkv_slot_num"]
    ef = cfg["expansion_factor"]
    std = cfg["initializer_range"]
    keys = iter(jax.random.split(key, 8 + cfg["n_layers"] * 16))

    def normal(shape, s=std):
        return (s * jax.random.normal(next(keys), shape)).astype(jnp.float32)

    # All linear weights stored pre-transposed in (in, out) layout (canonical MXU feed).
    params = {
        "token_emb": normal((V, D)),
        "pos_emb": normal((cfg["max_seq_len"], D)),
        "final_gamma": jnp.ones((D,), jnp.float32),
        "final_beta": jnp.zeros((D,), jnp.float32),
        "out_w": normal((D, V), 0.02),       # output_layer_init_method='normal'
        "out_b": jnp.zeros((V,), jnp.float32),
        "layers": [],
    }
    for _ in range(cfg["n_layers"]):
        lp = {
            "pa_wq": normal((D, D)),
            "pa_wk": normal((D, D)),
            "pa_wv": normal((D, D)),
            "pa_wo": normal((D, D)),
            "attn_wq": normal((D, D)),
            "attn_wk": normal((D, D)),
            "attn_wv": normal((D, D)),
            "attn_wo": normal((D, D)),
            "ffn_w1": normal((D, D * ef)),
            "ffn_w2": normal((D * ef, D)),
            "qkv_slots": jax.random.normal(next(keys), (3, ns, D)).astype(jnp.float32),
        }
        params["layers"].append(lp)
    return params


def token_former_forward(params, tokens, cfg):
    B, S = tokens.shape
    D = cfg["d_model"]
    G = cfg["num_groups"]
    dh = D // G
    rotary_dim = int(D * cfg["rotary_pct"])
    # Both attentions in the reference divide scores by d_head**0.5 (d_head = D // G);
    # multiplying by 1/sqrt(d_head) is the same scaling.
    scale = 1.0 / math.sqrt(dh)
    cd = jnp.dtype(cfg.get("compute_dtype", jnp.float32))
    gelu_in_kernel = bool(cfg.get("fuse_gelu_in_kernel", False))

    def c(a):
        return a.astype(cd)

    positions = jnp.arange(S)
    # TODO(synk): embedding gathers stay in plain jnp (no clean rectangular-BlockSpec form).
    x = (params["token_emb"][tokens] + params["pos_emb"][positions][None, :, :]).astype(cd)

    cos = sin = None
    if rotary_dim > 0:
        cos, sin = rotary_cos_sin(S, rotary_dim)     # shared across all layers

    for lp in params["layers"]:
        # --- ParameterAttention on the key/value slot rows + fused GQA k/v projections ---
        kv_proj_w = jnp.stack([c(lp["attn_wk"]), c(lp["attn_wv"])])     # (2, D, D)
        kv = pallas_parameter_attention_kv(
            c(lp["qkv_slots"][1:3]), c(lp["pa_wq"]), c(lp["pa_wk"]), c(lp["pa_wv"]),
            c(lp["pa_wo"]), kv_proj_w, scale)
        k_slots, v_slots = kv[0], kv[1]              # (ns, D), batch independent

        # --- Fused GQA: q proj + rotary + per-group attention + out proj ---
        attn_out = pallas_gqa_attention(
            x, cos, sin, k_slots, v_slots, c(lp["attn_wq"]), c(lp["attn_wo"]),
            G, scale, rotary_dim)
        # TODO(synk): GroupedQueryAttention mask path unused (mask is always None here).

        # dropout p=0.0 -> identity; fused residual + layer_norm1 (no affine)
        x = pallas_add_layernorm(x, residual=attn_out)

        # --- FFN: w1 (+ fused exact GELU epilogue) -> w2 ---
        if gelu_in_kernel:
            h = pallas_linear(x, c(lp["ffn_w1"]), activation="gelu")
        else:
            h = pallas_linear(x, c(lp["ffn_w1"]))
            h = jax.nn.gelu(h, approximate=False)    # fallback if Mosaic can't lower erf
        h = pallas_linear(h, c(lp["ffn_w2"]))
        x = pallas_add_layernorm(x, residual=h)      # fused residual + layer_norm2

    x = pallas_add_layernorm(x, gamma=params["final_gamma"], beta=params["final_beta"])
    logits = pallas_linear(x, c(params["out_w"]), params["out_b"], out_dtype=jnp.float32)
    return logits


# ---------------------------------------------------------------------------

if __name__ == "__main__":
    cfg = dict(
        vocab_size=64,
        d_model=32,
        n_layers=2,
        num_groups=4,
        expansion_factor=2,
        dropout=0.0,
        max_seq_len=16,
        num_attention_heads=4,
        qkv_slot_num=8,
        proj_slot_num=8,
        activation_fn="gelu",
        use_bias_in_attn_linear=False,
        rotary_pct=0.25,
        init_method="normal",
        output_layer_init_method="normal",
        norm_activation_type="layernorm",
        initializer_range=0.02,
        # bf16 operands at kernel boundaries (f32 MXU accumulation everywhere)
        compute_dtype=jnp.bfloat16,
    )
    # Probe (eagerly, outside jit) whether exact erf-GELU can be fused in-kernel.
    cfg["fuse_gelu_in_kernel"] = _erf_supported_in_kernel()

    root = jax.random.PRNGKey(0)
    pkey, dkey = jax.random.split(root)
    params = init_params(pkey, cfg)
    tokens = jax.random.randint(dkey, (2, 8), 0, cfg["vocab_size"], dtype=jnp.int32)

    fwd = jax.jit(functools.partial(token_former_forward, cfg=cfg))
    logits = fwd(params, tokens)
    jax.block_until_ready(logits)
    assert logits.shape == (2, 8, cfg["vocab_size"]), logits.shape
    assert logits.dtype == jnp.float32
    print("KERNEL_OK")
</pallas_src>

<mosaic_0001>
module attributes {stable_mosaic.version = 11 : i64} {
  func.func @_param_attn_kv_kernel(%arg0: i32, %arg1: memref<1x8x32xbf16, #tpu.memory_space<vmem>>, %arg2: memref<32x32xbf16, #tpu.memory_space<vmem>>, %arg3: memref<32x32xbf16, #tpu.memory_space<vmem>>, %arg4: memref<32x32xbf16, #tpu.memory_space<vmem>>, %arg5: memref<32x32xbf16, #tpu.memory_space<vmem>>, %arg6: memref<1x32x32xbf16, #tpu.memory_space<vmem>>, %arg7: memref<1x8x32xbf16, #tpu.memory_space<vmem>>) attributes {dimension_semantics = [#tpu.dimension_semantics<parallel>], iteration_bounds = array<i64: 2>, scalar_prefetch = 0 : i64, scratch_operands = 0 : i64, tpu.core_type = #tpu.core_type<tc>, window_params = [{transform_indices = @transform_0, window_bounds = array<i64: 1, 8, 32>}, {pipeline_mode = #tpu.pipeline_mode<synchronous>, transform_indices = @transform_1, window_bounds = array<i64: 32, 32>}, {pipeline_mode = #tpu.pipeline_mode<synchronous>, transform_indices = @transform_2, window_bounds = array<i64: 32, 32>}, {pipeline_mode = #tpu.pipeline_mode<synchronous>, transform_indices = @transform_3, window_bounds = array<i64: 32, 32>}, {pipeline_mode = #tpu.pipeline_mode<synchronous>, transform_indices = @transform_4, window_bounds = array<i64: 32, 32>}, {transform_indices = @transform_5, window_bounds = array<i64: 1, 32, 32>}, {transform_indices = @transform_6, window_bounds = array<i64: 1, 8, 32>}]} {
    %c0 = arith.constant 0 : index
    %c0_0 = arith.constant 0 : index
    %c0_1 = arith.constant 0 : index
    %0 = vector.load %arg1[%c0, %c0_0, %c0_1] : memref<1x8x32xbf16, #tpu.memory_space<vmem>>, vector<1x8x32xbf16>
    %1 = vector.shape_cast %0 : vector<1x8x32xbf16> to vector<8x32xbf16>
    %c0_2 = arith.constant 0 : index
    %c0_3 = arith.constant 0 : index
    %2 = vector.load %arg2[%c0_2, %c0_3] : memref<32x32xbf16, #tpu.memory_space<vmem>>, vector<32x32xbf16>
    %cst = arith.constant dense<0.000000e+00> : vector<8x32xf32>
    %3 = tpu.matmul %1, %2, %cst {dimension_numbers = #tpu.dot_dimension_numbers<[1], [0], [0], [1], [0, 0, 1, 1], [], []>} : vector<8x32xbf16>, vector<32x32xbf16>, vector<8x32xf32> -> vector<8x32xf32>
    %4 = arith.truncf %3 : vector<8x32xf32> to vector<8x32xbf16>
    %c0_4 = arith.constant 0 : index
    %c0_5 = arith.constant 0 : index
    %5 = vector.load %arg3[%c0_4, %c0_5] : memref<32x32xbf16, #tpu.memory_space<vmem>>, vector<32x32xbf16>
    %cst_6 = arith.constant dense<0.000000e+00> : vector<8x32xf32>
    %6 = tpu.matmul %1, %5, %cst_6 {dimension_numbers = #tpu.dot_dimension_numbers<[1], [0], [0], [1], [0, 0, 1, 1], [], []>} : vector<8x32xbf16>, vector<32x32xbf16>, vector<8x32xf32> -> vector<8x32xf32>
    %7 = arith.truncf %6 : vector<8x32xf32> to vector<8x32xbf16>
    %c0_7 = arith.constant 0 : index
    %c0_8 = arith.constant 0 : index
    %8 = vector.load %arg4[%c0_7, %c0_8] : memref<32x32xbf16, #tpu.memory_space<vmem>>, vector<32x32xbf16>
    %cst_9 = arith.constant dense<0.000000e+00> : vector<8x32xf32>
    %9 = tpu.matmul %1, %8, %cst_9 {dimension_numbers = #tpu.dot_dimension_numbers<[1], [0], [0], [1], [0, 0, 1, 1], [], []>} : vector<8x32xbf16>, vector<32x32xbf16>, vector<8x32xf32> -> vector<8x32xf32>
    %10 = arith.truncf %9 : vector<8x32xf32> to vector<8x32xbf16>
    %cst_10 = arith.constant dense<0.000000e+00> : vector<8x8xf32>
    %11 = tpu.matmul %4, %7, %cst_10 {dimension_numbers = #tpu.dot_dimension_numbers<[1], [1], [0], [0], [0, 0, 1, 0], [], []>} : vector<8x32xbf16>, vector<8x32xbf16>, vector<8x8xf32> -> vector<8x8xf32>
    %cst_11 = arith.constant 0.353553385 : f32
    %12 = vector.broadcast %cst_11 : f32 to vector<8x8xf32>
    %13 = arith.mulf %11, %12 : vector<8x8xf32>
    %cst_12 = arith.constant dense<0xFF800000> : vector<8xf32>
    %14 = vector.multi_reduction <maximumf>, %13, %cst_12 [1] : vector<8x8xf32> to vector<8xf32>
    %15 = vector.shape_cast %14 : vector<8xf32> to vector<8x1xf32>
    %16 = vector.broadcast %15 : vector<8x1xf32> to vector<8x8xf32>
    %17 = arith.subf %13, %16 : vector<8x8xf32>
    %18 = math.exp %17 : vector<8x8xf32>
    %cst_13 = arith.constant dense<0.000000e+00> : vector<8xf32>
    %19 = vector.multi_reduction <add>, %18, %cst_13 [1] : vector<8x8xf32> to vector<8xf32>
    %20 = vector.shape_cast %19 : vector<8xf32> to vector<8x1xf32>
    %21 = vector.broadcast %20 : vector<8x1xf32> to vector<8x8xf32>
    %22 = arith.divf %18, %21 : vector<8x8xf32>
    %23 = arith.truncf %22 : vector<8x8xf32> to vector<8x8xbf16>
    %cst_14 = arith.constant dense<0.000000e+00> : vector<8x32xf32>
    %24 = tpu.matmul %23, %10, %cst_14 {dimension_numbers = #tpu.dot_dimension_numbers<[1], [0], [0], [1], [0, 0, 1, 1], [], []>} : vector<8x8xbf16>, vector<8x32xbf16>, vector<8x32xf32> -> vector<8x32xf32>
    %25 = arith.truncf %24 : vector<8x32xf32> to vector<8x32xbf16>
    %c0_15 = arith.constant 0 : index
    %c0_16 = arith.constant 0 : index
    %26 = vector.load %arg5[%c0_15, %c0_16] : memref<32x32xbf16, #tpu.memory_space<vmem>>, vector<32x32xbf16>
    %cst_17 = arith.constant dense<0.000000e+00> : vector<8x32xf32>
    %27 = tpu.matmul %25, %26, %cst_17 {dimension_numbers = #tpu.dot_dimension_numbers<[1], [0], [0], [1], [0, 0, 1, 1], [], []>} : vector<8x32xbf16>, vector<32x32xbf16>, vector<8x32xf32> -> vector<8x32xf32>
    %28 = arith.truncf %27 : vector<8x32xf32> to vector<8x32xbf16>
    %c0_18 = arith.constant 0 : index
    %c0_19 = arith.constant 0 : index
    %c0_20 = arith.constant 0 : index
    %29 = vector.load %arg6[%c0_18, %c0_19, %c0_20] : memref<1x32x32xbf16, #tpu.memory_space<vmem>>, vector<1x32x32xbf16>
    %30 = vector.shape_cast %29 : vector<1x32x32xbf16> to vector<32x32xbf16>
    %cst_21 = arith.constant dense<0.000000e+00> : vector<8x32xf32>
    %31 = tpu.matmul %28, %30, %cst_21 {dimension_numbers = #tpu.dot_dimension_numbers<[1], [0], [0], [1], [0, 0, 1, 1], [], []>} : vector<8x32xbf16>, vector<32x32xbf16>, vector<8x32xf32> -> vector<8x32xf32>
    %32 = arith.truncf %31 : vector<8x32xf32> to vector<8x32xbf16>
    %c0_22 = arith.constant 0 : index
    %c0_23 = arith.constant 0 : index
    %c0_24 = arith.constant 0 : index
    %33 = vector.load %arg7[%c0_22, %c0_23, %c0_24] : memref<1x8x32xbf16, #tpu.memory_space<vmem>>, vector<1x8x32xbf16>
    %34 = vector.shape_cast %33 : vector<1x8x32xbf16> to vector<8x32xbf16>
    %35 = vector.shape_cast %32 : vector<8x32xbf16> to vector<1x8x32xbf16>
    tpu.vector_store %arg7[%c0_22, %c0_23, %c0_24], %35 {strides = array<i32>} : memref<1x8x32xbf16, #tpu.memory_space<vmem>>, vector<1x8x32xbf16>,
    return
  }
  func.func @transform_0(%arg0: i32) -> (i32, i32, i32) {
    %c0_i32 = arith.constant 0 : i32
    %c0_i32_0 = arith.constant 0 : i32
    %c0_i32_1 = arith.constant 0 : i32
    return %arg0, %c0_i32, %c0_i32_0 : i32, i32, i32
  }
  func.func @transform_1(%arg0: i32) -> (i32, i32) {
    %c0_i32 = arith.constant 0 : i32
    %c0_i32_0 = arith.constant 0 : i32
    %c0_i32_1 = arith.constant 0 : i32
    return %c0_i32, %c0_i32_0 : i32, i32
  }
  func.func @transform_2(%arg0: i32) -> (i32, i32) {
    %c0_i32 = arith.constant 0 : i32
    %c0_i32_0 = arith.constant 0 : i32
    %c0_i32_1 = arith.constant 0 : i32
    return %c0_i32, %c0_i32_0 : i32, i32
  }
  func.func @transform_3(%arg0: i32) -> (i32, i32) {
    %c0_i32 = arith.constant 0 : i32
    %c0_i32_0 = arith.constant 0 : i32
    %c0_i32_1 = arith.constant 0 : i32
    return %c0_i32, %c0_i32_0 : i32, i32
  }
  func.func @transform_4(%arg0: i32) -> (i32, i32) {
    %c0_i32 = arith.constant 0 : i32
    %c0_i32_0 = arith.constant 0 : i32
    %c0_i32_1 = arith.constant 0 : i32
    return %c0_i32, %c0_i32_0 : i32, i32
  }
  func.func @transform_5(%arg0: i32) -> (i32, i32, i32) {
    %c0_i32 = arith.constant 0 : i32
    %c0_i32_0 = arith.constant 0 : i32
    %c0_i32_1 = arith.constant 0 : i32
    return %arg0, %c0_i32, %c0_i32_0 : i32, i32, i32
  }
  func.func @transform_6(%arg0: i32) -> (i32, i32, i32) {
    %c0_i32 = arith.constant 0 : i32
    %c0_i32_0 = arith.constant 0 : i32
    %c0_i32_1 = arith.constant 0 : i32
    return %arg0, %c0_i32, %c0_i32_0 : i32, i32, i32
  }
}

module attributes {stable_mosaic.version = 11 : i64} {
  func.func @_add_ln_kernel(%arg0: i32, %arg1: memref<16x32xbf16, #tpu.memory_space<vmem>>, %arg2: memref<16x32xbf16, #tpu.memory_space<vmem>>, %arg3: memref<16x32xbf16, #tpu.memory_space<vmem>>) attributes {dimension_semantics = [#tpu.dimension_semantics<parallel>], iteration_bounds = array<i64: 1>, scalar_prefetch = 0 : i64, scratch_operands = 0 : i64, tpu.core_type = #tpu.core_type<tc>, window_params = [{transform_indices = @transform_0, window_bounds = array<i64: 16, 32>}, {transform_indices = @transform_1, window_bounds = array<i64: 16, 32>}, {transform_indices = @transform_2, window_bounds = array<i64: 16, 32>}]} {
    %c0 = arith.constant 0 : index
    %c0_0 = arith.constant 0 : index
    %0 = vector.load %arg1[%c0, %c0_0] : memref<16x32xbf16, #tpu.memory_space<vmem>>, vector<16x32xbf16>
    %1 = arith.extf %0 : vector<16x32xbf16> to vector<16x32xf32>
    %c0_1 = arith.constant 0 : index
    %c0_2 = arith.constant 0 : index
    %2 = vector.load %arg2[%c0_1, %c0_2] : memref<16x32xbf16, #tpu.memory_space<vmem>>, vector<16x32xbf16>
    %3 = arith.extf %2 : vector<16x32xbf16> to vector<16x32xf32>
    %4 = arith.addf %1, %3 : vector<16x32xf32>
    %cst = arith.constant dense<0.000000e+00> : vector<16xf32>
    %5 = vector.multi_reduction <add>, %4, %cst [1] : vector<16x32xf32> to vector<16xf32>
    %6 = vector.shape_cast %5 : vector<16xf32> to vector<16x1xf32>
    %cst_3 = arith.constant 3.200000e+01 : f32
    %7 = vector.broadcast %cst_3 : f32 to vector<16x1xf32>
    %8 = arith.divf %6, %7 : vector<16x1xf32>
    %9 = vector.broadcast %8 : vector<16x1xf32> to vector<16x32xf32>
    %10 = arith.subf %4, %9 : vector<16x32xf32>
    %11 = arith.mulf %10, %10 : vector<16x32xf32>
    %cst_4 = arith.constant dense<0.000000e+00> : vector<16xf32>
    %12 = vector.multi_reduction <add>, %11, %cst_4 [1] : vector<16x32xf32> to vector<16xf32>
    %13 = vector.shape_cast %12 : vector<16xf32> to vector<16x1xf32>
    %cst_5 = arith.constant 3.200000e+01 : f32
    %14 = vector.broadcast %cst_5 : f32 to vector<16x1xf32>
    %15 = arith.divf %13, %14 : vector<16x1xf32>
    %cst_6 = arith.constant 9.99999974E-6 : f32
    %16 = vector.broadcast %cst_6 : f32 to vector<16x1xf32>
    %17 = arith.addf %15, %16 : vector<16x1xf32>
    %18 = math.rsqrt %17 : vector<16x1xf32>
    %19 = vector.broadcast %18 : vector<16x1xf32> to vector<16x32xf32>
    %20 = arith.mulf %10, %19 : vector<16x32xf32>
    %21 = arith.truncf %20 : vector<16x32xf32> to vector<16x32xbf16>
    %c0_7 = arith.constant 0 : index
    %c0_8 = arith.constant 0 : index
    %22 = vector.load %arg3[%c0_7, %c0_8] : memref<16x32xbf16, #tpu.memory_space<vmem>>, vector<16x32xbf16>
    tpu.vector_store %arg3[%c0_7, %c0_8], %21 {strides = array<i32>} : memref<16x32xbf16, #tpu.memory_space<vmem>>, vector<16x32xbf16>,
    return
  }
  func.func @transform_0(%arg0: i32) -> (i32, i32) {
    %c0_i32 = arith.constant 0 : i32
    %c0_i32_0 = arith.constant 0 : i32
    return %arg0, %c0_i32 : i32, i32
  }
  func.func @transform_1(%arg0: i32) -> (i32, i32) {
    %c0_i32 = arith.constant 0 : i32
    %c0_i32_0 = arith.constant 0 : i32
    return %arg0, %c0_i32 : i32, i32
  }
  func.func @transform_2(%arg0: i32) -> (i32, i32) {
    %c0_i32 = arith.constant 0 : i32
    %c0_i32_0 = arith.constant 0 : i32
    return %arg0, %c0_i32 : i32, i32
  }
}

module attributes {stable_mosaic.version = 11 : i64} {
  func.func @_gqa_kernel(%arg0: i32, %arg1: i32, %arg2: memref<1x8x32xbf16, #tpu.memory_space<vmem>>, %arg3: memref<8x8xf32, #tpu.memory_space<vmem>>, %arg4: memref<8x8xf32, #tpu.memory_space<vmem>>, %arg5: memref<8x32xbf16, #tpu.memory_space<vmem>>, %arg6: memref<8x32xbf16, #tpu.memory_space<vmem>>, %arg7: memref<32x32xbf16, #tpu.memory_space<vmem>>, %arg8: memref<32x32xbf16, #tpu.memory_space<vmem>>, %arg9: memref<1x8x32xbf16, #tpu.memory_space<vmem>>) attributes {dimension_semantics = [#tpu.dimension_semantics<parallel>, #tpu.dimension_semantics<parallel>], iteration_bounds = array<i64: 2, 1>, scalar_prefetch = 0 : i64, scratch_operands = 0 : i64, tpu.core_type = #tpu.core_type<tc>, window_params = [{transform_indices = @transform_0, window_bounds = array<i64: 1, 8, 32>}, {transform_indices = @transform_1, window_bounds = array<i64: 8, 8>}, {transform_indices = @transform_2, window_bounds = array<i64: 8, 8>}, {pipeline_mode = #tpu.pipeline_mode<synchronous>, transform_indices = @transform_3, window_bounds = array<i64: 8, 32>}, {pipeline_mode = #tpu.pipeline_mode<synchronous>, transform_indices = @transform_4, window_bounds = array<i64: 8, 32>}, {pipeline_mode = #tpu.pipeline_mode<synchronous>, transform_indices = @transform_5, window_bounds = array<i64: 32, 32>}, {pipeline_mode = #tpu.pipeline_mode<synchronous>, transform_indices = @transform_6, window_bounds = array<i64: 32, 32>}, {transform_indices = @transform_7, window_bounds = array<i64: 1, 8, 32>}]} {
    %c0 = arith.constant 0 : index
    %c0_0 = arith.constant 0 : index
    %c0_1 = arith.constant 0 : index
    %0 = vector.load %arg2[%c0, %c0_0, %c0_1] : memref<1x8x32xbf16, #tpu.memory_space<vmem>>, vector<1x8x32xbf16>
    %1 = vector.shape_cast %0 : vector<1x8x32xbf16> to vector<8x32xbf16>
    %c0_2 = arith.constant 0 : index
    %c0_3 = arith.constant 0 : index
    %2 = vector.load %arg5[%c0_2, %c0_3] : memref<8x32xbf16, #tpu.memory_space<vmem>>, vector<8x32xbf16>
    %c0_4 = arith.constant 0 : index
    %c0_5 = arith.constant 0 : index
    %3 = vector.load %arg6[%c0_4, %c0_5] : memref<8x32xbf16, #tpu.memory_space<vmem>>, vector<8x32xbf16>
    %c0_6 = arith.constant 0 : index
    %c0_7 = arith.constant 0 : index
    %4 = vector.load %arg7[%c0_6, %c0_7] : memref<32x32xbf16, #tpu.memory_space<vmem>>, vector<32x32xbf16>
    %cst = arith.constant dense<0.000000e+00> : vector<8x32xf32>
    %5 = tpu.matmul %1, %4, %cst {dimension_numbers = #tpu.dot_dimension_numbers<[1], [0], [0], [1], [0, 0, 1, 1], [], []>} : vector<8x32xbf16>, vector<32x32xbf16>, vector<8x32xf32> -> vector<8x32xf32>
    %c0_8 = arith.constant 0 : index
    %c0_9 = arith.constant 0 : index
    %6 = vector.load %arg3[%c0_8, %c0_9] : memref<8x8xf32, #tpu.memory_space<vmem>>, vector<8x8xf32>
    %c0_10 = arith.constant 0 : index
    %c0_11 = arith.constant 0 : index
    %7 = vector.load %arg4[%c0_10, %c0_11] : memref<8x8xf32, #tpu.memory_space<vmem>>, vector<8x8xf32>
    %8 = vector.extract_strided_slice %5 {offsets = [0, 0], sizes = [8, 8], strides = [1, 1]} : vector<8x32xf32> to vector<8x8xf32>
    %9 = vector.extract_strided_slice %8 {offsets = [0, 4], sizes = [8, 4], strides = [1, 1]} : vector<8x8xf32> to vector<8x4xf32>
    %cst_12 = arith.constant 0.000000e+00 : f32
    %10 = vector.broadcast %cst_12 : f32 to vector<8x4xf32>
    %11 = arith.subf %10, %9 : vector<8x4xf32>
    %12 = vector.extract_strided_slice %8 {offsets = [0, 0], sizes = [8, 4], strides = [1, 1]} : vector<8x8xf32> to vector<8x4xf32>
    %13 = tpu.concatenate %11, %12 in 1 : vector<8x4xf32>, vector<8x4xf32> -> vector<8x8xf32>
    %14 = arith.mulf %8, %6 : vector<8x8xf32>
    %15 = arith.mulf %13, %7 : vector<8x8xf32>
    %16 = arith.addf %14, %15 : vector<8x8xf32>
    %17 = vector.extract_strided_slice %5 {offsets = [0, 8], sizes = [8, 24], strides = [1, 1]} : vector<8x32xf32> to vector<8x24xf32>
    %18 = tpu.concatenate %16, %17 in 1 : vector<8x8xf32>, vector<8x24xf32> -> vector<8x32xf32>
    %19 = arith.truncf %18 : vector<8x32xf32> to vector<8x32xbf16>
    %20 = vector.extract_strided_slice %19 {offsets = [0, 0], sizes = [8, 8], strides = [1, 1]} : vector<8x32xbf16> to vector<8x8xbf16>
    %21 = vector.extract_strided_slice %2 {offsets = [0, 0], sizes = [8, 8], strides = [1, 1]} : vector<8x32xbf16> to vector<8x8xbf16>
    %22 = vector.extract_strided_slice %3 {offsets = [0, 0], sizes = [8, 8], strides = [1, 1]} : vector<8x32xbf16> to vector<8x8xbf16>
    %cst_13 = arith.constant dense<0.000000e+00> : vector<8x8xf32>
    %23 = tpu.matmul %20, %21, %cst_13 {dimension_numbers = #tpu.dot_dimension_numbers<[1], [1], [0], [0], [0, 0, 1, 0], [], []>} : vector<8x8xbf16>, vector<8x8xbf16>, vector<8x8xf32> -> vector<8x8xf32>
    %cst_14 = arith.constant 0.353553385 : f32
    %24 = vector.broadcast %cst_14 : f32 to vector<8x8xf32>
    %25 = arith.mulf %23, %24 : vector<8x8xf32>
    %cst_15 = arith.constant dense<0xFF800000> : vector<8xf32>
    %26 = vector.multi_reduction <maximumf>, %25, %cst_15 [1] : vector<8x8xf32> to vector<8xf32>
    %27 = vector.shape_cast %26 : vector<8xf32> to vector<8x1xf32>
    %28 = vector.broadcast %27 : vector<8x1xf32> to vector<8x8xf32>
    %29 = arith.subf %25, %28 : vector<8x8xf32>
    %30 = math.exp %29 : vector<8x8xf32>
    %cst_16 = arith.constant dense<0.000000e+00> : vector<8xf32>
    %31 = vector.multi_reduction <add>, %30, %cst_16 [1] : vector<8x8xf32> to vector<8xf32>
    %32 = vector.shape_cast %31 : vector<8xf32> to vector<8x1xf32>
    %33 = vector.broadcast %32 : vector<8x1xf32> to vector<8x8xf32>
    %34 = arith.divf %30, %33 : vector<8x8xf32>
    %35 = arith.truncf %34 : vector<8x8xf32> to vector<8x8xbf16>
    %cst_17 = arith.constant dense<0.000000e+00> : vector<8x8xf32>
    %36 = tpu.matmul %35, %22, %cst_17 {dimension_numbers = #tpu.dot_dimension_numbers<[1], [0], [0], [1], [0, 0, 1, 1], [], []>} : vector<8x8xbf16>, vector<8x8xbf16>, vector<8x8xf32> -> vector<8x8xf32>
    %37 = vector.extract_strided_slice %19 {offsets = [0, 8], sizes = [8, 8], strides = [1, 1]} : vector<8x32xbf16> to vector<8x8xbf16>
    %38 = vector.extract_strided_slice %2 {offsets = [0, 8], sizes = [8, 8], strides = [1, 1]} : vector<8x32xbf16> to vector<8x8xbf16>
    %39 = vector.extract_strided_slice %3 {offsets = [0, 8], sizes = [8, 8], strides = [1, 1]} : vector<8x32xbf16> to vector<8x8xbf16>
    %cst_18 = arith.constant dense<0.000000e+00> : vector<8x8xf32>
    %40 = tpu.matmul %37, %38, %cst_18 {dimension_numbers = #tpu.dot_dimension_numbers<[1], [1], [0], [0], [0, 0, 1, 0], [], []>} : vector<8x8xbf16>, vector<8x8xbf16>, vector<8x8xf32> -> vector<8x8xf32>
    %cst_19 = arith.constant 0.353553385 : f32
    %41 = vector.broadcast %cst_19 : f32 to vector<8x8xf32>
    %42 = arith.mulf %40, %41 : vector<8x8xf32>
    %cst_20 = arith.constant dense<0xFF800000> : vector<8xf32>
    %43 = vector.multi_reduction <maximumf>, %42, %cst_20 [1] : vector<8x8xf32> to vector<8xf32>
    %44 = vector.shape_cast %43 : vector<8xf32> to vector<8x1xf32>
    %45 = vector.broadcast %44 : vector<8x1xf32> to vector<8x8xf32>
    %46 = arith.subf %42, %45 : vector<8x8xf32>
    %47 = math.exp %46 : vector<8x8xf32>
    %cst_21 = arith.constant dense<0.000000e+00> : vector<8xf32>
    %48 = vector.multi_reduction <add>, %47, %cst_21 [1] : vector<8x8xf32> to vector<8xf32>
    %49 = vector.shape_cast %48 : vector<8xf32> to vector<8x1xf32>
    %50 = vector.broadcast %49 : vector<8x1xf32> to vector<8x8xf32>
    %51 = arith.divf %47, %50 : vector<8x8xf32>
    %52 = arith.truncf %51 : vector<8x8xf32> to vector<8x8xbf16>
    %cst_22 = arith.constant dense<0.000000e+00> : vector<8x8xf32>
    %53 = tpu.matmul %52, %39, %cst_22 {dimension_numbers = #tpu.dot_dimension_numbers<[1], [0], [0], [1], [0, 0, 1, 1], [], []>} : vector<8x8xbf16>, vector<8x8xbf16>, vector<8x8xf32> -> vector<8x8xf32>
    %54 = vector.extract_strided_slice %19 {offsets = [0, 16], sizes = [8, 8], strides = [1, 1]} : vector<8x32xbf16> to vector<8x8xbf16>
    %55 = vector.extract_strided_slice %2 {offsets = [0, 16], sizes = [8, 8], strides = [1, 1]} : vector<8x32xbf16> to vector<8x8xbf16>
    %56 = vector.extract_strided_slice %3 {offsets = [0, 16], sizes = [8, 8], strides = [1, 1]} : vector<8x32xbf16> to vector<8x8xbf16>
    %cst_23 = arith.constant dense<0.000000e+00> : vector<8x8xf32>
    %57 = tpu.matmul %54, %55, %cst_23 {dimension_numbers = #tpu.dot_dimension_numbers<[1], [1], [0], [0], [0, 0, 1, 0], [], []>} : vector<8x8xbf16>, vector<8x8xbf16>, vector<8x8xf32> -> vector<8x8xf32>
    %cst_24 = arith.constant 0.353553385 : f32
    %58 = vector.broadcast %cst_24 : f32 to vector<8x8xf32>
    %59 = arith.mulf %57, %58 : vector<8x8xf32>
    %cst_25 = arith.constant dense<0xFF800000> : vector<8xf32>
    %60 = vector.multi_reduction <maximumf>, %59, %cst_25 [1] : vector<8x8xf32> to vector<8xf32>
    %61 = vector.shape_cast %60 : vector<8xf32> to vector<8x1xf32>
    %62 = vector.broadcast %61 : vector<8x1xf32> to vector<8x8xf32>
    %63 = arith.subf %59, %62 : vector<8x8xf32>
    %64 = math.exp %63 : vector<8x8xf32>
    %cst_26 = arith.constant dense<0.000000e+00> : vector<8xf32>
    %65 = vector.multi_reduction <add>, %64, %cst_26 [1] : vector<8x8xf32> to vector<8xf32>
    %66 = vector.shape_cast %65 : vector<8xf32> to vector<8x1xf32>
    %67 = vector.broadcast %66 : vector<8x1xf32> to vector<8x8xf32>
    %68 = arith.divf %64, %67 : vector<8x8xf32>
    %69 = arith.truncf %68 : vector<8x8xf32> to vector<8x8xbf16>
    %cst_27 = arith.constant dense<0.000000e+00> : vector<8x8xf32>
    %70 = tpu.matmul %69, %56, %cst_27 {dimension_numbers = #tpu.dot_dimension_numbers<[1], [0], [0], [1], [0, 0, 1, 1], [], []>} : vector<8x8xbf16>, vector<8x8xbf16>, vector<8x8xf32> -> vector<8x8xf32>
    %71 = vector.extract_strided_slice %19 {offsets = [0, 24], sizes = [8, 8], strides = [1, 1]} : vector<8x32xbf16> to vector<8x8xbf16>
    %72 = vector.extract_strided_slice %2 {offsets = [0, 24], sizes = [8, 8], strides = [1, 1]} : vector<8x32xbf16> to vector<8x8xbf16>
    %73 = vector.extract_strided_slice %3 {offsets = [0, 24], sizes = [8, 8], strides = [1, 1]} : vector<8x32xbf16> to vector<8x8xbf16>
    %cst_28 = arith.constant dense<0.000000e+00> : vector<8x8xf32>
    %74 = tpu.matmul %71, %72, %cst_28 {dimension_numbers = #tpu.dot_dimension_numbers<[1], [1], [0], [0], [0, 0, 1, 0], [], []>} : vector<8x8xbf16>, vector<8x8xbf16>, vector<8x8xf32> -> vector<8x8xf32>
    %cst_29 = arith.constant 0.353553385 : f32
    %75 = vector.broadcast %cst_29 : f32 to vector<8x8xf32>
    %76 = arith.mulf %74, %75 : vector<8x8xf32>
    %cst_30 = arith.constant dense<0xFF800000> : vector<8xf32>
    %77 = vector.multi_reduction <maximumf>, %76, %cst_30 [1] : vector<8x8xf32> to vector<8xf32>
    %78 = vector.shape_cast %77 : vector<8xf32> to vector<8x1xf32>
    %79 = vector.broadcast %78 : vector<8x1xf32> to vector<8x8xf32>
    %80 = arith.subf %76, %79 : vector<8x8xf32>
    %81 = math.exp %80 : vector<8x8xf32>
    %cst_31 = arith.constant dense<0.000000e+00> : vector<8xf32>
    %82 = vector.multi_reduction <add>, %81, %cst_31 [1] : vector<8x8xf32> to vector<8xf32>
    %83 = vector.shape_cast %82 : vector<8xf32> to vector<8x1xf32>
    %84 = vector.broadcast %83 : vector<8x1xf32> to vector<8x8xf32>
    %85 = arith.divf %81, %84 : vector<8x8xf32>
    %86 = arith.truncf %85 : vector<8x8xf32> to vector<8x8xbf16>
    %cst_32 = arith.constant dense<0.000000e+00> : vector<8x8xf32>
    %87 = tpu.matmul %86, %73, %cst_32 {dimension_numbers = #tpu.dot_dimension_numbers<[1], [0], [0], [1], [0, 0, 1, 1], [], []>} : vector<8x8xbf16>, vector<8x8xbf16>, vector<8x8xf32> -> vector<8x8xf32>
    %88 = tpu.concatenate %36, %53, %70, %87 in 1 : vector<8x8xf32>, vector<8x8xf32>, vector<8x8xf32>, vector<8x8xf32> -> vector<8x32xf32>
    %89 = arith.truncf %88 : vector<8x32xf32> to vector<8x32xbf16>
    %c0_33 = arith.constant 0 : index
    %c0_34 = arith.constant 0 : index
    %90 = vector.load %arg8[%c0_33, %c0_34] : memref<32x32xbf16, #tpu.memory_space<vmem>>, vector<32x32xbf16>
    %cst_35 = arith.constant dense<0.000000e+00> : vector<8x32xf32>
    %91 = tpu.matmul %89, %90, %cst_35 {dimension_numbers = #tpu.dot_dimension_numbers<[1], [0], [0], [1], [0, 0, 1, 1], [], []>} : vector<8x32xbf16>, vector<32x32xbf16>, vector<8x32xf32> -> vector<8x32xf32>
    %92 = arith.truncf %91 : vector<8x32xf32> to vector<8x32xbf16>
    %c0_36 = arith.constant 0 : index
    %c0_37 = arith.constant 0 : index
    %c0_38 = arith.constant 0 : index
    %93 = vector.load %arg9[%c0_36, %c0_37, %c0_38] : memref<1x8x32xbf16, #tpu.memory_space<vmem>>, vector<1x8x32xbf16>
    %94 = vector.shape_cast %93 : vector<1x8x32xbf16> to vector<8x32xbf16>
    %95 = vector.shape_cast %92 : vector<8x32xbf16> to vector<1x8x32xbf16>
    tpu.vector_store %arg9[%c0_36, %c0_37, %c0_38], %95 {strides = array<i32>} : memref<1x8x32xbf16, #tpu.memory_space<vmem>>, vector<1x8x32xbf16>,
    return
  }
  func.func @transform_0(%arg0: i32, %arg1: i32) -> (i32, i32, i32) {
    %c0_i32 = arith.constant 0 : i32
    %c0_i32_0 = arith.constant 0 : i32
    return %arg0, %arg1, %c0_i32 : i32, i32, i32
  }
  func.func @transform_1(%arg0: i32, %arg1: i32) -> (i32, i32) {
    %c0_i32 = arith.constant 0 : i32
    %c0_i32_0 = arith.constant 0 : i32
    return %arg1, %c0_i32 : i32, i32
  }
  func.func @transform_2(%arg0: i32, %arg1: i32) -> (i32, i32) {
    %c0_i32 = arith.constant 0 : i32
    %c0_i32_0 = arith.constant 0 : i32
    return %arg1, %c0_i32 : i32, i32
  }
  func.func @transform_3(%arg0: i32, %arg1: i32) -> (i32, i32) {
    %c0_i32 = arith.constant 0 : i32
    %c0_i32_0 = arith.constant 0 : i32
    %c0_i32_1 = arith.constant 0 : i32
    return %c0_i32, %c0_i32_0 : i32, i32
  }
  func.func @transform_4(%arg0: i32, %arg1: i32) -> (i32, i32) {
    %c0_i32 = arith.constant 0 : i32
    %c0_i32_0 = arith.constant 0 : i32
    %c0_i32_1 = arith.constant 0 : i32
    return %c0_i32, %c0_i32_0 : i32, i32
  }
  func.func @transform_5(%arg0: i32, %arg1: i32) -> (i32, i32) {
    %c0_i32 = arith.constant 0 : i32
    %c0_i32_0 = arith.constant 0 : i32
    %c0_i32_1 = arith.constant 0 : i32
    return %c0_i32, %c0_i32_0 : i32, i32
  }
  func.func @transform_6(%arg0: i32, %arg1: i32) -> (i32, i32) {
    %c0_i32 = arith.constant 0 : i32
    %c0_i32_0 = arith.constant 0 : i32
    %c0_i32_1 = arith.constant 0 : i32
    return %c0_i32, %c0_i32_0 : i32, i32
  }
  func.func @transform_7(%arg0: i32, %arg1: i32) -> (i32, i32, i32) {
    %c0_i32 = arith.constant 0 : i32
    %c0_i32_0 = arith.constant 0 : i32
    return %arg0, %arg1, %c0_i32 : i32, i32, i32
  }
}

module attributes {stable_mosaic.version = 11 : i64} {
  func.func @_linear_kernel(%arg0: i32, %arg1: i32, %arg2: i32, %arg3: memref<16x32xbf16, #tpu.memory_space<vmem>>, %arg4: memref<32x64xbf16, #tpu.memory_space<vmem>>, %arg5: memref<16x64xbf16, #tpu.memory_space<vmem>>, %arg6: memref<16x64xf32, #tpu.memory_space<vmem>>) attributes {dimension_semantics = [#tpu.dimension_semantics<parallel>, #tpu.dimension_semantics<parallel>, #tpu.dimension_semantics<arbitrary>], iteration_bounds = array<i64: 1, 1, 1>, scalar_prefetch = 0 : i64, scratch_operands = 1 : i64, tpu.core_type = #tpu.core_type<tc>, window_params = [{transform_indices = @transform_0, window_bounds = array<i64: 16, 32>}, {transform_indices = @transform_1, window_bounds = array<i64: 32, 64>}, {transform_indices = @transform_2, window_bounds = array<i64: 16, 64>}]} {
    %c0_i32 = arith.constant 0 : i32
    %0 = arith.cmpi eq, %arg2, %c0_i32 : i32
    %1 = arith.extui %0 : i1 to i32
    %c0_i32_0 = arith.constant 0 : i32
    %2 = arith.cmpi ne, %1, %c0_i32_0 : i32
    scf.if %2 {
      %cst_10 = arith.constant 0.000000e+00 : f32
      %12 = vector.broadcast %cst_10 : f32 to vector<16x64xf32>
      %c0_11 = arith.constant 0 : index
      %c0_12 = arith.constant 0 : index
      %13 = vector.load %arg6[%c0_11, %c0_12] : memref<16x64xf32, #tpu.memory_space<vmem>>, vector<16x64xf32>
      tpu.vector_store %arg6[%c0_11, %c0_12], %12 {strides = array<i32>} : memref<16x64xf32, #tpu.memory_space<vmem>>, vector<16x64xf32>,
    } else {
    }
    %c0 = arith.constant 0 : index
    %c0_1 = arith.constant 0 : index
    %3 = vector.load %arg6[%c0, %c0_1] : memref<16x64xf32, #tpu.memory_space<vmem>>, vector<16x64xf32>
    %c0_2 = arith.constant 0 : index
    %c0_3 = arith.constant 0 : index
    %4 = vector.load %arg3[%c0_2, %c0_3] : memref<16x32xbf16, #tpu.memory_space<vmem>>, vector<16x32xbf16>
    %c0_4 = arith.constant 0 : index
    %c0_5 = arith.constant 0 : index
    %5 = vector.load %arg4[%c0_4, %c0_5] : memref<32x64xbf16, #tpu.memory_space<vmem>>, vector<32x64xbf16>
    %cst = arith.constant dense<0.000000e+00> : vector<16x64xf32>
    %6 = tpu.matmul %4, %5, %cst {dimension_numbers = #tpu.dot_dimension_numbers<[1], [0], [0], [1], [0, 0, 1, 1], [], []>} : vector<16x32xbf16>, vector<32x64xbf16>, vector<16x64xf32> -> vector<16x64xf32>
    %7 = arith.addf %3, %6 : vector<16x64xf32>
    %c0_6 = arith.constant 0 : index
    %c0_7 = arith.constant 0 : index
    %8 = vector.load %arg6[%c0_6, %c0_7] : memref<16x64xf32, #tpu.memory_space<vmem>>, vector<16x64xf32>
    tpu.vector_store %arg6[%c0_6, %c0_7], %7 {strides = array<i32>} : memref<16x64xf32, #tpu.memory_space<vmem>>, vector<16x64xf32>,
    %c0_i32_8 = arith.constant 0 : i32
    %9 = arith.cmpi eq, %arg2, %c0_i32_8 : i32
    %10 = arith.extui %9 : i1 to i32
    %c0_i32_9 = arith.constant 0 : i32
    %11 = arith.cmpi ne, %10, %c0_i32_9 : i32
    scf.if %11 {
      %c0_10 = arith.constant 0 : index
      %c0_11 = arith.constant 0 : index
      %12 = vector.load %arg6[%c0_10, %c0_11] : memref<16x64xf32, #tpu.memory_space<vmem>>, vector<16x64xf32>
      %13 = arith.truncf %12 : vector<16x64xf32> to vector<16x64xbf16>
      %c0_12 = arith.constant 0 : index
      %c0_13 = arith.constant 0 : index
      %14 = vector.load %arg5[%c0_12, %c0_13] : memref<16x64xbf16, #tpu.memory_space<vmem>>, vector<16x64xbf16>
      tpu.vector_store %arg5[%c0_12, %c0_13], %13 {strides = array<i32>} : memref<16x64xbf16, #tpu.memory_space<vmem>>, vector<16x64xbf16>,
    } else {
    }
    return
  }
  func.func @transform_0(%arg0: i32, %arg1: i32, %arg2: i32) -> (i32, i32) {
    %c0_i32 = arith.constant 0 : i32
    return %arg0, %arg2 : i32, i32
  }
  func.func @transform_1(%arg0: i32, %arg1: i32, %arg2: i32) -> (i32, i32) {
    %c0_i32 = arith.constant 0 : i32
    return %arg2, %arg1 : i32, i32
  }
  func.func @transform_2(%arg0: i32, %arg1: i32, %arg2: i32) -> (i32, i32) {
    %c0_i32 = arith.constant 0 : i32
    return %arg0, %arg1 : i32, i32
  }
}

module attributes {stable_mosaic.version = 11 : i64} {
  func.func @_linear_kernel(%arg0: i32, %arg1: i32, %arg2: i32, %arg3: memref<16x64xbf16, #tpu.memory_space<vmem>>, %arg4: memref<64x32xbf16, #tpu.memory_space<vmem>>, %arg5: memref<16x32xbf16, #tpu.memory_space<vmem>>, %arg6: memref<16x32xf32, #tpu.memory_space<vmem>>) attributes {dimension_semantics = [#tpu.dimension_semantics<parallel>, #tpu.dimension_semantics<parallel>, #tpu.dimension_semantics<arbitrary>], iteration_bounds = array<i64: 1, 1, 1>, scalar_prefetch = 0 : i64, scratch_operands = 1 : i64, tpu.core_type = #tpu.core_type<tc>, window_params = [{transform_indices = @transform_0, window_bounds = array<i64: 16, 64>}, {transform_indices = @transform_1, window_bounds = array<i64: 64, 32>}, {transform_indices = @transform_2, window_bounds = array<i64: 16, 32>}]} {
    %c0_i32 = arith.constant 0 : i32
    %0 = arith.cmpi eq, %arg2, %c0_i32 : i32
    %1 = arith.extui %0 : i1 to i32
    %c0_i32_0 = arith.constant 0 : i32
    %2 = arith.cmpi ne, %1, %c0_i32_0 : i32
    scf.if %2 {
      %cst_10 = arith.constant 0.000000e+00 : f32
      %12 = vector.broadcast %cst_10 : f32 to vector<16x32xf32>
      %c0_11 = arith.constant 0 : index
      %c0_12 = arith.constant 0 : index
      %13 = vector.load %arg6[%c0_11, %c0_12] : memref<16x32xf32, #tpu.memory_space<vmem>>, vector<16x32xf32>
      tpu.vector_store %arg6[%c0_11, %c0_12], %12 {strides = array<i32>} : memref<16x32xf32, #tpu.memory_space<vmem>>, vector<16x32xf32>,
    } else {
    }
    %c0 = arith.constant 0 : index
    %c0_1 = arith.constant 0 : index
    %3 = vector.load %arg6[%c0, %c0_1] : memref<16x32xf32, #tpu.memory_space<vmem>>, vector<16x32xf32>
    %c0_2 = arith.constant 0 : index
    %c0_3 = arith.constant 0 : index
    %4 = vector.load %arg3[%c0_2, %c0_3] : memref<16x64xbf16, #tpu.memory_space<vmem>>, vector<16x64xbf16>
    %c0_4 = arith.constant 0 : index
    %c0_5 = arith.constant 0 : index
    %5 = vector.load %arg4[%c0_4, %c0_5] : memref<64x32xbf16, #tpu.memory_space<vmem>>, vector<64x32xbf16>
    %cst = arith.constant dense<0.000000e+00> : vector<16x32xf32>
    %6 = tpu.matmul %4, %5, %cst {dimension_numbers = #tpu.dot_dimension_numbers<[1], [0], [0], [1], [0, 0, 1, 1], [], []>} : vector<16x64xbf16>, vector<64x32xbf16>, vector<16x32xf32> -> vector<16x32xf32>
    %7 = arith.addf %3, %6 : vector<16x32xf32>
    %c0_6 = arith.constant 0 : index
    %c0_7 = arith.constant 0 : index
    %8 = vector.load %arg6[%c0_6, %c0_7] : memref<16x32xf32, #tpu.memory_space<vmem>>, vector<16x32xf32>
    tpu.vector_store %arg6[%c0_6, %c0_7], %7 {strides = array<i32>} : memref<16x32xf32, #tpu.memory_space<vmem>>, vector<16x32xf32>,
    %c0_i32_8 = arith.constant 0 : i32
    %9 = arith.cmpi eq, %arg2, %c0_i32_8 : i32
    %10 = arith.extui %9 : i1 to i32
    %c0_i32_9 = arith.constant 0 : i32
    %11 = arith.cmpi ne, %10, %c0_i32_9 : i32
    scf.if %11 {
      %c0_10 = arith.constant 0 : index
      %c0_11 = arith.constant 0 : index
      %12 = vector.load %arg6[%c0_10, %c0_11] : memref<16x32xf32, #tpu.memory_space<vmem>>, vector<16x32xf32>
      %13 = arith.truncf %12 : vector<16x32xf32> to vector<16x32xbf16>
      %c0_12 = arith.constant 0 : index
      %c0_13 = arith.constant 0 : index
      %14 = vector.load %arg5[%c0_12, %c0_13] : memref<16x32xbf16, #tpu.memory_space<vmem>>, vector<16x32xbf16>
      tpu.vector_store %arg5[%c0_12, %c0_13], %13 {strides = array<i32>} : memref<16x32xbf16, #tpu.memory_space<vmem>>, vector<16x32xbf16>,
    } else {
    }
    return
  }
  func.func @transform_0(%arg0: i32, %arg1: i32, %arg2: i32) -> (i32, i32) {
    %c0_i32 = arith.constant 0 : i32
    return %arg0, %arg2 : i32, i32
  }
  func.func @transform_1(%arg0: i32, %arg1: i32, %arg2: i32) -> (i32, i32) {
    %c0_i32 = arith.constant 0 : i32
    return %arg2, %arg1 : i32, i32
  }
  func.func @transform_2(%arg0: i32, %arg1: i32, %arg2: i32) -> (i32, i32) {
    %c0_i32 = arith.constant 0 : i32
    return %arg0, %arg1 : i32, i32
  }
}

module attributes {stable_mosaic.version = 11 : i64} {
  func.func @_linear_kernel(%arg0: i32, %arg1: i32, %arg2: i32, %arg3: memref<16x32xbf16, #tpu.memory_space<vmem>>, %arg4: memref<32x64xbf16, #tpu.memory_space<vmem>>, %arg5: memref<1x64xf32, #tpu.memory_space<vmem>>, %arg6: memref<16x64xf32, #tpu.memory_space<vmem>>, %arg7: memref<16x64xf32, #tpu.memory_space<vmem>>) attributes {dimension_semantics = [#tpu.dimension_semantics<parallel>, #tpu.dimension_semantics<parallel>, #tpu.dimension_semantics<arbitrary>], iteration_bounds = array<i64: 1, 1, 1>, scalar_prefetch = 0 : i64, scratch_operands = 1 : i64, tpu.core_type = #tpu.core_type<tc>, window_params = [{transform_indices = @transform_0, window_bounds = array<i64: 16, 32>}, {transform_indices = @transform_1, window_bounds = array<i64: 32, 64>}, {transform_indices = @transform_2, window_bounds = array<i64: 1, 64>}, {transform_indices = @transform_3, window_bounds = array<i64: 16, 64>}]} {
    %c0_i32 = arith.constant 0 : i32
    %0 = arith.cmpi eq, %arg2, %c0_i32 : i32
    %1 = arith.extui %0 : i1 to i32
    %c0_i32_0 = arith.constant 0 : i32
    %2 = arith.cmpi ne, %1, %c0_i32_0 : i32
    scf.if %2 {
      %cst_10 = arith.constant 0.000000e+00 : f32
      %12 = vector.broadcast %cst_10 : f32 to vector<16x64xf32>
      %c0_11 = arith.constant 0 : index
      %c0_12 = arith.constant 0 : index
      %13 = vector.load %arg7[%c0_11, %c0_12] : memref<16x64xf32, #tpu.memory_space<vmem>>, vector<16x64xf32>
      tpu.vector_store %arg7[%c0_11, %c0_12], %12 {strides = array<i32>} : memref<16x64xf32, #tpu.memory_space<vmem>>, vector<16x64xf32>,
    } else {
    }
    %c0 = arith.constant 0 : index
    %c0_1 = arith.constant 0 : index
    %3 = vector.load %arg7[%c0, %c0_1] : memref<16x64xf32, #tpu.memory_space<vmem>>, vector<16x64xf32>
    %c0_2 = arith.constant 0 : index
    %c0_3 = arith.constant 0 : index
    %4 = vector.load %arg3[%c0_2, %c0_3] : memref<16x32xbf16, #tpu.memory_space<vmem>>, vector<16x32xbf16>
    %c0_4 = arith.constant 0 : index
    %c0_5 = arith.constant 0 : index
    %5 = vector.load %arg4[%c0_4, %c0_5] : memref<32x64xbf16, #tpu.memory_space<vmem>>, vector<32x64xbf16>
    %cst = arith.constant dense<0.000000e+00> : vector<16x64xf32>
    %6 = tpu.matmul %4, %5, %cst {dimension_numbers = #tpu.dot_dimension_numbers<[1], [0], [0], [1], [0, 0, 1, 1], [], []>} : vector<16x32xbf16>, vector<32x64xbf16>, vector<16x64xf32> -> vector<16x64xf32>
    %7 = arith.addf %3, %6 : vector<16x64xf32>
    %c0_6 = arith.constant 0 : index
    %c0_7 = arith.constant 0 : index
    %8 = vector.load %arg7[%c0_6, %c0_7] : memref<16x64xf32, #tpu.memory_space<vmem>>, vector<16x64xf32>
    tpu.vector_store %arg7[%c0_6, %c0_7], %7 {strides = array<i32>} : memref<16x64xf32, #tpu.memory_space<vmem>>, vector<16x64xf32>,
    %c0_i32_8 = arith.constant 0 : i32
    %9 = arith.cmpi eq, %arg2, %c0_i32_8 : i32
    %10 = arith.extui %9 : i1 to i32
    %c0_i32_9 = arith.constant 0 : i32
    %11 = arith.cmpi ne, %10, %c0_i32_9 : i32
    scf.if %11 {
      %c0_10 = arith.constant 0 : index
      %c0_11 = arith.constant 0 : index
      %12 = vector.load %arg7[%c0_10, %c0_11] : memref<16x64xf32, #tpu.memory_space<vmem>>, vector<16x64xf32>
      %c0_12 = arith.constant 0 : index
      %c0_13 = arith.constant 0 : index
      %13 = vector.load %arg5[%c0_12, %c0_13] : memref<1x64xf32, #tpu.memory_space<vmem>>, vector<1x64xf32>
      %14 = vector.broadcast %13 : vector<1x64xf32> to vector<16x64xf32>
      %15 = arith.addf %12, %14 : vector<16x64xf32>
      %c0_14 = arith.constant 0 : index
      %c0_15 = arith.constant 0 : index
      %16 = vector.load %arg6[%c0_14, %c0_15] : memref<16x64xf32, #tpu.memory_space<vmem>>, vector<16x64xf32>
      tpu.vector_store %arg6[%c0_14, %c0_15], %15 {strides = array<i32>} : memref<16x64xf32, #tpu.memory_space<vmem>>, vector<16x64xf32>,
    } else {
    }
    return
  }
  func.func @transform_0(%arg0: i32, %arg1: i32, %arg2: i32) -> (i32, i32) {
    %c0_i32 = arith.constant 0 : i32
    return %arg0, %arg2 : i32, i32
  }
  func.func @transform_1(%arg0: i32, %arg1: i32, %arg2: i32) -> (i32, i32) {
    %c0_i32 = arith.constant 0 : i32
    return %arg2, %arg1 : i32, i32
  }
  func.func @transform_2(%arg0: i32, %arg1: i32, %arg2: i32) -> (i32, i32) {
    %c0_i32 = arith.constant 0 : i32
    %c0_i32_0 = arith.constant 0 : i32
    return %c0_i32, %arg1 : i32, i32
  }
  func.func @transform_3(%arg0: i32, %arg1: i32, %arg2: i32) -> (i32, i32) {
    %c0_i32 = arith.constant 0 : i32
    return %arg0, %arg1 : i32, i32
  }
}

module attributes {stable_mosaic.version = 11 : i64} {
  func.func @_add_ln_kernel(%arg0: i32, %arg1: memref<16x32xbf16, #tpu.memory_space<vmem>>, %arg2: memref<1x32xf32, #tpu.memory_space<vmem>>, %arg3: memref<1x32xf32, #tpu.memory_space<vmem>>, %arg4: memref<16x32xbf16, #tpu.memory_space<vmem>>) attributes {dimension_semantics = [#tpu.dimension_semantics<parallel>], iteration_bounds = array<i64: 1>, scalar_prefetch = 0 : i64, scratch_operands = 0 : i64, tpu.core_type = #tpu.core_type<tc>, window_params = [{transform_indices = @transform_0, window_bounds = array<i64: 16, 32>}, {pipeline_mode = #tpu.pipeline_mode<synchronous>, transform_indices = @transform_1, window_bounds = array<i64: 1, 32>}, {pipeline_mode = #tpu.pipeline_mode<synchronous>, transform_indices = @transform_2, window_bounds = array<i64: 1, 32>}, {transform_indices = @transform_3, window_bounds = array<i64: 16, 32>}]} {
    %c0 = arith.constant 0 : index
    %c0_0 = arith.constant 0 : index
    %0 = vector.load %arg1[%c0, %c0_0] : memref<16x32xbf16, #tpu.memory_space<vmem>>, vector<16x32xbf16>
    %1 = arith.extf %0 : vector<16x32xbf16> to vector<16x32xf32>
    %cst = arith.constant dense<0.000000e+00> : vector<16xf32>
    %2 = vector.multi_reduction <add>, %1, %cst [1] : vector<16x32xf32> to vector<16xf32>
    %3 = vector.shape_cast %2 : vector<16xf32> to vector<16x1xf32>
    %cst_1 = arith.constant 3.200000e+01 : f32
    %4 = vector.broadcast %cst_1 : f32 to vector<16x1xf32>
    %5 = arith.divf %3, %4 : vector<16x1xf32>
    %6 = vector.broadcast %5 : vector<16x1xf32> to vector<16x32xf32>
    %7 = arith.subf %1, %6 : vector<16x32xf32>
    %8 = arith.mulf %7, %7 : vector<16x32xf32>
    %cst_2 = arith.constant dense<0.000000e+00> : vector<16xf32>
    %9 = vector.multi_reduction <add>, %8, %cst_2 [1] : vector<16x32xf32> to vector<16xf32>
    %10 = vector.shape_cast %9 : vector<16xf32> to vector<16x1xf32>
    %cst_3 = arith.constant 3.200000e+01 : f32
    %11 = vector.broadcast %cst_3 : f32 to vector<16x1xf32>
    %12 = arith.divf %10, %11 : vector<16x1xf32>
    %cst_4 = arith.constant 9.99999974E-6 : f32
    %13 = vector.broadcast %cst_4 : f32 to vector<16x1xf32>
    %14 = arith.addf %12, %13 : vector<16x1xf32>
    %15 = math.rsqrt %14 : vector<16x1xf32>
    %16 = vector.broadcast %15 : vector<16x1xf32> to vector<16x32xf32>
    %17 = arith.mulf %7, %16 : vector<16x32xf32>
    %c0_5 = arith.constant 0 : index
    %c0_6 = arith.constant 0 : index
    %18 = vector.load %arg2[%c0_5, %c0_6] : memref<1x32xf32, #tpu.memory_space<vmem>>, vector<1x32xf32>
    %19 = vector.broadcast %18 : vector<1x32xf32> to vector<16x32xf32>
    %20 = arith.mulf %17, %19 : vector<16x32xf32>
    %c0_7 = arith.constant 0 : index
    %c0_8 = arith.constant 0 : index
    %21 = vector.load %arg3[%c0_7, %c0_8] : memref<1x32xf32, #tpu.memory_space<vmem>>, vector<1x32xf32>
    %22 = vector.broadcast %21 : vector<1x32xf32> to vector<16x32xf32>
    %23 = arith.addf %20, %22 : vector<16x32xf32>
    %24 = arith.truncf %23 : vector<16x32xf32> to vector<16x32xbf16>
    %c0_9 = arith.constant 0 : index
    %c0_10 = arith.constant 0 : index
    %25 = vector.load %arg4[%c0_9, %c0_10] : memref<16x32xbf16, #tpu.memory_space<vmem>>, vector<16x32xbf16>
    tpu.vector_store %arg4[%c0_9, %c0_10], %24 {strides = array<i32>} : memref<16x32xbf16, #tpu.memory_space<vmem>>, vector<16x32xbf16>,
    return
  }
  func.func @transform_0(%arg0: i32) -> (i32, i32) {
    %c0_i32 = arith.constant 0 : i32
    %c0_i32_0 = arith.constant 0 : i32
    return %arg0, %c0_i32 : i32, i32
  }
  func.func @transform_1(%arg0: i32) -> (i32, i32) {
    %c0_i32 = arith.constant 0 : i32
    %c0_i32_0 = arith.constant 0 : i32
    %c0_i32_1 = arith.constant 0 : i32
    return %c0_i32, %c0_i32_0 : i32, i32
  }
  func.func @transform_2(%arg0: i32) -> (i32, i32) {
    %c0_i32 = arith.constant 0 : i32
    %c0_i32_0 = arith.constant 0 : i32
    %c0_i32_1 = arith.constant 0 : i32
    return %c0_i32, %c0_i32_0 : i32, i32
  }
  func.func @transform_3(%arg0: i32) -> (i32, i32) {
    %c0_i32 = arith.constant 0 : i32
    %c0_i32_0 = arith.constant 0 : i32
    return %arg0, %c0_i32 : i32, i32
  }
}

</mosaic_0001>

<llo_original>
// kernel: token_former_forward.17
$region0: #{token_former_forward.17}
  #allocation0 [shape = 'u32[]', space=smem, size = 0x4, offset = 0x4, fixed_abs, tag = 'smem constant byte address 0x4 - core index']
  #allocation1 [shape = 'u32[144,128]{1,0:T(1,128)}', space=vmem, size = 0x12000, scoped, tag = 'internal scratch']
  #allocation2 [shape = 'f32[16,64]{1,0:T(8,128)}', space=vmem, size = 0x2000, scoped, tag = 'scratch operand']
  %s0 = inlined_call_operand.vmem [shape: bf16[16,32], index: 0, kind: input, shape index: {}]
  %s1 = inlined_call_operand.vmem [shape: bf16[32,64], index: 1, kind: input, shape index: {}]
  %s2 = inlined_call_operand.vmem [shape: bf16[16,64], index: 2, kind: output, shape index: {}]
  %s3 = sld [smem:[#allocation0]]
  $region26: #{token_former_forward.17} parent=0
    _
  %s5 = ssub.s32 1, %s3
  %s6 = scalar_select 0, %s5, %s3
  // Predicated region
  $region2: #{token_former_forward.17} parent=0 // pred_check
    _
  $region3: #{token_former_forward.17} parent=0 // pred_check_branch
    %8 = sbr.rel (0) target = $region5
  $region4: #{token_former_forward.17} parent=0 // pred_region
    _
  $region5: #{token_former_forward.17} parent=0 // pred_fallthru
    _
  // Predicated region
  $region6: #{token_former_forward.17} parent=0 // pred_check
    _
  $region7: #{token_former_forward.17} parent=0 // pred_check_branch
    %10 = sbr.rel (0) target = $region9
  $region8: #{token_former_forward.17} parent=0 // pred_region
    _
  $region9: #{token_former_forward.17} parent=0 // pred_fallthru
    _
  %p12 = scmp.eq.s32.totalorder 0, 0
  // Predicated region
  $region10: #{token_former_forward.17} parent=0 // pred_check
    %p13 = pneg %p12
  $region11: #{token_former_forward.17} parent=0 // pred_check_branch
    %15 = sbr.rel (%p13) target = $region13
  $region12: #{token_former_forward.17} parent=0 // pred_region
    %vm16 = vcmask 523264
    %17 = vst.msk [vmem:[#allocation2] sm:$0xff] %vm16, 0.0
    %18 = vst.msk [vmem:[#allocation2 + $0x8] sm:$0xff] %vm16, 0.0
  $region13: #{token_former_forward.17} parent=0 // pred_fallthru
    _
  %v19 = vld [vmem:[#allocation2] sm:$0xff]
  %v20 = vld [vmem:[#allocation2 + $0x8] sm:$0xff]
  %v21 = vld [vmem:[%s0] sm:$0xf]
  %v22 = vld [vmem:[%s0 + $0x4] sm:$0xf]
  %v23 = vld [vmem:[%s1] sm:$0xf]
  %v24 = vld [vmem:[%s1 + $0x4] sm:$0xf]
  %v25 = vld [vmem:[%s1 + $0x8] sm:$0xf]
  %v26 = vld [vmem:[%s1 + $0xc] sm:$0xf]
  %v29 = vunpack.c.l.b16 %v21
  %v30 = vunpack.c.l.b16 %v22
  %v31 = vpack.c.b16 %v30, %v29
  %v36 = vunpack.c.l.b16 %v23
  %v37 = vunpack.c.l.b16 %v24
  %v38 = vunpack.c.l.b16 %v25
  %v39 = vunpack.c.l.b16 %v26
  %v40 = vpack.c.b16 %v37, %v36
  %v41 = vpack.c.b16 %v39, %v38
  %vm44 = vcmask 261120
  %v46 = vsel %vm44, %v31, 0
  %48 = vmatprep.subr.bf16.mxu0 0
  %49 = vmatpush1.bf16.msra.mxu0 %v40
  %50 = vmatprep.subr.bf16.mxu0 0
  %51 = vmatpush1.bf16.msra.mxu0 %v41
  %52 = vmatprep.subr.bf16.mxu0 0
  %53 = vmatpush1.bf16.msra.mxu0 0
  %54 = vmatprep.subr.bf16.mxu0 0
  %55 = vmatpush1.bf16.msra.mxu0 0
  %56 = vmatprep.subr.bf16.mxu0 0
  %57 = vmatpush1.bf16.msra.mxu0 0
  %58 = vmatprep.subr.bf16.mxu0 0
  %59 = vmatpush1.bf16.msra.mxu0 0
  %60 = vmatprep.subr.bf16.mxu0 0
  %61 = vmatpush1.bf16.msra.mxu0 0
  %62 = vmatprep.subr.bf16.mxu0 0
  %63 = vmatpush1.bf16.msra.mxu0 0
  %64 = vmatprep.subr.bf16.mxu0 0
  %65 = vmatpush1.bf16.msra.mxu0 0
  %66 = vmatprep.subr.bf16.mxu0 0
  %67 = vmatpush1.bf16.msra.mxu0 0
  %68 = vmatprep.subr.bf16.mxu0 0
  %69 = vmatpush1.bf16.msra.mxu0 0
  %70 = vmatprep.subr.bf16.mxu0 0
  %71 = vmatpush1.bf16.msra.mxu0 0
  %72 = vmatprep.subr.bf16.mxu0 0
  %73 = vmatpush1.bf16.msra.mxu0 0
  %74 = vmatprep.subr.bf16.mxu0 0
  %75 = vmatpush1.bf16.msra.mxu0 0
  %76 = vmatprep.subr.bf16.mxu0 0
  %77 = vmatpush1.bf16.msra.mxu0 0
  %78 = vmatprep.subr.bf16.mxu0 0
  %79 = vmatpush1.bf16.msra.mxu0 0
  %80 = vmatprep.mubr.bf16.mxu0 0
  %81 = vmatmul.mubr.bf16.gmra.mrb[0].mxu0 %v46
  %v82 = vpop.f32.mrb[0].mxu0
  %v83 = vadd.f32 0.0, %v82
  %v84 = vpop.f32.mrb[0].mxu0
  %v85 = vpop.f32.mrb[0].mxu0
  %v86 = vadd.f32 0.0, %v85
  %v87 = vpop.f32.mrb[0].mxu0
  %88 = vdwg.mxu0
  %v89 = vadd.f32 %v19, %v83
  %v90 = vadd.f32 %v20, %v86
  %vm91 = vcmask 523264
  %92 = vst.msk [vmem:[#allocation2] sm:$0xff] %vm91, %v89
  %93 = vst.msk [vmem:[#allocation2 + $0x8] sm:$0xff] %vm91, %v90
  // Predicated region
  $region14: #{token_former_forward.17} parent=0 // pred_check
    %p94 = pneg %p12
  $region15: #{token_former_forward.17} parent=0 // pred_check_branch
    %96 = sbr.rel (%p94) target = $region17
  $region16: #{token_former_forward.17} parent=0 // pred_region
    %v97 = vld [vmem:[#allocation2] sm:$0xff]
    %v98 = vld [vmem:[#allocation2 + $0x8] sm:$0xff]
    %v99 = vpack.c.bf16 %v98, %v97
    %v101 = vunpack.c.l.b16 %v99
    %v102 = vunpack.c.h.b16 %v99
    %v103 = vpack.c.b16 %v101, %v101
    %v104 = vpack.c.b16 %v102, %v102
    %vm107 = vcmask 519168
    %108 = vst.msk [vmem:[%s2] sm:$0xf] %vm107, %v103
    %109 = vst.msk [vmem:[%s2 + $0x4] sm:$0xf] %vm107, %v104
  $region17: #{token_former_forward.17} parent=0 // pred_fallthru
    _
  // Predicated region
  $region18: #{token_former_forward.17} parent=0 // pred_check
    _
  $region19: #{token_former_forward.17} parent=0 // pred_check_branch
    %111 = sbr.rel (0) target = $region21
  $region20: #{token_former_forward.17} parent=0 // pred_region
    _
  $region21: #{token_former_forward.17} parent=0 // pred_fallthru
    _
  // Predicated region
  $region22: #{token_former_forward.17} parent=0 // pred_check
    _
  $region23: #{token_former_forward.17} parent=0 // pred_check_branch
    %113 = sbr.rel (0) target = $region25
  $region24: #{token_former_forward.17} parent=0 // pred_region
    _
  $region25: #{token_former_forward.17} parent=0 // pred_fallthru
    _

// kernel: token_former_forward.16
$region0: #{token_former_forward.16}
  #allocation0 [shape = 'u32[]', space=smem, size = 0x4, offset = 0x4, fixed_abs, tag = 'smem constant byte address 0x4 - core index']
  #allocation1 [shape = 'u32[144,128]{1,0:T(1,128)}', space=vmem, size = 0x12000, scoped, tag = 'internal scratch']
  %s0 = inlined_call_operand.vmem [shape: bf16[16,32], index: 0, kind: input, shape index: {}]
  %s1 = inlined_call_operand.vmem [shape: bf16[16,32], index: 1, kind: input, shape index: {}]
  %s2 = inlined_call_operand.vmem [shape: bf16[16,32], index: 2, kind: output, shape index: {}]
  %s3 = sld [smem:[#allocation0]]
  $region18: #{token_former_forward.16} parent=0
    _
  %s5 = ssub.s32 1, %s3
  %s6 = scalar_select 0, %s5, %s3
  // Predicated region
  $region2: #{token_former_forward.16} parent=0 // pred_check
    _
  $region3: #{token_former_forward.16} parent=0 // pred_check_branch
    %8 = sbr.rel (0) target = $region5
  $region4: #{token_former_forward.16} parent=0 // pred_region
    _
  $region5: #{token_former_forward.16} parent=0 // pred_fallthru
    _
  // Predicated region
  $region6: #{token_former_forward.16} parent=0 // pred_check
    _
  $region7: #{token_former_forward.16} parent=0 // pred_check_branch
    %10 = sbr.rel (0) target = $region9
  $region8: #{token_former_forward.16} parent=0 // pred_region
    _
  $region9: #{token_former_forward.16} parent=0 // pred_fallthru
    _
  %v11 = vld [vmem:[%s0] sm:$0xf]
  %v12 = vld [vmem:[%s0 + $0x4] sm:$0xf]
  %v13 = vunpack.c.l.bf16 %v11
  %v14 = vunpack.c.l.bf16 %v12
  %v15 = vld [vmem:[%s1] sm:$0xf]
  %v16 = vld [vmem:[%s1 + $0x4] sm:$0xf]
  %v17 = vunpack.c.l.bf16 %v15
  %v18 = vunpack.c.l.bf16 %v16
  %v19 = vadd.f32 %v13, %v17
  %v20 = vadd.f32 %v14, %v18
  %vm21 = vcmask 261120
  %v22 = vsel %vm21, %v19, 0.0
  %23 = vadd.xlane.f32.xlu0 %v22
  %v24 = vpop.xlane.xlu0 %23
  %v25 = vsel %vm21, %v20, 0.0
  %26 = vadd.xlane.f32.xlu0 %v25
  %v27 = vpop.xlane.xlu0 %26
  %v28 = vrcp.pop 32.0
  %v29 = vmul.f32 %v24, %v28
  %v30 = vmul.f32 %v27, %v28
  %v31 = vsub.f32 %v19, %v29
  %v32 = vsub.f32 %v20, %v30
  %v33 = vmul.f32 %v31, %v31
  %v34 = vmul.f32 %v32, %v32
  %v35 = vsel %vm21, %v33, 0.0
  %36 = vadd.xlane.f32.xlu0 %v35
  %v37 = vpop.xlane.xlu0 %36
  %v38 = vsel %vm21, %v34, 0.0
  %39 = vadd.xlane.f32.xlu0 %v38
  %v40 = vpop.xlane.xlu0 %39
  %v41 = vmul.f32 %v37, %v28
  %v42 = vmul.f32 %v40, %v28
  %v43 = vadd.f32 %v41, 1e-05
  %v44 = vadd.f32 %v42, 1e-05
  %v45 = vrsqrt.pop %v43
  %v46 = vrsqrt.pop %v44
  %v47 = vmul.f32 %v31, %v45
  %v48 = vmul.f32 %v32, %v46
  %v49 = vpack.c.bf16 %v48, %v47
  %v51 = vunpack.c.l.b16 %v49
  %v52 = vunpack.c.h.b16 %v49
  %v53 = vpack.c.b16 %v51, %v51
  %v54 = vpack.c.b16 %v52, %v52
  %vm57 = vcmask 257024
  %58 = vst.msk [vmem:[%s2] sm:$0xf] %vm57, %v53
  %59 = vst.msk [vmem:[%s2 + $0x4] sm:$0xf] %vm57, %v54
  // Predicated region
  $region10: #{token_former_forward.16} parent=0 // pred_check
    _
  $region11: #{token_former_forward.16} parent=0 // pred_check_branch
    %61 = sbr.rel (0) target = $region13
  $region12: #{token_former_forward.16} parent=0 // pred_region
    _
  $region13: #{token_former_forward.16} parent=0 // pred_fallthru
    _
  // Predicated region
  $region14: #{token_former_forward.16} parent=0 // pred_check
    _
  $region15: #{token_former_forward.16} parent=0 // pred_check_branch
    %63 = sbr.rel (0) target = $region17
  $region16: #{token_former_forward.16} parent=0 // pred_region
    _
  $region17: #{token_former_forward.16} parent=0 // pred_fallthru
    _

// kernel: token_former_forward.14
$region0: #{token_former_forward.14}
  #allocation0 [shape = 'u32[]', space=smem, size = 0x4, offset = 0x4, fixed_abs, tag = 'smem constant byte address 0x4 - core index']
  #allocation1 [shape = 'u32[144,128]{1,0:T(1,128)}', space=vmem, size = 0x12000, scoped, tag = 'internal scratch']
  %s0 = inlined_call_operand.vmem [shape: bf16[2,8,32], index: 0, kind: input, shape index: {}]
  %s1 = inlined_call_operand.vmem [shape: bf16[32,32], index: 1, kind: input, shape index: {}]
  %s2 = inlined_call_operand.vmem [shape: bf16[32,32], index: 2, kind: input, shape index: {}]
  %s3 = inlined_call_operand.vmem [shape: bf16[32,32], index: 3, kind: input, shape index: {}]
  %s4 = inlined_call_operand.vmem [shape: bf16[32,32], index: 4, kind: input, shape index: {}]
  %s5 = inlined_call_operand.vmem [shape: bf16[2,32,32], index: 5, kind: input, shape index: {}]
  %s6 = inlined_call_operand.vmem [shape: bf16[2,8,32], index: 6, kind: output, shape index: {}]
  %s7 = sld [smem:[#allocation0]]
  $region57: #{token_former_forward.14} parent=0
    _
  %s9 = ssub.s32 1, %s7
  %s10 = scalar_select 0, %s9, %s7
  loop: start=0, step=1, limit=4
  $region2: #{token_former_forward.14} parent=0 // loop_pre_header
    _
  $region3: #{token_former_forward.14} parent=0 // loop_header
    %s12 = sphi 0, %s16
    %p13 = scmp.ge.s32.totalorder %s12, 4
    %s22 = sphi 0, %s24
    %s25 = sphi 0, %s22
    %s26 = sphi 0, %s25
    %s42 = sphi 0, %s26
    %s46 = sphi 0, %s46
    %s48 = sphi 0, %s46
    %s49 = sphi 0, %s48
    %s63 = sphi 0, %s49
    %s67 = sphi 0, %s67
    %s69 = sphi 0, %s67
    %s70 = sphi 0, %s69
    %s84 = sphi 0, %s70
    %s88 = sphi 0, %s88
    %s90 = sphi 0, %s88
    %s91 = sphi 0, %s90
    %s105 = sphi 0, %s91
    %s109 = sphi 0, %s109
    %s111 = sphi 0, %s109
    %s112 = sphi 0, %s111
    %s126 = sphi 0, %s112
    %s132 = sphi 0, %s134
    %s135 = sphi 0, %s132
    %s136 = sphi 0, %s135
    %s152 = sphi 0, %s136
    %s158 = sphi 0, %s160
    %s161 = sphi 0, %s158
    %s162 = sphi 0, %s161
    %s178 = sphi 0, %s162
  $region4: #{token_former_forward.14} parent=0 // loop_header_branch
    %15 = sbr.rel (%p13) target = $region8
  $region5: #{token_former_forward.14} parent=0 // loop_body
    %s17 = ssub.s32 %s12, 1
    %s18 = ssub.s32 %s12, 2
    %s19 = sadd.s32 %s12, 1
    %s20 = ssub.s32 %s12, %s19
    %p21 = scmp.eq.s32.totalorder %s20, 0
    %s23 = sadd.s32 %s22, 1
    %s24 = scalar_select %p21, %s22, %s23
    %p27 = pneg %p21
    %p28 = scmp.eq.s32.totalorder %s12, 1
    %p29 = por %p27, %p28
    %p30 = scmp.ne.s32.totalorder %s22, %s25
    %p31 = scmp.eq.s32.totalorder %s12, 0
    %p32 = por %p30, %p31
    %p33 = scmp.ne.s32.totalorder %s22, %s25
    %p34 = scmp.eq.s32.totalorder %s17, 1
    %p35 = por %p33, %p34
    %p36 = scmp.ne.s32.totalorder %s25, %s26
    %p37 = scmp.eq.s32.totalorder %s17, 0
    %p38 = por %p36, %p37
    %p39 = scmp.ne.s32.totalorder %s25, %s26
    %p40 = scmp.eq.s32.totalorder %s18, 1
    %p41 = por %p39, %p40
    %p43 = scmp.ne.s32.totalorder %s26, %s42
    %p44 = scmp.eq.s32.totalorder %s18, 0
    %p45 = por %p43, %p44
    %s47 = sadd.s32 %s46, 1
    %p50 = scmp.eq.s32.totalorder %s12, 1
    %p51 = scmp.ne.s32.totalorder %s46, %s48
    %p52 = scmp.eq.s32.totalorder %s12, 0
    %p53 = por %p51, %p52
    %p54 = scmp.ne.s32.totalorder %s46, %s48
    %p55 = scmp.eq.s32.totalorder %s17, 1
    %p56 = por %p54, %p55
    %p57 = scmp.ne.s32.totalorder %s48, %s49
    %p58 = scmp.eq.s32.totalorder %s17, 0
    %p59 = por %p57, %p58
    %p60 = scmp.ne.s32.totalorder %s48, %s49
    %p61 = scmp.eq.s32.totalorder %s18, 1
    %p62 = por %p60, %p61
    %p64 = scmp.ne.s32.totalorder %s49, %s63
    %p65 = scmp.eq.s32.totalorder %s18, 0
    %p66 = por %p64, %p65
    %s68 = sadd.s32 %s67, 1
    %p71 = scmp.eq.s32.totalorder %s12, 1
    %p72 = scmp.ne.s32.totalorder %s67, %s69
    %p73 = scmp.eq.s32.totalorder %s12, 0
    %p74 = por %p72, %p73
    %p75 = scmp.ne.s32.totalorder %s67, %s69
    %p76 = scmp.eq.s32.totalorder %s17, 1
    %p77 = por %p75, %p76
    %p78 = scmp.ne.s32.totalorder %s69, %s70
    %p79 = scmp.eq.s32.totalorder %s17, 0
    %p80 = por %p78, %p79
    %p81 = scmp.ne.s32.totalorder %s69, %s70
    %p82 = scmp.eq.s32.totalorder %s18, 1
    %p83 = por %p81, %p82
    %p85 = scmp.ne.s32.totalorder %s70, %s84
    %p86 = scmp.eq.s32.totalorder %s18, 0
    %p87 = por %p85, %p86
    %s89 = sadd.s32 %s88, 1
    %p92 = scmp.eq.s32.totalorder %s12, 1
    %p93 = scmp.ne.s32.totalorder %s88, %s90
    %p94 = scmp.eq.s32.totalorder %s12, 0
    %p95 = por %p93, %p94
    %p96 = scmp.ne.s32.totalorder %s88, %s90
    %p97 = scmp.eq.s32.totalorder %s17, 1
    %p98 = por %p96, %p97
    %p99 = scmp.ne.s32.totalorder %s90, %s91
    %p100 = scmp.eq.s32.totalorder %s17, 0
    %p101 = por %p99, %p100
    %p102 = scmp.ne.s32.totalorder %s90, %s91
    %p103 = scmp.eq.s32.totalorder %s18, 1
    %p104 = por %p102, %p103
    %p106 = scmp.ne.s32.totalorder %s91, %s105
    %p107 = scmp.eq.s32.totalorder %s18, 0
    %p108 = por %p106, %p107
    %s110 = sadd.s32 %s109, 1
    %p113 = scmp.eq.s32.totalorder %s12, 1
    %p114 = scmp.ne.s32.totalorder %s109, %s111
    %p115 = scmp.eq.s32.totalorder %s12, 0
    %p116 = por %p114, %p115
    %p117 = scmp.ne.s32.totalorder %s109, %s111
    %p118 = scmp.eq.s32.totalorder %s17, 1
    %p119 = por %p117, %p118
    %p120 = scmp.ne.s32.totalorder %s111, %s112
    %p121 = scmp.eq.s32.totalorder %s17, 0
    %p122 = por %p120, %p121
    %p123 = scmp.ne.s32.totalorder %s111, %s112
    %p124 = scmp.eq.s32.totalorder %s18, 1
    %p125 = por %p123, %p124
    %p127 = scmp.ne.s32.totalorder %s112, %s126
    %p128 = scmp.eq.s32.totalorder %s18, 0
    %p129 = por %p127, %p128
    %s130 = ssub.s32 %s12, %s19
    %p131 = scmp.eq.s32.totalorder %s130, 0
    %s133 = sadd.s32 %s132, 1
    %s134 = scalar_select %p131, %s132, %s133
    %p137 = pneg %p131
    %p138 = scmp.eq.s32.totalorder %s12, 1
    %p139 = por %p137, %p138
    %p140 = scmp.ne.s32.totalorder %s132, %s135
    %p141 = scmp.eq.s32.totalorder %s12, 0
    %p142 = por %p140, %p141
    %p143 = scmp.ne.s32.totalorder %s132, %s135
    %p144 = scmp.eq.s32.totalorder %s17, 1
    %p145 = por %p143, %p144
    %p146 = scmp.ne.s32.totalorder %s135, %s136
    %p147 = scmp.eq.s32.totalorder %s17, 0
    %p148 = por %p146, %p147
    %p149 = scmp.ne.s32.totalorder %s135, %s136
    %p150 = scmp.eq.s32.totalorder %s18, 1
    %p151 = por %p149, %p150
    %p153 = scmp.ne.s32.totalorder %s136, %s152
    %p154 = scmp.eq.s32.totalorder %s18, 0
    %p155 = por %p153, %p154
    %s156 = ssub.s32 %s12, %s19
    %p157 = scmp.eq.s32.totalorder %s156, 0
    %s159 = sadd.s32 %s158, 1
    %s160 = scalar_select %p157, %s158, %s159
    %p163 = pneg %p157
    %p164 = scmp.eq.s32.totalorder %s12, 1
    %p165 = por %p163, %p164
    %p166 = scmp.ne.s32.totalorder %s158, %s161
    %p167 = scmp.eq.s32.totalorder %s12, 0
    %p168 = por %p166, %p167
    %p169 = scmp.ne.s32.totalorder %s158, %s161
    %p170 = scmp.eq.s32.totalorder %s17, 1
    %p171 = por %p169, %p170
    %p172 = scmp.ne.s32.totalorder %s161, %s162
    %p173 = scmp.eq.s32.totalorder %s17, 0
    %p174 = por %p172, %p173
    %p175 = scmp.ne.s32.totalorder %s161, %s162
    %p176 = scmp.eq.s32.totalorder %s18, 1
    %p177 = por %p175, %p176
    %p179 = scmp.ne.s32.totalorder %s162, %s178
    %p180 = scmp.eq.s32.totalorder %s18, 0
    %p181 = por %p179, %p180
    %p182 = scmp.le.s32.totalorder 1, %s12
    %p183 = scmp.lt.s32.totalorder %s12, 3
    %p184 = pnand %p182, %p183
    %p185 = pneg %p184
    // Predicated region
    $region9: #{token_former_forward.14} parent=5 // pred_check
      _
    $region10: #{token_former_forward.14} parent=5 // pred_check_branch
      %187 = sbr.rel (%p184) target = $region12
    $region11: #{token_former_forward.14} parent=5 // pred_region
      %s188 = ssub.s32 %s12, 1
      // Predicated region
      $region13: #{token_former_forward.14} parent=11 // pred_check
        %p189 = pneg %p59
      $region14: #{token_former_forward.14} parent=11 // pred_check_branch
        %191 = sbr.rel (%p189) target = $region16
      $region15: #{token_former_forward.14} parent=11 // pred_region
        _
      $region16: #{token_former_forward.14} parent=11 // pred_fallthru
        _
      // Predicated region
      $region17: #{token_former_forward.14} parent=11 // pred_check
        %p192 = pneg %p80
      $region18: #{token_former_forward.14} parent=11 // pred_check_branch
        %194 = sbr.rel (%p192) target = $region20
      $region19: #{token_former_forward.14} parent=11 // pred_region
        _
      $region20: #{token_former_forward.14} parent=11 // pred_fallthru
        _
      // Predicated region
      $region21: #{token_former_forward.14} parent=11 // pred_check
        %p195 = pneg %p101
      $region22: #{token_former_forward.14} parent=11 // pred_check_branch
        %197 = sbr.rel (%p195) target = $region24
      $region23: #{token_former_forward.14} parent=11 // pred_region
        _
      $region24: #{token_former_forward.14} parent=11 // pred_fallthru
        _
      // Predicated region
      $region25: #{token_former_forward.14} parent=11 // pred_check
        %p198 = pneg %p122
      $region26: #{token_former_forward.14} parent=11 // pred_check_branch
        %200 = sbr.rel (%p198) target = $region28
      $region27: #{token_former_forward.14} parent=11 // pred_region
        _
      $region28: #{token_former_forward.14} parent=11 // pred_fallthru
        _
    $region12: #{token_former_forward.14} parent=5 // pred_fallthru
      _
    %p201 = scmp.lt.s32.totalorder %s12, 2
    // Predicated region
    $region29: #{token_former_forward.14} parent=5 // pred_check
      %p202 = pneg %p201
    $region30: #{token_former_forward.14} parent=5 // pred_check_branch
      %204 = sbr.rel (%p202) target = $region32
    $region31: #{token_former_forward.14} parent=5 // pred_region
      // Predicated region
      $region33: #{token_former_forward.14} parent=31 // pred_check
        %p205 = pneg %p32
      $region34: #{token_former_forward.14} parent=31 // pred_check_branch
        %207 = sbr.rel (%p205) target = $region36
      $region35: #{token_former_forward.14} parent=31 // pred_region
        %p208 = scmp.lt.s32.totalorder %s12, 1
        %s209 = scalar_select %p208, %s12, 1
        %s210 = smul.addr %s209, 4
        %s211 = scalar_lea.vmem %s0, %s210
      $region36: #{token_former_forward.14} parent=31 // pred_fallthru
        _
      // Predicated region
      $region37: #{token_former_forward.14} parent=31 // pred_check
        %p212 = pneg %p142
      $region38: #{token_former_forward.14} parent=31 // pred_check_branch
        %214 = sbr.rel (%p212) target = $region40
      $region39: #{token_former_forward.14} parent=31 // pred_region
        %p215 = scmp.lt.s32.totalorder %s12, 1
        %s216 = scalar_select %p215, %s12, 1
        %s217 = smul.addr %s216, 4
        %s218 = smul.addr %s217, 4
        %s219 = scalar_lea.vmem %s5, %s218
      $region40: #{token_former_forward.14} parent=31 // pred_fallthru
        _
    $region32: #{token_former_forward.14} parent=5 // pred_fallthru
      _
    %p220 = scmp.le.s32.totalorder 1, %s12
    %p221 = scmp.lt.s32.totalorder %s12, 3
    %p222 = pnand %p220, %p221
    %p223 = pneg %p222
    // Predicated region
    $region41: #{token_former_forward.14} parent=5 // pred_check
      _
    $region42: #{token_former_forward.14} parent=5 // pred_check_branch
      %225 = sbr.rel (%p222) target = $region44
    $region43: #{token_former_forward.14} parent=5 // pred_region
      %s226 = ssub.s32 %s12, 1
      %p227 = scmp.lt.s32.totalorder %s17, 1
      %s228 = scalar_select %p227, %s17, 1
      %s229 = smul.addr %s228, 4
      %s230 = scalar_lea.vmem %s0, %s229
      %p231 = pneg %p38
      %p232 = pneg %p35
      %p233 = pneg %p59
      %p234 = pneg %p56
      %p235 = pneg %p80
      %p236 = pneg %p77
      %p237 = pneg %p101
      %p238 = pneg %p98
      %p239 = pneg %p122
      %p240 = pneg %p119
      %p241 = scmp.lt.s32.totalorder %s17, 1
      %s242 = scalar_select %p241, %s17, 1
      %s243 = smul.addr %s242, 4
      %s244 = smul.addr %s243, 4
      %s245 = scalar_lea.vmem %s5, %s244
      %p246 = pneg %p148
      %p247 = pneg %p145
      %p248 = pneg %p174
      %p249 = pneg %p171
      %p250 = scmp.lt.s32.totalorder %s17, 1
      %s251 = scalar_select %p250, %s17, 1
      %s252 = smul.addr %s251, 4
      %s253 = scalar_lea.vmem %s6, %s252
      %p254 = scmp.lt.s32.totalorder %s17, 1
      %s255 = scalar_select %p254, %s17, 1
      %s256 = smul.addr %s255, 4
      %s257 = scalar_lea.vmem %s0, %s256
      %p258 = scmp.lt.s32.totalorder %s17, 1
      %s259 = scalar_select %p258, %s17, 1
      %s260 = smul.addr %s259, 4
      %s261 = smul.addr %s260, 4
      %s262 = scalar_lea.vmem %s5, %s261
      %p263 = scmp.lt.s32.totalorder %s17, 1
      %s264 = scalar_select %p263, %s17, 1
      %s265 = smul.addr %s264, 4
      %s266 = scalar_lea.vmem %s6, %s265
      %v268 = vld [vmem:[%s257] sm:$0xf]
      %v269 = vld [vmem:[%s1] sm:$0xf]
      %v270 = vld [vmem:[%s1 + $0x4] sm:$0xf]
      %v271 = vld [vmem:[%s1 + $0x8] sm:$0xf]
      %v272 = vld [vmem:[%s1 + $0xc] sm:$0xf]
      %v277 = vunpack.c.l.b16 %v269
      %v278 = vunpack.c.l.b16 %v270
      %v279 = vunpack.c.l.b16 %v271
      %v280 = vunpack.c.l.b16 %v272
      %v281 = vpack.c.b16 %v278, %v277
      %v282 = vpack.c.b16 %v280, %v279
      %vm285 = vcmask 261120
      %v287 = vsel %vm285, %v268, 0
      %289 = vmatprep.subr.bf16.mxu0 0
      %290 = vmatpush1.bf16.msra.mxu0 %v281
      %291 = vmatprep.subr.bf16.mxu0 0
      %292 = vmatpush1.bf16.msra.mxu0 %v282
      %293 = vmatprep.subr.bf16.mxu0 0
      %294 = vmatpush1.bf16.msra.mxu0 0
      %295 = vmatprep.subr.bf16.mxu0 0
      %296 = vmatpush1.bf16.msra.mxu0 0
      %297 = vmatprep.subr.bf16.mxu0 0
      %298 = vmatpush1.bf16.msra.mxu0 0
      %299 = vmatprep.subr.bf16.mxu0 0
      %300 = vmatpush1.bf16.msra.mxu0 0
      %301 = vmatprep.subr.bf16.mxu0 0
      %302 = vmatpush1.bf16.msra.mxu0 0
      %303 = vmatprep.subr.bf16.mxu0 0
      %304 = vmatpush1.bf16.msra.mxu0 0
      %305 = vmatprep.subr.bf16.mxu0 0
      %306 = vmatpush1.bf16.msra.mxu0 0
      %307 = vmatprep.subr.bf16.mxu0 0
      %308 = vmatpush1.bf16.msra.mxu0 0
      %309 = vmatprep.subr.bf16.mxu0 0
      %310 = vmatpush1.bf16.msra.mxu0 0
      %311 = vmatprep.subr.bf16.mxu0 0
      %312 = vmatpush1.bf16.msra.mxu0 0
      %313 = vmatprep.subr.bf16.mxu0 0
      %314 = vmatpush1.bf16.msra.mxu0 0
      %315 = vmatprep.subr.bf16.mxu0 0
      %316 = vmatpush1.bf16.msra.mxu0 0
      %317 = vmatprep.subr.bf16.mxu0 0
      %318 = vmatpush1.bf16.msra.mxu0 0
      %319 = vmatprep.subr.bf16.mxu0 0
      %320 = vmatpush1.bf16.msra.mxu0 0
      %321 = vmatprep.mubr.bf16.mxu0 0
      %322 = vmatmul.mubr.bf16.gmra.mrb[0].mxu0 %v287
      %v323 = vpop.f32.mrb[0].mxu0
      %v324 = vadd.f32 0.0, %v323
      %v325 = vpop.f32.mrb[0].mxu0
      %v326 = vpop.f32.mrb[0].mxu0
      %v327 = vpop.f32.mrb[0].mxu0
      %328 = vdwg.mxu0
      %v329 = vpack.c.bf16 %v324, %v324
      %v330 = vld [vmem:[%s2] sm:$0xf]
      %v331 = vld [vmem:[%s2 + $0x4] sm:$0xf]
      %v332 = vld [vmem:[%s2 + $0x8] sm:$0xf]
      %v333 = vld [vmem:[%s2 + $0xc] sm:$0xf]
      %v338 = vunpack.c.l.b16 %v330
      %v339 = vunpack.c.l.b16 %v331
      %v340 = vunpack.c.l.b16 %v332
      %v341 = vunpack.c.l.b16 %v333
      %v342 = vpack.c.b16 %v339, %v338
      %v343 = vpack.c.b16 %v341, %v340
      %346 = vmatprep.subr.bf16.mxu0 0
      %347 = vmatpush1.bf16.msra.mxu0 %v342
      %348 = vmatprep.subr.bf16.mxu0 0
      %349 = vmatpush1.bf16.msra.mxu0 %v343
      %350 = vmatprep.subr.bf16.mxu0 0
      %351 = vmatpush1.bf16.msra.mxu0 0
      %352 = vmatprep.subr.bf16.mxu0 0
      %353 = vmatpush1.bf16.msra.mxu0 0
      %354 = vmatprep.subr.bf16.mxu0 0
      %355 = vmatpush1.bf16.msra.mxu0 0
      %356 = vmatprep.subr.bf16.mxu0 0
      %357 = vmatpush1.bf16.msra.mxu0 0
      %358 = vmatprep.subr.bf16.mxu0 0
      %359 = vmatpush1.bf16.msra.mxu0 0
      %360 = vmatprep.subr.bf16.mxu0 0
      %361 = vmatpush1.bf16.msra.mxu0 0
      %362 = vmatprep.subr.bf16.mxu0 0
      %363 = vmatpush1.bf16.msra.mxu0 0
      %364 = vmatprep.subr.bf16.mxu0 0
      %365 = vmatpush1.bf16.msra.mxu0 0
      %366 = vmatprep.subr.bf16.mxu0 0
      %367 = vmatpush1.bf16.msra.mxu0 0
      %368 = vmatprep.subr.bf16.mxu0 0
      %369 = vmatpush1.bf16.msra.mxu0 0
      %370 = vmatprep.subr.bf16.mxu0 0
      %371 = vmatpush1.bf16.msra.mxu0 0
      %372 = vmatprep.subr.bf16.mxu0 0
      %373 = vmatpush1.bf16.msra.mxu0 0
      %374 = vmatprep.subr.bf16.mxu0 0
      %375 = vmatpush1.bf16.msra.mxu0 0
      %376 = vmatprep.subr.bf16.mxu0 0
      %377 = vmatpush1.bf16.msra.mxu0 0
      %378 = vmatprep.mubr.bf16.mxu0 0
      %379 = vmatmul.mubr.bf16.gmra.mrb[0].mxu0 %v287
      %v380 = vpop.f32.mrb[0].mxu0
      %v381 = vadd.f32 0.0, %v380
      %v382 = vpop.f32.mrb[0].mxu0
      %v383 = vpop.f32.mrb[0].mxu0
      %v384 = vpop.f32.mrb[0].mxu0
      %385 = vdwg.mxu0
      %v386 = vpack.c.bf16 %v381, %v381
      %v387 = vld [vmem:[%s3] sm:$0xf]
      %v388 = vld [vmem:[%s3 + $0x4] sm:$0xf]
      %v389 = vld [vmem:[%s3 + $0x8] sm:$0xf]
      %v390 = vld [vmem:[%s3 + $0xc] sm:$0xf]
      %v395 = vunpack.c.l.b16 %v387
      %v396 = vunpack.c.l.b16 %v388
      %v397 = vunpack.c.l.b16 %v389
      %v398 = vunpack.c.l.b16 %v390
      %v399 = vpack.c.b16 %v396, %v395
      %v400 = vpack.c.b16 %v398, %v397
      %403 = vmatprep.subr.bf16.mxu0 0
      %404 = vmatpush1.bf16.msra.mxu0 %v399
      %405 = vmatprep.subr.bf16.mxu0 0
      %406 = vmatpush1.bf16.msra.mxu0 %v400
      %407 = vmatprep.subr.bf16.mxu0 0
      %408 = vmatpush1.bf16.msra.mxu0 0
      %409 = vmatprep.subr.bf16.mxu0 0
      %410 = vmatpush1.bf16.msra.mxu0 0
      %411 = vmatprep.subr.bf16.mxu0 0
      %412 = vmatpush1.bf16.msra.mxu0 0
      %413 = vmatprep.subr.bf16.mxu0 0
      %414 = vmatpush1.bf16.msra.mxu0 0
      %415 = vmatprep.subr.bf16.mxu0 0
      %416 = vmatpush1.bf16.msra.mxu0 0
      %417 = vmatprep.subr.bf16.mxu0 0
      %418 = vmatpush1.bf16.msra.mxu0 0
      %419 = vmatprep.subr.bf16.mxu0 0
      %420 = vmatpush1.bf16.msra.mxu0 0
      %421 = vmatprep.subr.bf16.mxu0 0
      %422 = vmatpush1.bf16.msra.mxu0 0
      %423 = vmatprep.subr.bf16.mxu0 0
      %424 = vmatpush1.bf16.msra.mxu0 0
      %425 = vmatprep.subr.bf16.mxu0 0
      %426 = vmatpush1.bf16.msra.mxu0 0
      %427 = vmatprep.subr.bf16.mxu0 0
      %428 = vmatpush1.bf16.msra.mxu0 0
      %429 = vmatprep.subr.bf16.mxu0 0
      %430 = vmatpush1.bf16.msra.mxu0 0
      %431 = vmatprep.subr.bf16.mxu0 0
      %432 = vmatpush1.bf16.msra.mxu0 0
      %433 = vmatprep.subr.bf16.mxu0 0
      %434 = vmatpush1.bf16.msra.mxu0 0
      %435 = vmatprep.mubr.bf16.mxu0 0
      %436 = vmatmul.mubr.bf16.gmra.mrb[0].mxu0 %v287
      %v437 = vpop.f32.mrb[0].mxu0
      %v438 = vadd.f32 0.0, %v437
      %v439 = vpop.f32.mrb[0].mxu0
      %v440 = vpop.f32.mrb[0].mxu0
      %v441 = vpop.f32.mrb[0].mxu0
      %442 = vdwg.mxu0
      %v443 = vpack.c.bf16 %v438, %v438
      %v445 = vsel %vm285, %v329, 0
      %v448 = vsel %vm285, %v386, 0
      %450 = vmatprep.subr.bf16.mxu0 0
      %451 = vmatpush1.bf16.xpose.msra.mxu0 %v448
      %452 = vmatprep.subr.bf16.mxu0 0
      %453 = vmatpush1.bf16.xpose.msra.mxu0 0
      %454 = vmatprep.subr.bf16.mxu0 0
      %455 = vmatpush1.bf16.xpose.msra.mxu0 0
      %456 = vmatprep.subr.bf16.mxu0 0
      %457 = vmatpush1.bf16.xpose.msra.mxu0 0
      %458 = vmatprep.subr.bf16.mxu0 0
      %459 = vmatpush1.bf16.xpose.msra.mxu0 0
      %460 = vmatprep.subr.bf16.mxu0 0
      %461 = vmatpush1.bf16.xpose.msra.mxu0 0
      %462 = vmatprep.subr.bf16.mxu0 0
      %463 = vmatpush1.bf16.xpose.msra.mxu0 0
      %464 = vmatprep.subr.bf16.mxu0 0
      %465 = vmatpush1.bf16.xpose.msra.mxu0 0
      %466 = vmatprep.subr.bf16.mxu0 0
      %467 = vmatpush1.bf16.xpose.msra.mxu0 0
      %468 = vmatprep.subr.bf16.mxu0 0
      %469 = vmatpush1.bf16.xpose.msra.mxu0 0
      %470 = vmatprep.subr.bf16.mxu0 0
      %471 = vmatpush1.bf16.xpose.msra.mxu0 0
      %472 = vmatprep.subr.bf16.mxu0 0
      %473 = vmatpush1.bf16.xpose.msra.mxu0 0
      %474 = vmatprep.subr.bf16.mxu0 0
      %475 = vmatpush1.bf16.xpose.msra.mxu0 0
      %476 = vmatprep.subr.bf16.mxu0 0
      %477 = vmatpush1.bf16.xpose.msra.mxu0 0
      %478 = vmatprep.subr.bf16.mxu0 0
      %479 = vmatpush1.bf16.xpose.msra.mxu0 0
      %480 = vmatprep.subr.bf16.mxu0 0
      %481 = vmatpush1.bf16.xpose.msra.mxu0 0
      %482 = vmatprep.mubr.bf16.mxu0 0
      %483 = vmatmul.mubr.bf16.gmra.mrb[0].mxu0 %v445
      %v484 = vpop.f32.mrb[0].mxu0
      %v485 = vadd.f32 0.0, %v484
      %v486 = vpop.f32.mrb[0].mxu0
      %v487 = vpop.f32.mrb[0].mxu0
      %v488 = vpop.f32.mrb[0].mxu0
      %489 = vdwg.mxu0
      %v490 = vmul.f32 %v485, 0.35355338
      %vm491 = vcmask 64512
      %v492 = vsel %vm491, %v490, -inf
      %493 = vmax.xlane.f32.xlu0 %v492
      %v494 = vpop.xlane.xlu0 %493
      %v495 = vsub.f32 %v490, %v494
      %v496 = vmul.f32 %v495, 1.442695
      %v497 = vpow.pop %v496
      %v498 = vsel %vm491, %v497, 0.0
      %499 = vadd.xlane.f32.xlu0 %v498
      %v500 = vpop.xlane.xlu0 %499
      %v501 = vrcp.pop %v500
      %v502 = vmul.f32 %v497, %v501
      %v503 = vpack.c.bf16 %v502, %v502
      %v505 = vsel %vm491, %v503, 0
      %vm507 = vcmask 1043456
      %v509 = vsel %vm507, %v443, 0
      %511 = vmatprep.subr.bf16.mxu0 0
      %512 = vmatpush1.bf16.msra.mxu0 %v509
      %513 = vmatprep.subr.bf16.mxu0 0
      %514 = vmatpush1.bf16.msra.mxu0 0
      %515 = vmatprep.subr.bf16.mxu0 0
      %516 = vmatpush1.bf16.msra.mxu0 0
      %517 = vmatprep.subr.bf16.mxu0 0
      %518 = vmatpush1.bf16.msra.mxu0 0
      %519 = vmatprep.subr.bf16.mxu0 0
      %520 = vmatpush1.bf16.msra.mxu0 0
      %521 = vmatprep.subr.bf16.mxu0 0
      %522 = vmatpush1.bf16.msra.mxu0 0
      %523 = vmatprep.subr.bf16.mxu0 0
      %524 = vmatpush1.bf16.msra.mxu0 0
      %525 = vmatprep.subr.bf16.mxu0 0
      %526 = vmatpush1.bf16.msra.mxu0 0
      %527 = vmatprep.subr.bf16.mxu0 0
      %528 = vmatpush1.bf16.msra.mxu0 0
      %529 = vmatprep.subr.bf16.mxu0 0
      %530 = vmatpush1.bf16.msra.mxu0 0
      %531 = vmatprep.subr.bf16.mxu0 0
      %532 = vmatpush1.bf16.msra.mxu0 0
      %533 = vmatprep.subr.bf16.mxu0 0
      %534 = vmatpush1.bf16.msra.mxu0 0
      %535 = vmatprep.subr.bf16.mxu0 0
      %536 = vmatpush1.bf16.msra.mxu0 0
      %537 = vmatprep.subr.bf16.mxu0 0
      %538 = vmatpush1.bf16.msra.mxu0 0
      %539 = vmatprep.subr.bf16.mxu0 0
      %540 = vmatpush1.bf16.msra.mxu0 0
      %541 = vmatprep.subr.bf16.mxu0 0
      %542 = vmatpush1.bf16.msra.mxu0 0
      %543 = vmatprep.mubr.bf16.mxu0 0
      %544 = vmatmul.mubr.bf16.gmra.mrb[0].mxu0 %v505
      %v545 = vpop.f32.mrb[0].mxu0
      %v546 = vadd.f32 0.0, %v545
      %v547 = vpop.f32.mrb[0].mxu0
      %v548 = vpop.f32.mrb[0].mxu0
      %v549 = vpop.f32.mrb[0].mxu0
      %550 = vdwg.mxu0
      %v551 = vpack.c.bf16 %v546, %v546
      %v552 = vld [vmem:[%s4] sm:$0xf]
      %v553 = vld [vmem:[%s4 + $0x4] sm:$0xf]
      %v554 = vld [vmem:[%s4 + $0x8] sm:$0xf]
      %v555 = vld [vmem:[%s4 + $0xc] sm:$0xf]
      %v560 = vunpack.c.l.b16 %v552
      %v561 = vunpack.c.l.b16 %v553
      %v562 = vunpack.c.l.b16 %v554
      %v563 = vunpack.c.l.b16 %v555
      %v564 = vpack.c.b16 %v561, %v560
      %v565 = vpack.c.b16 %v563, %v562
      %v569 = vsel %vm285, %v551, 0
      %571 = vmatprep.subr.bf16.mxu0 0
      %572 = vmatpush1.bf16.msra.mxu0 %v564
      %573 = vmatprep.subr.bf16.mxu0 0
      %574 = vmatpush1.bf16.msra.mxu0 %v565
      %575 = vmatprep.subr.bf16.mxu0 0
      %576 = vmatpush1.bf16.msra.mxu0 0
      %577 = vmatprep.subr.bf16.mxu0 0
      %578 = vmatpush1.bf16.msra.mxu0 0
      %579 = vmatprep.subr.bf16.mxu0 0
      %580 = vmatpush1.bf16.msra.mxu0 0
      %581 = vmatprep.subr.bf16.mxu0 0
      %582 = vmatpush1.bf16.msra.mxu0 0
      %583 = vmatprep.subr.bf16.mxu0 0
      %584 = vmatpush1.bf16.msra.mxu0 0
      %585 = vmatprep.subr.bf16.mxu0 0
      %586 = vmatpush1.bf16.msra.mxu0 0
      %587 = vmatprep.subr.bf16.mxu0 0
      %588 = vmatpush1.bf16.msra.mxu0 0
      %589 = vmatprep.subr.bf16.mxu0 0
      %590 = vmatpush1.bf16.msra.mxu0 0
      %591 = vmatprep.subr.bf16.mxu0 0
      %592 = vmatpush1.bf16.msra.mxu0 0
      %593 = vmatprep.subr.bf16.mxu0 0
      %594 = vmatpush1.bf16.msra.mxu0 0
      %595 = vmatprep.subr.bf16.mxu0 0
      %596 = vmatpush1.bf16.msra.mxu0 0
      %597 = vmatprep.subr.bf16.mxu0 0
      %598 = vmatpush1.bf16.msra.mxu0 0
      %599 = vmatprep.subr.bf16.mxu0 0
      %600 = vmatpush1.bf16.msra.mxu0 0
      %601 = vmatprep.subr.bf16.mxu0 0
      %602 = vmatpush1.bf16.msra.mxu0 0
      %603 = vmatprep.mubr.bf16.mxu0 0
      %604 = vmatmul.mubr.bf16.gmra.mrb[0].mxu0 %v569
      %v605 = vpop.f32.mrb[0].mxu0
      %v606 = vadd.f32 0.0, %v605
      %v607 = vpop.f32.mrb[0].mxu0
      %v608 = vpop.f32.mrb[0].mxu0
      %v609 = vpop.f32.mrb[0].mxu0
      %610 = vdwg.mxu0
      %v611 = vpack.c.bf16 %v606, %v606
      %v612 = vld [vmem:[%s262] sm:$0xf]
      %v613 = vld [vmem:[%s262 + $0x4] sm:$0xf]
      %v614 = vld [vmem:[%s262 + $0x8] sm:$0xf]
      %v615 = vld [vmem:[%s262 + $0xc] sm:$0xf]
      %v620 = vunpack.c.l.b16 %v612
      %v621 = vunpack.c.l.b16 %v613
      %v622 = vunpack.c.l.b16 %v614
      %v623 = vunpack.c.l.b16 %v615
      %v624 = vpack.c.b16 %v621, %v620
      %v625 = vpack.c.b16 %v623, %v622
      %v629 = vsel %vm285, %v611, 0
      %631 = vmatprep.subr.bf16.mxu0 0
      %632 = vmatpush1.bf16.msra.mxu0 %v624
      %633 = vmatprep.subr.bf16.mxu0 0
      %634 = vmatpush1.bf16.msra.mxu0 %v625
      %635 = vmatprep.subr.bf16.mxu0 0
      %636 = vmatpush1.bf16.msra.mxu0 0
      %637 = vmatprep.subr.bf16.mxu0 0
      %638 = vmatpush1.bf16.msra.mxu0 0
      %639 = vmatprep.subr.bf16.mxu0 0
      %640 = vmatpush1.bf16.msra.mxu0 0
      %641 = vmatprep.subr.bf16.mxu0 0
      %642 = vmatpush1.bf16.msra.mxu0 0
      %643 = vmatprep.subr.bf16.mxu0 0
      %644 = vmatpush1.bf16.msra.mxu0 0
      %645 = vmatprep.subr.bf16.mxu0 0
      %646 = vmatpush1.bf16.msra.mxu0 0
      %647 = vmatprep.subr.bf16.mxu0 0
      %648 = vmatpush1.bf16.msra.mxu0 0
      %649 = vmatprep.subr.bf16.mxu0 0
      %650 = vmatpush1.bf16.msra.mxu0 0
      %651 = vmatprep.subr.bf16.mxu0 0
      %652 = vmatpush1.bf16.msra.mxu0 0
      %653 = vmatprep.subr.bf16.mxu0 0
      %654 = vmatpush1.bf16.msra.mxu0 0
      %655 = vmatprep.subr.bf16.mxu0 0
      %656 = vmatpush1.bf16.msra.mxu0 0
      %657 = vmatprep.subr.bf16.mxu0 0
      %658 = vmatpush1.bf16.msra.mxu0 0
      %659 = vmatprep.subr.bf16.mxu0 0
      %660 = vmatpush1.bf16.msra.mxu0 0
      %661 = vmatprep.subr.bf16.mxu0 0
      %662 = vmatpush1.bf16.msra.mxu0 0
      %663 = vmatprep.mubr.bf16.mxu0 0
      %664 = vmatmul.mubr.bf16.gmra.mrb[0].mxu0 %v629
      %v665 = vpop.f32.mrb[0].mxu0
      %v666 = vadd.f32 0.0, %v665
      %v667 = vpop.f32.mrb[0].mxu0
      %v668 = vpop.f32.mrb[0].mxu0
      %v669 = vpop.f32.mrb[0].mxu0
      %670 = vdwg.mxu0
      %v671 = vpack.c.bf16 %v666, %v666
      %vm672 = vcmask 257024
      %673 = vst.msk [vmem:[%s266] sm:$0xf] %vm672, %v671
      %p674 = scmp.lt.s32.totalorder %s17, 1
      %s675 = scalar_select %p674, %s17, 1
      %s676 = smul.addr %s675, 4
      %s677 = scalar_lea.vmem %s6, %s676
      // Predicated region
      $region45: #{token_former_forward.14} parent=43 // pred_check
        %p678 = pneg %p171
      $region46: #{token_former_forward.14} parent=43 // pred_check_branch
        %680 = sbr.rel (%p678) target = $region48
      $region47: #{token_former_forward.14} parent=43 // pred_region
        _
      $region48: #{token_former_forward.14} parent=43 // pred_fallthru
        _
    $region44: #{token_former_forward.14} parent=5 // pred_fallthru
      _
    %p681 = scmp.le.s32.totalorder 2, %s12
    // Predicated region
    $region49: #{token_former_forward.14} parent=5 // pred_check
      %p682 = pneg %p681
    $region50: #{token_former_forward.14} parent=5 // pred_check_branch
      %684 = sbr.rel (%p682) target = $region52
    $region51: #{token_former_forward.14} parent=5 // pred_region
      %s685 = ssub.s32 %s12, 2
      // Predicated region
      $region53: #{token_former_forward.14} parent=51 // pred_check
        %p686 = pneg %p177
      $region54: #{token_former_forward.14} parent=51 // pred_check_branch
        %688 = sbr.rel (%p686) target = $region56
      $region55: #{token_former_forward.14} parent=51 // pred_region
        %p689 = scmp.lt.s32.totalorder %s18, 1
        %s690 = scalar_select %p689, %s18, 1
        %s691 = smul.addr %s690, 4
        %s692 = scalar_lea.vmem %s6, %s691
      $region56: #{token_former_forward.14} parent=51 // pred_fallthru
        _
    $region52: #{token_former_forward.14} parent=5 // pred_fallthru
      _
  $region6: #{token_former_forward.14} parent=0 // loop_footer
    %s16 = sadd.s32 1, %s12
  $region7: #{token_former_forward.14} parent=0 // loop_footer_branch
    %11 = sbr.rel target = $region3
  $region8: #{token_former_forward.14} parent=0 // loop_exit
    _

// kernel: token_former_forward.15
$region0: #{token_former_forward.15}
  #allocation0 [shape = 'u32[]', space=smem, size = 0x4, offset = 0x4, fixed_abs, tag = 'smem constant byte address 0x4 - core index']
  #allocation1 [shape = 'u32[144,128]{1,0:T(1,128)}', space=vmem, size = 0x12000, scoped, tag = 'internal scratch']
  %s0 = inlined_call_operand.vmem [shape: bf16[2,8,32], index: 0, kind: input, shape index: {}]
  %s1 = inlined_call_operand.vmem [shape: f32[8,8], index: 1, kind: input, shape index: {}]
  %s2 = inlined_call_operand.vmem [shape: f32[8,8], index: 2, kind: input, shape index: {}]
  %s3 = inlined_call_operand.vmem [shape: bf16[8,32], index: 3, kind: input, shape index: {}]
  %s4 = inlined_call_operand.vmem [shape: bf16[8,32], index: 4, kind: input, shape index: {}]
  %s5 = inlined_call_operand.vmem [shape: bf16[32,32], index: 5, kind: input, shape index: {}]
  %s6 = inlined_call_operand.vmem [shape: bf16[32,32], index: 6, kind: input, shape index: {}]
  %s7 = inlined_call_operand.vmem [shape: bf16[2,8,32], index: 7, kind: output, shape index: {}]
  %s8 = sld [smem:[#allocation0]]
  $region61: #{token_former_forward.15} parent=0
    _
  %s10 = ssub.s32 1, %s8
  %s11 = scalar_select 0, %s10, %s8
  loop: start=0, step=1, limit=4
  $region2: #{token_former_forward.15} parent=0 // loop_pre_header
    _
  $region3: #{token_former_forward.15} parent=0 // loop_header
    %s13 = sphi 0, %s17
    %p14 = scmp.ge.s32.totalorder %s13, 4
    %s20 = sphi 0, %s32
    %s21 = sphi 0, %s28
    %s22 = sphi 0, %s20
    %s23 = sphi 0, %s21
    %s24 = sphi 0, %s22
    %s25 = sphi 0, %s23
    %s37 = sphi 0, %s39
    %s40 = sphi 0, %s37
    %s41 = sphi 0, %s40
    %s57 = sphi 0, %s41
    %s63 = sphi 0, %s65
    %s66 = sphi 0, %s63
    %s67 = sphi 0, %s66
    %s83 = sphi 0, %s67
    %s89 = sphi 0, %s91
    %s92 = sphi 0, %s89
    %s93 = sphi 0, %s92
    %s109 = sphi 0, %s93
    %s113 = sphi 0, %s113
    %s115 = sphi 0, %s113
    %s116 = sphi 0, %s115
    %s130 = sphi 0, %s116
    %s134 = sphi 0, %s134
    %s136 = sphi 0, %s134
    %s137 = sphi 0, %s136
    %s151 = sphi 0, %s137
    %s155 = sphi 0, %s155
    %s157 = sphi 0, %s155
    %s158 = sphi 0, %s157
    %s172 = sphi 0, %s158
    %s176 = sphi 0, %s176
    %s178 = sphi 0, %s176
    %s179 = sphi 0, %s178
    %s193 = sphi 0, %s179
    %s201 = sphi 0, %s203
    %s204 = sphi 0, %s201
    %s205 = sphi 0, %s204
    %s221 = sphi 0, %s205
  $region4: #{token_former_forward.15} parent=0 // loop_header_branch
    %16 = sbr.rel (%p14) target = $region8
  $region5: #{token_former_forward.15} parent=0 // loop_body
    %s18 = ssub.s32 %s13, 1
    %s19 = ssub.s32 %s13, 2
    %s26 = sadd.s32 1, %s21
    %p27 = scmp.ge.s32.totalorder %s26, 1
    %s28 = scalar_select %p27, 0, %s26
    %s29 = sadd.s32 1, %s20
    %s30 = scalar_select %p27, %s29, %s20
    %p31 = scmp.ge.s32.totalorder %s30, 2
    %s32 = scalar_select %p31, 0, %s30
    %s33 = ssub.s32 %s20, %s32
    %s34 = ssub.s32 %s21, %s28
    %s35 = sor.u32 %s33, %s34
    %p36 = scmp.eq.s32.totalorder %s35, 0
    %s38 = sadd.s32 %s37, 1
    %s39 = scalar_select %p36, %s37, %s38
    %p42 = pneg %p36
    %p43 = scmp.eq.s32.totalorder %s13, 1
    %p44 = por %p42, %p43
    %p45 = scmp.ne.s32.totalorder %s37, %s40
    %p46 = scmp.eq.s32.totalorder %s13, 0
    %p47 = por %p45, %p46
    %p48 = scmp.ne.s32.totalorder %s37, %s40
    %p49 = scmp.eq.s32.totalorder %s18, 1
    %p50 = por %p48, %p49
    %p51 = scmp.ne.s32.totalorder %s40, %s41
    %p52 = scmp.eq.s32.totalorder %s18, 0
    %p53 = por %p51, %p52
    %p54 = scmp.ne.s32.totalorder %s40, %s41
    %p55 = scmp.eq.s32.totalorder %s19, 1
    %p56 = por %p54, %p55
    %p58 = scmp.ne.s32.totalorder %s41, %s57
    %p59 = scmp.eq.s32.totalorder %s19, 0
    %p60 = por %p58, %p59
    %s61 = ssub.s32 %s21, %s28
    %p62 = scmp.eq.s32.totalorder %s61, 0
    %s64 = sadd.s32 %s63, 1
    %s65 = scalar_select %p62, %s63, %s64
    %p68 = pneg %p62
    %p69 = scmp.eq.s32.totalorder %s13, 1
    %p70 = por %p68, %p69
    %p71 = scmp.ne.s32.totalorder %s63, %s66
    %p72 = scmp.eq.s32.totalorder %s13, 0
    %p73 = por %p71, %p72
    %p74 = scmp.ne.s32.totalorder %s63, %s66
    %p75 = scmp.eq.s32.totalorder %s18, 1
    %p76 = por %p74, %p75
    %p77 = scmp.ne.s32.totalorder %s66, %s67
    %p78 = scmp.eq.s32.totalorder %s18, 0
    %p79 = por %p77, %p78
    %p80 = scmp.ne.s32.totalorder %s66, %s67
    %p81 = scmp.eq.s32.totalorder %s19, 1
    %p82 = por %p80, %p81
    %p84 = scmp.ne.s32.totalorder %s67, %s83
    %p85 = scmp.eq.s32.totalorder %s19, 0
    %p86 = por %p84, %p85
    %s87 = ssub.s32 %s21, %s28
    %p88 = scmp.eq.s32.totalorder %s87, 0
    %s90 = sadd.s32 %s89, 1
    %s91 = scalar_select %p88, %s89, %s90
    %p94 = pneg %p88
    %p95 = scmp.eq.s32.totalorder %s13, 1
    %p96 = por %p94, %p95
    %p97 = scmp.ne.s32.totalorder %s89, %s92
    %p98 = scmp.eq.s32.totalorder %s13, 0
    %p99 = por %p97, %p98
    %p100 = scmp.ne.s32.totalorder %s89, %s92
    %p101 = scmp.eq.s32.totalorder %s18, 1
    %p102 = por %p100, %p101
    %p103 = scmp.ne.s32.totalorder %s92, %s93
    %p104 = scmp.eq.s32.totalorder %s18, 0
    %p105 = por %p103, %p104
    %p106 = scmp.ne.s32.totalorder %s92, %s93
    %p107 = scmp.eq.s32.totalorder %s19, 1
    %p108 = por %p106, %p107
    %p110 = scmp.ne.s32.totalorder %s93, %s109
    %p111 = scmp.eq.s32.totalorder %s19, 0
    %p112 = por %p110, %p111
    %s114 = sadd.s32 %s113, 1
    %p117 = scmp.eq.s32.totalorder %s13, 1
    %p118 = scmp.ne.s32.totalorder %s113, %s115
    %p119 = scmp.eq.s32.totalorder %s13, 0
    %p120 = por %p118, %p119
    %p121 = scmp.ne.s32.totalorder %s113, %s115
    %p122 = scmp.eq.s32.totalorder %s18, 1
    %p123 = por %p121, %p122
    %p124 = scmp.ne.s32.totalorder %s115, %s116
    %p125 = scmp.eq.s32.totalorder %s18, 0
    %p126 = por %p124, %p125
    %p127 = scmp.ne.s32.totalorder %s115, %s116
    %p128 = scmp.eq.s32.totalorder %s19, 1
    %p129 = por %p127, %p128
    %p131 = scmp.ne.s32.totalorder %s116, %s130
    %p132 = scmp.eq.s32.totalorder %s19, 0
    %p133 = por %p131, %p132
    %s135 = sadd.s32 %s134, 1
    %p138 = scmp.eq.s32.totalorder %s13, 1
    %p139 = scmp.ne.s32.totalorder %s134, %s136
    %p140 = scmp.eq.s32.totalorder %s13, 0
    %p141 = por %p139, %p140
    %p142 = scmp.ne.s32.totalorder %s134, %s136
    %p143 = scmp.eq.s32.totalorder %s18, 1
    %p144 = por %p142, %p143
    %p145 = scmp.ne.s32.totalorder %s136, %s137
    %p146 = scmp.eq.s32.totalorder %s18, 0
    %p147 = por %p145, %p146
    %p148 = scmp.ne.s32.totalorder %s136, %s137
    %p149 = scmp.eq.s32.totalorder %s19, 1
    %p150 = por %p148, %p149
    %p152 = scmp.ne.s32.totalorder %s137, %s151
    %p153 = scmp.eq.s32.totalorder %s19, 0
    %p154 = por %p152, %p153
    %s156 = sadd.s32 %s155, 1
    %p159 = scmp.eq.s32.totalorder %s13, 1
    %p160 = scmp.ne.s32.totalorder %s155, %s157
    %p161 = scmp.eq.s32.totalorder %s13, 0
    %p162 = por %p160, %p161
    %p163 = scmp.ne.s32.totalorder %s155, %s157
    %p164 = scmp.eq.s32.totalorder %s18, 1
    %p165 = por %p163, %p164
    %p166 = scmp.ne.s32.totalorder %s157, %s158
    %p167 = scmp.eq.s32.totalorder %s18, 0
    %p168 = por %p166, %p167
    %p169 = scmp.ne.s32.totalorder %s157, %s158
    %p170 = scmp.eq.s32.totalorder %s19, 1
    %p171 = por %p169, %p170
    %p173 = scmp.ne.s32.totalorder %s158, %s172
    %p174 = scmp.eq.s32.totalorder %s19, 0
    %p175 = por %p173, %p174
    %s177 = sadd.s32 %s176, 1
    %p180 = scmp.eq.s32.totalorder %s13, 1
    %p181 = scmp.ne.s32.totalorder %s176, %s178
    %p182 = scmp.eq.s32.totalorder %s13, 0
    %p183 = por %p181, %p182
    %p184 = scmp.ne.s32.totalorder %s176, %s178
    %p185 = scmp.eq.s32.totalorder %s18, 1
    %p186 = por %p184, %p185
    %p187 = scmp.ne.s32.totalorder %s178, %s179
    %p188 = scmp.eq.s32.totalorder %s18, 0
    %p189 = por %p187, %p188
    %p190 = scmp.ne.s32.totalorder %s178, %s179
    %p191 = scmp.eq.s32.totalorder %s19, 1
    %p192 = por %p190, %p191
    %p194 = scmp.ne.s32.totalorder %s179, %s193
    %p195 = scmp.eq.s32.totalorder %s19, 0
    %p196 = por %p194, %p195
    %s197 = ssub.s32 %s20, %s32
    %s198 = ssub.s32 %s21, %s28
    %s199 = sor.u32 %s197, %s198
    %p200 = scmp.eq.s32.totalorder %s199, 0
    %s202 = sadd.s32 %s201, 1
    %s203 = scalar_select %p200, %s201, %s202
    %p206 = pneg %p200
    %p207 = scmp.eq.s32.totalorder %s13, 1
    %p208 = por %p206, %p207
    %p209 = scmp.ne.s32.totalorder %s201, %s204
    %p210 = scmp.eq.s32.totalorder %s13, 0
    %p211 = por %p209, %p210
    %p212 = scmp.ne.s32.totalorder %s201, %s204
    %p213 = scmp.eq.s32.totalorder %s18, 1
    %p214 = por %p212, %p213
    %p215 = scmp.ne.s32.totalorder %s204, %s205
    %p216 = scmp.eq.s32.totalorder %s18, 0
    %p217 = por %p215, %p216
    %p218 = scmp.ne.s32.totalorder %s204, %s205
    %p219 = scmp.eq.s32.totalorder %s19, 1
    %p220 = por %p218, %p219
    %p222 = scmp.ne.s32.totalorder %s205, %s221
    %p223 = scmp.eq.s32.totalorder %s19, 0
    %p224 = por %p222, %p223
    %p225 = scmp.le.s32.totalorder 1, %s13
    %p226 = scmp.lt.s32.totalorder %s13, 3
    %p227 = pnand %p225, %p226
    %p228 = pneg %p227
    // Predicated region
    $region9: #{token_former_forward.15} parent=5 // pred_check
      _
    $region10: #{token_former_forward.15} parent=5 // pred_check_branch
      %230 = sbr.rel (%p227) target = $region12
    $region11: #{token_former_forward.15} parent=5 // pred_region
      %s231 = ssub.s32 %s13, 1
      // Predicated region
      $region13: #{token_former_forward.15} parent=11 // pred_check
        %p232 = pneg %p79
      $region14: #{token_former_forward.15} parent=11 // pred_check_branch
        %234 = sbr.rel (%p232) target = $region16
      $region15: #{token_former_forward.15} parent=11 // pred_region
        %p235 = scmp.lt.s32.totalorder %s23, 0
        %s236 = scalar_select %p235, %s23, 0
        %s237 = smul.addr %s236, 8
        %s238 = scalar_lea.vmem %s1, %s237
      $region16: #{token_former_forward.15} parent=11 // pred_fallthru
        _
      // Predicated region
      $region17: #{token_former_forward.15} parent=11 // pred_check
        %p239 = pneg %p105
      $region18: #{token_former_forward.15} parent=11 // pred_check_branch
        %241 = sbr.rel (%p239) target = $region20
      $region19: #{token_former_forward.15} parent=11 // pred_region
        %p242 = scmp.lt.s32.totalorder %s23, 0
        %s243 = scalar_select %p242, %s23, 0
        %s244 = smul.addr %s243, 8
        %s245 = scalar_lea.vmem %s2, %s244
      $region20: #{token_former_forward.15} parent=11 // pred_fallthru
        _
      // Predicated region
      $region21: #{token_former_forward.15} parent=11 // pred_check
        %p246 = pneg %p126
      $region22: #{token_former_forward.15} parent=11 // pred_check_branch
        %248 = sbr.rel (%p246) target = $region24
      $region23: #{token_former_forward.15} parent=11 // pred_region
        _
      $region24: #{token_former_forward.15} parent=11 // pred_fallthru
        _
      // Predicated region
      $region25: #{token_former_forward.15} parent=11 // pred_check
        %p249 = pneg %p147
      $region26: #{token_former_forward.15} parent=11 // pred_check_branch
        %251 = sbr.rel (%p249) target = $region28
      $region27: #{token_former_forward.15} parent=11 // pred_region
        _
      $region28: #{token_former_forward.15} parent=11 // pred_fallthru
        _
      // Predicated region
      $region29: #{token_former_forward.15} parent=11 // pred_check
        %p252 = pneg %p168
      $region30: #{token_former_forward.15} parent=11 // pred_check_branch
        %254 = sbr.rel (%p252) target = $region32
      $region31: #{token_former_forward.15} parent=11 // pred_region
        _
      $region32: #{token_former_forward.15} parent=11 // pred_fallthru
        _
      // Predicated region
      $region33: #{token_former_forward.15} parent=11 // pred_check
        %p255 = pneg %p189
      $region34: #{token_former_forward.15} parent=11 // pred_check_branch
        %257 = sbr.rel (%p255) target = $region36
      $region35: #{token_former_forward.15} parent=11 // pred_region
        _
      $region36: #{token_former_forward.15} parent=11 // pred_fallthru
        _
    $region12: #{token_former_forward.15} parent=5 // pred_fallthru
      _
    %p258 = scmp.lt.s32.totalorder %s13, 2
    // Predicated region
    $region37: #{token_former_forward.15} parent=5 // pred_check
      %p259 = pneg %p258
    $region38: #{token_former_forward.15} parent=5 // pred_check_branch
      %261 = sbr.rel (%p259) target = $region40
    $region39: #{token_former_forward.15} parent=5 // pred_region
      // Predicated region
      $region41: #{token_former_forward.15} parent=39 // pred_check
        %p262 = pneg %p47
      $region42: #{token_former_forward.15} parent=39 // pred_check_branch
        %264 = sbr.rel (%p262) target = $region44
      $region43: #{token_former_forward.15} parent=39 // pred_region
        %p265 = scmp.lt.s32.totalorder %s20, 1
        %s266 = scalar_select %p265, %s20, 1
        %p267 = scmp.lt.s32.totalorder %s21, 0
        %s268 = scalar_select %p267, %s21, 0
        %s269 = sadd.s32 %s268, %s266
        %s270 = smul.addr %s269, 4
        %s271 = scalar_lea.vmem %s0, %s270
      $region44: #{token_former_forward.15} parent=39 // pred_fallthru
        _
    $region40: #{token_former_forward.15} parent=5 // pred_fallthru
      _
    %p272 = scmp.le.s32.totalorder 1, %s13
    %p273 = scmp.lt.s32.totalorder %s13, 3
    %p274 = pnand %p272, %p273
    %p275 = pneg %p274
    // Predicated region
    $region45: #{token_former_forward.15} parent=5 // pred_check
      _
    $region46: #{token_former_forward.15} parent=5 // pred_check_branch
      %277 = sbr.rel (%p274) target = $region48
    $region47: #{token_former_forward.15} parent=5 // pred_region
      %s278 = ssub.s32 %s13, 1
      %p279 = scmp.lt.s32.totalorder %s22, 1
      %s280 = scalar_select %p279, %s22, 1
      %p281 = scmp.lt.s32.totalorder %s23, 0
      %s282 = scalar_select %p281, %s23, 0
      %s283 = sadd.s32 %s282, %s280
      %s284 = smul.addr %s283, 4
      %s285 = scalar_lea.vmem %s0, %s284
      %p286 = pneg %p53
      %p287 = pneg %p50
      %p288 = scmp.lt.s32.totalorder %s23, 0
      %s289 = scalar_select %p288, %s23, 0
      %s290 = smul.addr %s289, 8
      %s291 = scalar_lea.vmem %s1, %s290
      %p292 = pneg %p79
      %p293 = pneg %p76
      %p294 = scmp.lt.s32.totalorder %s23, 0
      %s295 = scalar_select %p294, %s23, 0
      %s296 = smul.addr %s295, 8
      %s297 = scalar_lea.vmem %s2, %s296
      %p298 = pneg %p105
      %p299 = pneg %p102
      %p300 = pneg %p126
      %p301 = pneg %p123
      %p302 = pneg %p147
      %p303 = pneg %p144
      %p304 = pneg %p168
      %p305 = pneg %p165
      %p306 = pneg %p189
      %p307 = pneg %p186
      %p308 = pneg %p217
      %p309 = pneg %p214
      %p310 = scmp.lt.s32.totalorder %s22, 1
      %s311 = scalar_select %p310, %s22, 1
      %p312 = scmp.lt.s32.totalorder %s23, 0
      %s313 = scalar_select %p312, %s23, 0
      %s314 = sadd.s32 %s313, %s311
      %s315 = smul.addr %s314, 4
      %s316 = scalar_lea.vmem %s7, %s315
      %p317 = scmp.lt.s32.totalorder %s22, 1
      %s318 = scalar_select %p317, %s22, 1
      %p319 = scmp.lt.s32.totalorder %s23, 0
      %s320 = scalar_select %p319, %s23, 0
      %s321 = sadd.s32 %s320, %s318
      %s322 = smul.addr %s321, 4
      %s323 = scalar_lea.vmem %s0, %s322
      %p324 = scmp.lt.s32.totalorder %s23, 0
      %s325 = scalar_select %p324, %s23, 0
      %s326 = smul.addr %s325, 8
      %s327 = scalar_lea.vmem %s1, %s326
      %p328 = scmp.lt.s32.totalorder %s23, 0
      %s329 = scalar_select %p328, %s23, 0
      %s330 = smul.addr %s329, 8
      %s331 = scalar_lea.vmem %s2, %s330
      %p332 = scmp.lt.s32.totalorder %s22, 1
      %s333 = scalar_select %p332, %s22, 1
      %p334 = scmp.lt.s32.totalorder %s23, 0
      %s335 = scalar_select %p334, %s23, 0
      %s336 = sadd.s32 %s335, %s333
      %s337 = smul.addr %s336, 4
      %s338 = scalar_lea.vmem %s7, %s337
      %v340 = vld [vmem:[%s323] sm:$0xf]
      %v341 = vld [vmem:[%s3] sm:$0xf]
      %v342 = vld [vmem:[%s4] sm:$0xf]
      %v343 = vld [vmem:[%s5] sm:$0xf]
      %v344 = vld [vmem:[%s5 + $0x4] sm:$0xf]
      %v345 = vld [vmem:[%s5 + $0x8] sm:$0xf]
      %v346 = vld [vmem:[%s5 + $0xc] sm:$0xf]
      %v351 = vunpack.c.l.b16 %v343
      %v352 = vunpack.c.l.b16 %v344
      %v353 = vunpack.c.l.b16 %v345
      %v354 = vunpack.c.l.b16 %v346
      %v355 = vpack.c.b16 %v352, %v351
      %v356 = vpack.c.b16 %v354, %v353
      %vm359 = vcmask 261120
      %v361 = vsel %vm359, %v340, 0
      %363 = vmatprep.subr.bf16.mxu0 0
      %364 = vmatpush1.bf16.msra.mxu0 %v355
      %365 = vmatprep.subr.bf16.mxu0 0
      %366 = vmatpush1.bf16.msra.mxu0 %v356
      %367 = vmatprep.subr.bf16.mxu0 0
      %368 = vmatpush1.bf16.msra.mxu0 0
      %369 = vmatprep.subr.bf16.mxu0 0
      %370 = vmatpush1.bf16.msra.mxu0 0
      %371 = vmatprep.subr.bf16.mxu0 0
      %372 = vmatpush1.bf16.msra.mxu0 0
      %373 = vmatprep.subr.bf16.mxu0 0
      %374 = vmatpush1.bf16.msra.mxu0 0
      %375 = vmatprep.subr.bf16.mxu0 0
      %376 = vmatpush1.bf16.msra.mxu0 0
      %377 = vmatprep.subr.bf16.mxu0 0
      %378 = vmatpush1.bf16.msra.mxu0 0
      %379 = vmatprep.subr.bf16.mxu0 0
      %380 = vmatpush1.bf16.msra.mxu0 0
      %381 = vmatprep.subr.bf16.mxu0 0
      %382 = vmatpush1.bf16.msra.mxu0 0
      %383 = vmatprep.subr.bf16.mxu0 0
      %384 = vmatpush1.bf16.msra.mxu0 0
      %385 = vmatprep.subr.bf16.mxu0 0
      %386 = vmatpush1.bf16.msra.mxu0 0
      %387 = vmatprep.subr.bf16.mxu0 0
      %388 = vmatpush1.bf16.msra.mxu0 0
      %389 = vmatprep.subr.bf16.mxu0 0
      %390 = vmatpush1.bf16.msra.mxu0 0
      %391 = vmatprep.subr.bf16.mxu0 0
      %392 = vmatpush1.bf16.msra.mxu0 0
      %393 = vmatprep.subr.bf16.mxu0 0
      %394 = vmatpush1.bf16.msra.mxu0 0
      %395 = vmatprep.mubr.bf16.mxu0 0
      %396 = vmatmul.mubr.bf16.gmra.mrb[0].mxu0 %v361
      %v397 = vpop.f32.mrb[0].mxu0
      %v398 = vadd.f32 0.0, %v397
      %v399 = vpop.f32.mrb[0].mxu0
      %v400 = vpop.f32.mrb[0].mxu0
      %v401 = vpop.f32.mrb[0].mxu0
      %402 = vdwg.mxu0
      %v403 = vld [vmem:[%s327] sm:$0xff]
      %v404 = vld [vmem:[%s331] sm:$0xff]
      %v405 = vsub.f32 0.0, %v398
      %407 = vrot.lane.b32.xlu0 %v405, 124
      %v408 = vpop.permute.xlu0 %407
      %411 = vrot.lane.b32.xlu0 %v398, 4
      %v412 = vpop.permute.xlu0 %411
      %vm414 = vcmask 31744
      %v415 = vsel %vm414, %v408, %v412
      %v416 = vmul.f32 %v398, %v403
      %v417 = vmul.f32 %v415, %v404
      %v418 = vadd.f32 %v416, %v417
      %vm419 = vcmask 64512
      %v420 = vsel %vm419, %v418, %v398
      %v421 = vpack.c.bf16 %v420, %v420
      %v423 = vsel %vm419, %v421, 0
      %v426 = vsel %vm419, %v341, 0
      %428 = vmatprep.subr.bf16.mxu0 0
      %429 = vmatpush1.bf16.xpose.msra.mxu0 %v426
      %430 = vmatprep.subr.bf16.mxu0 0
      %431 = vmatpush1.bf16.xpose.msra.mxu0 0
      %432 = vmatprep.subr.bf16.mxu0 0
      %433 = vmatpush1.bf16.xpose.msra.mxu0 0
      %434 = vmatprep.subr.bf16.mxu0 0
      %435 = vmatpush1.bf16.xpose.msra.mxu0 0
      %436 = vmatprep.subr.bf16.mxu0 0
      %437 = vmatpush1.bf16.xpose.msra.mxu0 0
      %438 = vmatprep.subr.bf16.mxu0 0
      %439 = vmatpush1.bf16.xpose.msra.mxu0 0
      %440 = vmatprep.subr.bf16.mxu0 0
      %441 = vmatpush1.bf16.xpose.msra.mxu0 0
      %442 = vmatprep.subr.bf16.mxu0 0
      %443 = vmatpush1.bf16.xpose.msra.mxu0 0
      %444 = vmatprep.subr.bf16.mxu0 0
      %445 = vmatpush1.bf16.xpose.msra.mxu0 0
      %446 = vmatprep.subr.bf16.mxu0 0
      %447 = vmatpush1.bf16.xpose.msra.mxu0 0
      %448 = vmatprep.subr.bf16.mxu0 0
      %449 = vmatpush1.bf16.xpose.msra.mxu0 0
      %450 = vmatprep.subr.bf16.mxu0 0
      %451 = vmatpush1.bf16.xpose.msra.mxu0 0
      %452 = vmatprep.subr.bf16.mxu0 0
      %453 = vmatpush1.bf16.xpose.msra.mxu0 0
      %454 = vmatprep.subr.bf16.mxu0 0
      %455 = vmatpush1.bf16.xpose.msra.mxu0 0
      %456 = vmatprep.subr.bf16.mxu0 0
      %457 = vmatpush1.bf16.xpose.msra.mxu0 0
      %458 = vmatprep.subr.bf16.mxu0 0
      %459 = vmatpush1.bf16.xpose.msra.mxu0 0
      %460 = vmatprep.mubr.bf16.mxu0 0
      %461 = vmatmul.mubr.bf16.gmra.mrb[0].mxu0 %v423
      %v462 = vpop.f32.mrb[0].mxu0
      %v463 = vadd.f32 0.0, %v462
      %v464 = vpop.f32.mrb[0].mxu0
      %v465 = vpop.f32.mrb[0].mxu0
      %v466 = vpop.f32.mrb[0].mxu0
      %467 = vdwg.mxu0
      %v468 = vmul.f32 %v463, 0.35355338
      %v469 = vsel %vm419, %v468, -inf
      %470 = vmax.xlane.f32.xlu0 %v469
      %v471 = vpop.xlane.xlu0 %470
      %v472 = vsub.f32 %v468, %v471
      %v473 = vmul.f32 %v472, 1.442695
      %v474 = vpow.pop %v473
      %v475 = vsel %vm419, %v474, 0.0
      %476 = vadd.xlane.f32.xlu0 %v475
      %v477 = vpop.xlane.xlu0 %476
      %v478 = vrcp.pop %v477
      %v479 = vmul.f32 %v474, %v478
      %v480 = vpack.c.bf16 %v479, %v479
      %v482 = vsel %vm419, %v480, 0
      %vm484 = vcmask 1043456
      %v486 = vsel %vm484, %v342, 0
      %488 = vmatprep.subr.bf16.mxu0 0
      %489 = vmatpush1.bf16.msra.mxu0 %v486
      %490 = vmatprep.subr.bf16.mxu0 0
      %491 = vmatpush1.bf16.msra.mxu0 0
      %492 = vmatprep.subr.bf16.mxu0 0
      %493 = vmatpush1.bf16.msra.mxu0 0
      %494 = vmatprep.subr.bf16.mxu0 0
      %495 = vmatpush1.bf16.msra.mxu0 0
      %496 = vmatprep.subr.bf16.mxu0 0
      %497 = vmatpush1.bf16.msra.mxu0 0
      %498 = vmatprep.subr.bf16.mxu0 0
      %499 = vmatpush1.bf16.msra.mxu0 0
      %500 = vmatprep.subr.bf16.mxu0 0
      %501 = vmatpush1.bf16.msra.mxu0 0
      %502 = vmatprep.subr.bf16.mxu0 0
      %503 = vmatpush1.bf16.msra.mxu0 0
      %504 = vmatprep.subr.bf16.mxu0 0
      %505 = vmatpush1.bf16.msra.mxu0 0
      %506 = vmatprep.subr.bf16.mxu0 0
      %507 = vmatpush1.bf16.msra.mxu0 0
      %508 = vmatprep.subr.bf16.mxu0 0
      %509 = vmatpush1.bf16.msra.mxu0 0
      %510 = vmatprep.subr.bf16.mxu0 0
      %511 = vmatpush1.bf16.msra.mxu0 0
      %512 = vmatprep.subr.bf16.mxu0 0
      %513 = vmatpush1.bf16.msra.mxu0 0
      %514 = vmatprep.subr.bf16.mxu0 0
      %515 = vmatpush1.bf16.msra.mxu0 0
      %516 = vmatprep.subr.bf16.mxu0 0
      %517 = vmatpush1.bf16.msra.mxu0 0
      %518 = vmatprep.subr.bf16.mxu0 0
      %519 = vmatpush1.bf16.msra.mxu0 0
      %520 = vmatprep.mubr.bf16.mxu0 0
      %521 = vmatmul.mubr.bf16.gmra.mrb[0].mxu0 %v482
      %v522 = vpop.f32.mrb[0].mxu0
      %v523 = vadd.f32 0.0, %v522
      %v524 = vpop.f32.mrb[0].mxu0
      %v525 = vpop.f32.mrb[0].mxu0
      %v526 = vpop.f32.mrb[0].mxu0
      %527 = vdwg.mxu0
      %529 = vrot.lane.b32.xlu0 %v421, 120
      %v530 = vpop.permute.xlu0 %529
      %v532 = vunpack.c.l.b16 %v341
      %v533 = vpack.c.b16 %v532, %v532
      %534 = vrot.lane.b32.xlu0 %v533, 120
      %v535 = vpop.permute.xlu0 %534
      %v537 = vsel %vm419, %v530, 0
      %v540 = vsel %vm419, %v535, 0
      %542 = vmatprep.subr.bf16.mxu0 0
      %543 = vmatpush1.bf16.xpose.msra.mxu0 %v540
      %544 = vmatprep.subr.bf16.mxu0 0
      %545 = vmatpush1.bf16.xpose.msra.mxu0 0
      %546 = vmatprep.subr.bf16.mxu0 0
      %547 = vmatpush1.bf16.xpose.msra.mxu0 0
      %548 = vmatprep.subr.bf16.mxu0 0
      %549 = vmatpush1.bf16.xpose.msra.mxu0 0
      %550 = vmatprep.subr.bf16.mxu0 0
      %551 = vmatpush1.bf16.xpose.msra.mxu0 0
      %552 = vmatprep.subr.bf16.mxu0 0
      %553 = vmatpush1.bf16.xpose.msra.mxu0 0
      %554 = vmatprep.subr.bf16.mxu0 0
      %555 = vmatpush1.bf16.xpose.msra.mxu0 0
      %556 = vmatprep.subr.bf16.mxu0 0
      %557 = vmatpush1.bf16.xpose.msra.mxu0 0
      %558 = vmatprep.subr.bf16.mxu0 0
      %559 = vmatpush1.bf16.xpose.msra.mxu0 0
      %560 = vmatprep.subr.bf16.mxu0 0
      %561 = vmatpush1.bf16.xpose.msra.mxu0 0
      %562 = vmatprep.subr.bf16.mxu0 0
      %563 = vmatpush1.bf16.xpose.msra.mxu0 0
      %564 = vmatprep.subr.bf16.mxu0 0
      %565 = vmatpush1.bf16.xpose.msra.mxu0 0
      %566 = vmatprep.subr.bf16.mxu0 0
      %567 = vmatpush1.bf16.xpose.msra.mxu0 0
      %568 = vmatprep.subr.bf16.mxu0 0
      %569 = vmatpush1.bf16.xpose.msra.mxu0 0
      %570 = vmatprep.subr.bf16.mxu0 0
      %571 = vmatpush1.bf16.xpose.msra.mxu0 0
      %572 = vmatprep.subr.bf16.mxu0 0
      %573 = vmatpush1.bf16.xpose.msra.mxu0 0
      %574 = vmatprep.mubr.bf16.mxu0 0
      %575 = vmatmul.mubr.bf16.gmra.mrb[0].mxu0 %v537
      %v576 = vpop.f32.mrb[0].mxu0
      %v577 = vadd.f32 0.0, %v576
      %v578 = vpop.f32.mrb[0].mxu0
      %v579 = vpop.f32.mrb[0].mxu0
      %v580 = vpop.f32.mrb[0].mxu0
      %581 = vdwg.mxu0
      %v582 = vmul.f32 %v577, 0.35355338
      %v583 = vsel %vm419, %v582, -inf
      %584 = vmax.xlane.f32.xlu0 %v583
      %v585 = vpop.xlane.xlu0 %584
      %v586 = vsub.f32 %v582, %v585
      %v587 = vmul.f32 %v586, 1.442695
      %v588 = vpow.pop %v587
      %v589 = vsel %vm419, %v588, 0.0
      %590 = vadd.xlane.f32.xlu0 %v589
      %v591 = vpop.xlane.xlu0 %590
      %v592 = vrcp.pop %v591
      %v593 = vmul.f32 %v588, %v592
      %v594 = vpack.c.bf16 %v593, %v593
      %v596 = vunpack.c.l.b16 %v342
      %v597 = vpack.c.b16 %v596, %v596
      %598 = vrot.lane.b32.xlu0 %v597, 120
      %v599 = vpop.permute.xlu0 %598
      %v601 = vsel %vm419, %v594, 0
      %v604 = vsel %vm484, %v599, 0
      %606 = vmatprep.subr.bf16.mxu0 0
      %607 = vmatpush1.bf16.msra.mxu0 %v604
      %608 = vmatprep.subr.bf16.mxu0 0
      %609 = vmatpush1.bf16.msra.mxu0 0
      %610 = vmatprep.subr.bf16.mxu0 0
      %611 = vmatpush1.bf16.msra.mxu0 0
      %612 = vmatprep.subr.bf16.mxu0 0
      %613 = vmatpush1.bf16.msra.mxu0 0
      %614 = vmatprep.subr.bf16.mxu0 0
      %615 = vmatpush1.bf16.msra.mxu0 0
      %616 = vmatprep.subr.bf16.mxu0 0
      %617 = vmatpush1.bf16.msra.mxu0 0
      %618 = vmatprep.subr.bf16.mxu0 0
      %619 = vmatpush1.bf16.msra.mxu0 0
      %620 = vmatprep.subr.bf16.mxu0 0
      %621 = vmatpush1.bf16.msra.mxu0 0
      %622 = vmatprep.subr.bf16.mxu0 0
      %623 = vmatpush1.bf16.msra.mxu0 0
      %624 = vmatprep.subr.bf16.mxu0 0
      %625 = vmatpush1.bf16.msra.mxu0 0
      %626 = vmatprep.subr.bf16.mxu0 0
      %627 = vmatpush1.bf16.msra.mxu0 0
      %628 = vmatprep.subr.bf16.mxu0 0
      %629 = vmatpush1.bf16.msra.mxu0 0
      %630 = vmatprep.subr.bf16.mxu0 0
      %631 = vmatpush1.bf16.msra.mxu0 0
      %632 = vmatprep.subr.bf16.mxu0 0
      %633 = vmatpush1.bf16.msra.mxu0 0
      %634 = vmatprep.subr.bf16.mxu0 0
      %635 = vmatpush1.bf16.msra.mxu0 0
      %636 = vmatprep.subr.bf16.mxu0 0
      %637 = vmatpush1.bf16.msra.mxu0 0
      %638 = vmatprep.mubr.bf16.mxu0 0
      %639 = vmatmul.mubr.bf16.gmra.mrb[0].mxu0 %v601
      %v640 = vpop.f32.mrb[0].mxu0
      %v641 = vadd.f32 0.0, %v640
      %v642 = vpop.f32.mrb[0].mxu0
      %v643 = vpop.f32.mrb[0].mxu0
      %v644 = vpop.f32.mrb[0].mxu0
      %645 = vdwg.mxu0
      %646 = vrot.lane.b32.xlu0 %v421, 112
      %v647 = vpop.permute.xlu0 %646
      %648 = vrot.lane.b32.xlu0 %v533, 112
      %v649 = vpop.permute.xlu0 %648
      %v651 = vsel %vm419, %v647, 0
      %v654 = vsel %vm419, %v649, 0
      %656 = vmatprep.subr.bf16.mxu0 0
      %657 = vmatpush1.bf16.xpose.msra.mxu0 %v654
      %658 = vmatprep.subr.bf16.mxu0 0
      %659 = vmatpush1.bf16.xpose.msra.mxu0 0
      %660 = vmatprep.subr.bf16.mxu0 0
      %661 = vmatpush1.bf16.xpose.msra.mxu0 0
      %662 = vmatprep.subr.bf16.mxu0 0
      %663 = vmatpush1.bf16.xpose.msra.mxu0 0
      %664 = vmatprep.subr.bf16.mxu0 0
      %665 = vmatpush1.bf16.xpose.msra.mxu0 0
      %666 = vmatprep.subr.bf16.mxu0 0
      %667 = vmatpush1.bf16.xpose.msra.mxu0 0
      %668 = vmatprep.subr.bf16.mxu0 0
      %669 = vmatpush1.bf16.xpose.msra.mxu0 0
      %670 = vmatprep.subr.bf16.mxu0 0
      %671 = vmatpush1.bf16.xpose.msra.mxu0 0
      %672 = vmatprep.subr.bf16.mxu0 0
      %673 = vmatpush1.bf16.xpose.msra.mxu0 0
      %674 = vmatprep.subr.bf16.mxu0 0
      %675 = vmatpush1.bf16.xpose.msra.mxu0 0
      %676 = vmatprep.subr.bf16.mxu0 0
      %677 = vmatpush1.bf16.xpose.msra.mxu0 0
      %678 = vmatprep.subr.bf16.mxu0 0
      %679 = vmatpush1.bf16.xpose.msra.mxu0 0
      %680 = vmatprep.subr.bf16.mxu0 0
      %681 = vmatpush1.bf16.xpose.msra.mxu0 0
      %682 = vmatprep.subr.bf16.mxu0 0
      %683 = vmatpush1.bf16.xpose.msra.mxu0 0
      %684 = vmatprep.subr.bf16.mxu0 0
      %685 = vmatpush1.bf16.xpose.msra.mxu0 0
      %686 = vmatprep.subr.bf16.mxu0 0
      %687 = vmatpush1.bf16.xpose.msra.mxu0 0
      %688 = vmatprep.mubr.bf16.mxu0 0
      %689 = vmatmul.mubr.bf16.gmra.mrb[0].mxu0 %v651
      %v690 = vpop.f32.mrb[0].mxu0
      %v691 = vadd.f32 0.0, %v690
      %v692 = vpop.f32.mrb[0].mxu0
      %v693 = vpop.f32.mrb[0].mxu0
      %v694 = vpop.f32.mrb[0].mxu0
      %695 = vdwg.mxu0
      %v696 = vmul.f32 %v691, 0.35355338
      %v697 = vsel %vm419, %v696, -inf
      %698 = vmax.xlane.f32.xlu0 %v697
      %v699 = vpop.xlane.xlu0 %698
      %v700 = vsub.f32 %v696, %v699
      %v701 = vmul.f32 %v700, 1.442695
      %v702 = vpow.pop %v701
      %v703 = vsel %vm419, %v702, 0.0
      %704 = vadd.xlane.f32.xlu0 %v703
      %v705 = vpop.xlane.xlu0 %704
      %v706 = vrcp.pop %v705
      %v707 = vmul.f32 %v702, %v706
      %v708 = vpack.c.bf16 %v707, %v707
      %709 = vrot.lane.b32.xlu0 %v597, 112
      %v710 = vpop.permute.xlu0 %709
      %v712 = vsel %vm419, %v708, 0
      %v715 = vsel %vm484, %v710, 0
      %717 = vmatprep.subr.bf16.mxu0 0
      %718 = vmatpush1.bf16.msra.mxu0 %v715
      %719 = vmatprep.subr.bf16.mxu0 0
      %720 = vmatpush1.bf16.msra.mxu0 0
      %721 = vmatprep.subr.bf16.mxu0 0
      %722 = vmatpush1.bf16.msra.mxu0 0
      %723 = vmatprep.subr.bf16.mxu0 0
      %724 = vmatpush1.bf16.msra.mxu0 0
      %725 = vmatprep.subr.bf16.mxu0 0
      %726 = vmatpush1.bf16.msra.mxu0 0
      %727 = vmatprep.subr.bf16.mxu0 0
      %728 = vmatpush1.bf16.msra.mxu0 0
      %729 = vmatprep.subr.bf16.mxu0 0
      %730 = vmatpush1.bf16.msra.mxu0 0
      %731 = vmatprep.subr.bf16.mxu0 0
      %732 = vmatpush1.bf16.msra.mxu0 0
      %733 = vmatprep.subr.bf16.mxu0 0
      %734 = vmatpush1.bf16.msra.mxu0 0
      %735 = vmatprep.subr.bf16.mxu0 0
      %736 = vmatpush1.bf16.msra.mxu0 0
      %737 = vmatprep.subr.bf16.mxu0 0
      %738 = vmatpush1.bf16.msra.mxu0 0
      %739 = vmatprep.subr.bf16.mxu0 0
      %740 = vmatpush1.bf16.msra.mxu0 0
      %741 = vmatprep.subr.bf16.mxu0 0
      %742 = vmatpush1.bf16.msra.mxu0 0
      %743 = vmatprep.subr.bf16.mxu0 0
      %744 = vmatpush1.bf16.msra.mxu0 0
      %745 = vmatprep.subr.bf16.mxu0 0
      %746 = vmatpush1.bf16.msra.mxu0 0
      %747 = vmatprep.subr.bf16.mxu0 0
      %748 = vmatpush1.bf16.msra.mxu0 0
      %749 = vmatprep.mubr.bf16.mxu0 0
      %750 = vmatmul.mubr.bf16.gmra.mrb[0].mxu0 %v712
      %v751 = vpop.f32.mrb[0].mxu0
      %v752 = vadd.f32 0.0, %v751
      %v753 = vpop.f32.mrb[0].mxu0
      %v754 = vpop.f32.mrb[0].mxu0
      %v755 = vpop.f32.mrb[0].mxu0
      %756 = vdwg.mxu0
      %757 = vrot.lane.b32.xlu0 %v421, 104
      %v758 = vpop.permute.xlu0 %757
      %759 = vrot.lane.b32.xlu0 %v533, 104
      %v760 = vpop.permute.xlu0 %759
      %v762 = vsel %vm419, %v758, 0
      %v765 = vsel %vm419, %v760, 0
      %767 = vmatprep.subr.bf16.mxu0 0
      %768 = vmatpush1.bf16.xpose.msra.mxu0 %v765
      %769 = vmatprep.subr.bf16.mxu0 0
      %770 = vmatpush1.bf16.xpose.msra.mxu0 0
      %771 = vmatprep.subr.bf16.mxu0 0
      %772 = vmatpush1.bf16.xpose.msra.mxu0 0
      %773 = vmatprep.subr.bf16.mxu0 0
      %774 = vmatpush1.bf16.xpose.msra.mxu0 0
      %775 = vmatprep.subr.bf16.mxu0 0
      %776 = vmatpush1.bf16.xpose.msra.mxu0 0
      %777 = vmatprep.subr.bf16.mxu0 0
      %778 = vmatpush1.bf16.xpose.msra.mxu0 0
      %779 = vmatprep.subr.bf16.mxu0 0
      %780 = vmatpush1.bf16.xpose.msra.mxu0 0
      %781 = vmatprep.subr.bf16.mxu0 0
      %782 = vmatpush1.bf16.xpose.msra.mxu0 0
      %783 = vmatprep.subr.bf16.mxu0 0
      %784 = vmatpush1.bf16.xpose.msra.mxu0 0
      %785 = vmatprep.subr.bf16.mxu0 0
      %786 = vmatpush1.bf16.xpose.msra.mxu0 0
      %787 = vmatprep.subr.bf16.mxu0 0
      %788 = vmatpush1.bf16.xpose.msra.mxu0 0
      %789 = vmatprep.subr.bf16.mxu0 0
      %790 = vmatpush1.bf16.xpose.msra.mxu0 0
      %791 = vmatprep.subr.bf16.mxu0 0
      %792 = vmatpush1.bf16.xpose.msra.mxu0 0
      %793 = vmatprep.subr.bf16.mxu0 0
      %794 = vmatpush1.bf16.xpose.msra.mxu0 0
      %795 = vmatprep.subr.bf16.mxu0 0
      %796 = vmatpush1.bf16.xpose.msra.mxu0 0
      %797 = vmatprep.subr.bf16.mxu0 0
      %798 = vmatpush1.bf16.xpose.msra.mxu0 0
      %799 = vmatprep.mubr.bf16.mxu0 0
      %800 = vmatmul.mubr.bf16.gmra.mrb[0].mxu0 %v762
      %v801 = vpop.f32.mrb[0].mxu0
      %v802 = vadd.f32 0.0, %v801
      %v803 = vpop.f32.mrb[0].mxu0
      %v804 = vpop.f32.mrb[0].mxu0
      %v805 = vpop.f32.mrb[0].mxu0
      %806 = vdwg.mxu0
      %v807 = vmul.f32 %v802, 0.35355338
      %v808 = vsel %vm419, %v807, -inf
      %809 = vmax.xlane.f32.xlu0 %v808
      %v810 = vpop.xlane.xlu0 %809
      %v811 = vsub.f32 %v807, %v810
      %v812 = vmul.f32 %v811, 1.442695
      %v813 = vpow.pop %v812
      %v814 = vsel %vm419, %v813, 0.0
      %815 = vadd.xlane.f32.xlu0 %v814
      %v816 = vpop.xlane.xlu0 %815
      %v817 = vrcp.pop %v816
      %v818 = vmul.f32 %v813, %v817
      %v819 = vpack.c.bf16 %v818, %v818
      %820 = vrot.lane.b32.xlu0 %v597, 104
      %v821 = vpop.permute.xlu0 %820
      %v823 = vsel %vm419, %v819, 0
      %v826 = vsel %vm484, %v821, 0
      %828 = vmatprep.subr.bf16.mxu0 0
      %829 = vmatpush1.bf16.msra.mxu0 %v826
      %830 = vmatprep.subr.bf16.mxu0 0
      %831 = vmatpush1.bf16.msra.mxu0 0
      %832 = vmatprep.subr.bf16.mxu0 0
      %833 = vmatpush1.bf16.msra.mxu0 0
      %834 = vmatprep.subr.bf16.mxu0 0
      %835 = vmatpush1.bf16.msra.mxu0 0
      %836 = vmatprep.subr.bf16.mxu0 0
      %837 = vmatpush1.bf16.msra.mxu0 0
      %838 = vmatprep.subr.bf16.mxu0 0
      %839 = vmatpush1.bf16.msra.mxu0 0
      %840 = vmatprep.subr.bf16.mxu0 0
      %841 = vmatpush1.bf16.msra.mxu0 0
      %842 = vmatprep.subr.bf16.mxu0 0
      %843 = vmatpush1.bf16.msra.mxu0 0
      %844 = vmatprep.subr.bf16.mxu0 0
      %845 = vmatpush1.bf16.msra.mxu0 0
      %846 = vmatprep.subr.bf16.mxu0 0
      %847 = vmatpush1.bf16.msra.mxu0 0
      %848 = vmatprep.subr.bf16.mxu0 0
      %849 = vmatpush1.bf16.msra.mxu0 0
      %850 = vmatprep.subr.bf16.mxu0 0
      %851 = vmatpush1.bf16.msra.mxu0 0
      %852 = vmatprep.subr.bf16.mxu0 0
      %853 = vmatpush1.bf16.msra.mxu0 0
      %854 = vmatprep.subr.bf16.mxu0 0
      %855 = vmatpush1.bf16.msra.mxu0 0
      %856 = vmatprep.subr.bf16.mxu0 0
      %857 = vmatpush1.bf16.msra.mxu0 0
      %858 = vmatprep.subr.bf16.mxu0 0
      %859 = vmatpush1.bf16.msra.mxu0 0
      %860 = vmatprep.mubr.bf16.mxu0 0
      %861 = vmatmul.mubr.bf16.gmra.mrb[0].mxu0 %v823
      %v862 = vpop.f32.mrb[0].mxu0
      %v863 = vadd.f32 0.0, %v862
      %v864 = vpop.f32.mrb[0].mxu0
      %v865 = vpop.f32.mrb[0].mxu0
      %v866 = vpop.f32.mrb[0].mxu0
      %867 = vdwg.mxu0
      %869 = vrot.lane.b32.xlu0 %v641, 8
      %v870 = vpop.permute.xlu0 %869
      %873 = vrot.lane.b32.xlu0 %v752, 16
      %v874 = vpop.permute.xlu0 %873
      %877 = vrot.lane.b32.xlu0 %v863, 24
      %v878 = vpop.permute.xlu0 %877
      %v880 = vsel %vm419, %v523, %v870
      %vm881 = vcmask 130048
      %v882 = vsel %vm881, %v880, %v874
      %vm883 = vcmask 195584
      %v884 = vsel %vm883, %v882, %v878
      %v885 = vpack.c.bf16 %v884, %v884
      %v886 = vld [vmem:[%s6] sm:$0xf]
      %v887 = vld [vmem:[%s6 + $0x4] sm:$0xf]
      %v888 = vld [vmem:[%s6 + $0x8] sm:$0xf]
      %v889 = vld [vmem:[%s6 + $0xc] sm:$0xf]
      %v894 = vunpack.c.l.b16 %v886
      %v895 = vunpack.c.l.b16 %v887
      %v896 = vunpack.c.l.b16 %v888
      %v897 = vunpack.c.l.b16 %v889
      %v898 = vpack.c.b16 %v895, %v894
      %v899 = vpack.c.b16 %v897, %v896
      %v903 = vsel %vm359, %v885, 0
      %905 = vmatprep.subr.bf16.mxu0 0
      %906 = vmatpush1.bf16.msra.mxu0 %v898
      %907 = vmatprep.subr.bf16.mxu0 0
      %908 = vmatpush1.bf16.msra.mxu0 %v899
      %909 = vmatprep.subr.bf16.mxu0 0
      %910 = vmatpush1.bf16.msra.mxu0 0
      %911 = vmatprep.subr.bf16.mxu0 0
      %912 = vmatpush1.bf16.msra.mxu0 0
      %913 = vmatprep.subr.bf16.mxu0 0
      %914 = vmatpush1.bf16.msra.mxu0 0
      %915 = vmatprep.subr.bf16.mxu0 0
      %916 = vmatpush1.bf16.msra.mxu0 0
      %917 = vmatprep.subr.bf16.mxu0 0
      %918 = vmatpush1.bf16.msra.mxu0 0
      %919 = vmatprep.subr.bf16.mxu0 0
      %920 = vmatpush1.bf16.msra.mxu0 0
      %921 = vmatprep.subr.bf16.mxu0 0
      %922 = vmatpush1.bf16.msra.mxu0 0
      %923 = vmatprep.subr.bf16.mxu0 0
      %924 = vmatpush1.bf16.msra.mxu0 0
      %925 = vmatprep.subr.bf16.mxu0 0
      %926 = vmatpush1.bf16.msra.mxu0 0
      %927 = vmatprep.subr.bf16.mxu0 0
      %928 = vmatpush1.bf16.msra.mxu0 0
      %929 = vmatprep.subr.bf16.mxu0 0
      %930 = vmatpush1.bf16.msra.mxu0 0
      %931 = vmatprep.subr.bf16.mxu0 0
      %932 = vmatpush1.bf16.msra.mxu0 0
      %933 = vmatprep.subr.bf16.mxu0 0
      %934 = vmatpush1.bf16.msra.mxu0 0
      %935 = vmatprep.subr.bf16.mxu0 0
      %936 = vmatpush1.bf16.msra.mxu0 0
      %937 = vmatprep.mubr.bf16.mxu0 0
      %938 = vmatmul.mubr.bf16.gmra.mrb[0].mxu0 %v903
      %v939 = vpop.f32.mrb[0].mxu0
      %v940 = vadd.f32 0.0, %v939
      %v941 = vpop.f32.mrb[0].mxu0
      %v942 = vpop.f32.mrb[0].mxu0
      %v943 = vpop.f32.mrb[0].mxu0
      %944 = vdwg.mxu0
      %v945 = vpack.c.bf16 %v940, %v940
      %vm946 = vcmask 257024
      %947 = vst.msk [vmem:[%s338] sm:$0xf] %vm946, %v945
      %p948 = scmp.lt.s32.totalorder %s22, 1
      %s949 = scalar_select %p948, %s22, 1
      %p950 = scmp.lt.s32.totalorder %s23, 0
      %s951 = scalar_select %p950, %s23, 0
      %s952 = sadd.s32 %s951, %s949
      %s953 = smul.addr %s952, 4
      %s954 = scalar_lea.vmem %s7, %s953
      // Predicated region
      $region49: #{token_former_forward.15} parent=47 // pred_check
        %p955 = pneg %p214
      $region50: #{token_former_forward.15} parent=47 // pred_check_branch
        %957 = sbr.rel (%p955) target = $region52
      $region51: #{token_former_forward.15} parent=47 // pred_region
        _
      $region52: #{token_former_forward.15} parent=47 // pred_fallthru
        _
    $region48: #{token_former_forward.15} parent=5 // pred_fallthru
      _
    %p958 = scmp.le.s32.totalorder 2, %s13
    // Predicated region
    $region53: #{token_former_forward.15} parent=5 // pred_check
      %p959 = pneg %p958
    $region54: #{token_former_forward.15} parent=5 // pred_check_branch
      %961 = sbr.rel (%p959) target = $region56
    $region55: #{token_former_forward.15} parent=5 // pred_region
      %s962 = ssub.s32 %s13, 2
      // Predicated region
      $region57: #{token_former_forward.15} parent=55 // pred_check
        %p963 = pneg %p220
      $region58: #{token_former_forward.15} parent=55 // pred_check_branch
        %965 = sbr.rel (%p963) target = $region60
      $region59: #{token_former_forward.15} parent=55 // pred_region
        %p966 = scmp.lt.s32.totalorder %s24, 1
        %s967 = scalar_select %p966, %s24, 1
        %p968 = scmp.lt.s32.totalorder %s25, 0
        %s969 = scalar_select %p968, %s25, 0
        %s970 = sadd.s32 %s969, %s967
        %s971 = smul.addr %s970, 4
        %s972 = scalar_lea.vmem %s7, %s971
      $region60: #{token_former_forward.15} parent=55 // pred_fallthru
        _
    $region56: #{token_former_forward.15} parent=5 // pred_fallthru
      _
  $region6: #{token_former_forward.15} parent=0 // loop_footer
    %s17 = sadd.s32 1, %s13
  $region7: #{token_former_forward.15} parent=0 // loop_footer_branch
    %12 = sbr.rel target = $region3
  $region8: #{token_former_forward.15} parent=0 // loop_exit
    _

// kernel: token_former_forward.27
$region0: #{token_former_forward.27}
  #allocation0 [shape = 'u32[]', space=smem, size = 0x4, offset = 0x4, fixed_abs, tag = 'smem constant byte address 0x4 - core index']
  #allocation1 [shape = 'u32[144,128]{1,0:T(1,128)}', space=vmem, size = 0x12000, scoped, tag = 'internal scratch']
  #allocation2 [shape = 'f32[16,64]{1,0:T(8,128)}', space=vmem, size = 0x2000, scoped, tag = 'scratch operand']
  %s0 = inlined_call_operand.vmem [shape: bf16[16,32], index: 0, kind: input, shape index: {}]
  %s1 = inlined_call_operand.vmem [shape: bf16[32,64], index: 1, kind: input, shape index: {}]
  %s2 = inlined_call_operand.vmem [shape: f32[1,64], index: 2, kind: input, shape index: {}]
  %s3 = inlined_call_operand.hbm [shape: f32[16,64], index: 3, kind: output, shape index: {}]
  %s4 = sld [smem:[#allocation0]]
  $region30: #{token_former_forward.27} parent=0
    _
  %s6 = ssub.s32 1, %s4
  %s7 = scalar_select 0, %s6, %s4
  $region1: #{token_former_forward.27} parent=0
    #allocation3 [shape = 'u8[8192]{0}', space=vmem, size = 0x2000, scoped, tag = 'output window, operand 0, single buffered']
    #allocation4 [shape = 's32[1]{0}', space=sflag, size = 0x4, scoped, tag = 'scoped memory for token_former_forward.27']
    %8 = vsyncpa [#allocation4], 0
    // Predicated region
    $region2: #{token_former_forward.27} parent=1 // pred_check
      _
    $region3: #{token_former_forward.27} parent=1 // pred_check_branch
      %10 = sbr.rel (0) target = $region5
    $region4: #{token_former_forward.27} parent=1 // pred_region
      _
    $region5: #{token_former_forward.27} parent=1 // pred_fallthru
      _
    // Predicated region
    $region6: #{token_former_forward.27} parent=1 // pred_check
      _
    $region7: #{token_former_forward.27} parent=1 // pred_check_branch
      %12 = sbr.rel (0) target = $region9
    $region8: #{token_former_forward.27} parent=1 // pred_region
      _
    $region9: #{token_former_forward.27} parent=1 // pred_fallthru
      _
    // Predicated region
    $region10: #{token_former_forward.27} parent=1 // pred_check
      _
    $region11: #{token_former_forward.27} parent=1 // pred_check_branch
      %14 = sbr.rel (0) target = $region13
    $region12: #{token_former_forward.27} parent=1 // pred_region
      _
    $region13: #{token_former_forward.27} parent=1 // pred_fallthru
      _
    %p16 = scmp.eq.s32.totalorder 0, 0
    // Predicated region
    $region14: #{token_former_forward.27} parent=1 // pred_check
      %p17 = pneg %p16
    $region15: #{token_former_forward.27} parent=1 // pred_check_branch
      %19 = sbr.rel (%p17) target = $region17
    $region16: #{token_former_forward.27} parent=1 // pred_region
      %vm20 = vcmask 523264
      %21 = vst.msk [vmem:[#allocation2] sm:$0xff] %vm20, 0.0
      %22 = vst.msk [vmem:[#allocation2 + $0x8] sm:$0xff] %vm20, 0.0
    $region17: #{token_former_forward.27} parent=1 // pred_fallthru
      _
    %v23 = vld [vmem:[#allocation2] sm:$0xff]
    %v24 = vld [vmem:[#allocation2 + $0x8] sm:$0xff]
    %v25 = vld [vmem:[%s0] sm:$0xf]
    %v26 = vld [vmem:[%s0 + $0x4] sm:$0xf]
    %v27 = vld [vmem:[%s1] sm:$0xf]
    %v28 = vld [vmem:[%s1 + $0x4] sm:$0xf]
    %v29 = vld [vmem:[%s1 + $0x8] sm:$0xf]
    %v30 = vld [vmem:[%s1 + $0xc] sm:$0xf]
    %v33 = vunpack.c.l.b16 %v25
    %v34 = vunpack.c.l.b16 %v26
    %v35 = vpack.c.b16 %v34, %v33
    %v40 = vunpack.c.l.b16 %v27
    %v41 = vunpack.c.l.b16 %v28
    %v42 = vunpack.c.l.b16 %v29
    %v43 = vunpack.c.l.b16 %v30
    %v44 = vpack.c.b16 %v41, %v40
    %v45 = vpack.c.b16 %v43, %v42
    %vm48 = vcmask 261120
    %v50 = vsel %vm48, %v35, 0
    %52 = vmatprep.subr.bf16.mxu0 0
    %53 = vmatpush1.bf16.msra.mxu0 %v44
    %54 = vmatprep.subr.bf16.mxu0 0
    %55 = vmatpush1.bf16.msra.mxu0 %v45
    %56 = vmatprep.subr.bf16.mxu0 0
    %57 = vmatpush1.bf16.msra.mxu0 0
    %58 = vmatprep.subr.bf16.mxu0 0
    %59 = vmatpush1.bf16.msra.mxu0 0
    %60 = vmatprep.subr.bf16.mxu0 0
    %61 = vmatpush1.bf16.msra.mxu0 0
    %62 = vmatprep.subr.bf16.mxu0 0
    %63 = vmatpush1.bf16.msra.mxu0 0
    %64 = vmatprep.subr.bf16.mxu0 0
    %65 = vmatpush1.bf16.msra.mxu0 0
    %66 = vmatprep.subr.bf16.mxu0 0
    %67 = vmatpush1.bf16.msra.mxu0 0
    %68 = vmatprep.subr.bf16.mxu0 0
    %69 = vmatpush1.bf16.msra.mxu0 0
    %70 = vmatprep.subr.bf16.mxu0 0
    %71 = vmatpush1.bf16.msra.mxu0 0
    %72 = vmatprep.subr.bf16.mxu0 0
    %73 = vmatpush1.bf16.msra.mxu0 0
    %74 = vmatprep.subr.bf16.mxu0 0
    %75 = vmatpush1.bf16.msra.mxu0 0
    %76 = vmatprep.subr.bf16.mxu0 0
    %77 = vmatpush1.bf16.msra.mxu0 0
    %78 = vmatprep.subr.bf16.mxu0 0
    %79 = vmatpush1.bf16.msra.mxu0 0
    %80 = vmatprep.subr.bf16.mxu0 0
    %81 = vmatpush1.bf16.msra.mxu0 0
    %82 = vmatprep.subr.bf16.mxu0 0
    %83 = vmatpush1.bf16.msra.mxu0 0
    %84 = vmatprep.mubr.bf16.mxu0 0
    %85 = vmatmul.mubr.bf16.gmra.mrb[0].mxu0 %v50
    %v86 = vpop.f32.mrb[0].mxu0
    %v87 = vadd.f32 0.0, %v86
    %v88 = vpop.f32.mrb[0].mxu0
    %v89 = vpop.f32.mrb[0].mxu0
    %v90 = vadd.f32 0.0, %v89
    %v91 = vpop.f32.mrb[0].mxu0
    %92 = vdwg.mxu0
    %v93 = vadd.f32 %v23, %v87
    %v94 = vadd.f32 %v24, %v90
    %vm95 = vcmask 523264
    %96 = vst.msk [vmem:[#allocation2] sm:$0xff] %vm95, %v93
    %97 = vst.msk [vmem:[#allocation2 + $0x8] sm:$0xff] %vm95, %v94
    // Predicated region
    $region18: #{token_former_forward.27} parent=1 // pred_check
      %p98 = pneg %p16
    $region19: #{token_former_forward.27} parent=1 // pred_check_branch
      %100 = sbr.rel (%p98) target = $region21
    $region20: #{token_former_forward.27} parent=1 // pred_region
      %v101 = vld [vmem:[#allocation2] sm:$0xff]
      %v102 = vld [vmem:[#allocation2 + $0x8] sm:$0xff]
      %v103 = vld [vmem:[%s2] sm:$0x1]
      %v105 = vlaneseq
      %v106 = vshrl.u32 %v105, 7
      %v107 = vsub.s32 0, %v106
      %v108 = vrot.slane %v103, %v107
      %v110 = vadd.f32 %v101, %v108
      %v111 = vadd.f32 %v102, %v108
      %112 = vst.msk [vmem:[#allocation3] sm:$0xff] %vm95, %v110
      %113 = vst.msk [vmem:[#allocation3 + $0x8] sm:$0xff] %vm95, %v111
    $region21: #{token_former_forward.27} parent=1 // pred_fallthru
      _
    // Predicated region
    $region22: #{token_former_forward.27} parent=1 // pred_check
      _
    $region23: #{token_former_forward.27} parent=1 // pred_check_branch
      %115 = sbr.rel (0) target = $region25
    $region24: #{token_former_forward.27} parent=1 // pred_region
      %s117 = ssub.s32 256, 256
      %118 = vsyncadd [#allocation4], %s117
      %s119 = sshll.u32 [#allocation3], 4
      %s120 = int_to_ptr.vmem [resolvable:$true] %s119
      %125 = dma.vmem_to_hbm [thread:$0]  %s120, 256, %s3, [#allocation4], 128, 128, 8
    $region25: #{token_former_forward.27} parent=1 // pred_fallthru
      _
    // Predicated region
    $region26: #{token_former_forward.27} parent=1 // pred_check
      _
    $region27: #{token_former_forward.27} parent=1 // pred_check_branch
      %127 = sbr.rel (0) target = $region29
    $region28: #{token_former_forward.27} parent=1 // pred_region
      %128 = dma.done [#allocation4], 256
    $region29: #{token_former_forward.27} parent=1 // pred_fallthru
      _
    %129 = vsyncpa [#allocation4], 1

// kernel: token_former_forward.18
$region0: #{token_former_forward.18}
  #allocation0 [shape = 'u32[]', space=smem, size = 0x4, offset = 0x4, fixed_abs, tag = 'smem constant byte address 0x4 - core index']
  #allocation1 [shape = 'u32[144,128]{1,0:T(1,128)}', space=vmem, size = 0x12000, scoped, tag = 'internal scratch']
  #allocation2 [shape = 'f32[16,32]{1,0:T(8,128)}', space=vmem, size = 0x2000, scoped, tag = 'scratch operand']
  %s0 = inlined_call_operand.vmem [shape: bf16[16,64], index: 0, kind: input, shape index: {}]
  %s1 = inlined_call_operand.vmem [shape: bf16[64,32], index: 1, kind: input, shape index: {}]
  %s2 = inlined_call_operand.vmem [shape: bf16[16,32], index: 2, kind: output, shape index: {}]
  %s3 = sld [smem:[#allocation0]]
  $region26: #{token_former_forward.18} parent=0
    _
  %s5 = ssub.s32 1, %s3
  %s6 = scalar_select 0, %s5, %s3
  // Predicated region
  $region2: #{token_former_forward.18} parent=0 // pred_check
    _
  $region3: #{token_former_forward.18} parent=0 // pred_check_branch
    %8 = sbr.rel (0) target = $region5
  $region4: #{token_former_forward.18} parent=0 // pred_region
    _
  $region5: #{token_former_forward.18} parent=0 // pred_fallthru
    _
  // Predicated region
  $region6: #{token_former_forward.18} parent=0 // pred_check
    _
  $region7: #{token_former_forward.18} parent=0 // pred_check_branch
    %10 = sbr.rel (0) target = $region9
  $region8: #{token_former_forward.18} parent=0 // pred_region
    _
  $region9: #{token_former_forward.18} parent=0 // pred_fallthru
    _
  %p12 = scmp.eq.s32.totalorder 0, 0
  // Predicated region
  $region10: #{token_former_forward.18} parent=0 // pred_check
    %p13 = pneg %p12
  $region11: #{token_former_forward.18} parent=0 // pred_check_branch
    %15 = sbr.rel (%p13) target = $region13
  $region12: #{token_former_forward.18} parent=0 // pred_region
    %vm16 = vcmask 261120
    %17 = vst.msk [vmem:[#allocation2] sm:$0xff] %vm16, 0.0
    %18 = vst.msk [vmem:[#allocation2 + $0x8] sm:$0xff] %vm16, 0.0
  $region13: #{token_former_forward.18} parent=0 // pred_fallthru
    _
  %v19 = vld [vmem:[#allocation2] sm:$0xff]
  %v20 = vld [vmem:[#allocation2 + $0x8] sm:$0xff]
  %v21 = vld [vmem:[%s0] sm:$0xf]
  %v22 = vld [vmem:[%s0 + $0x4] sm:$0xf]
  %v23 = vld [vmem:[%s1] sm:$0xf]
  %v24 = vld [vmem:[%s1 + $0x4] sm:$0xf]
  %v25 = vld [vmem:[%s1 + $0x8] sm:$0xf]
  %v26 = vld [vmem:[%s1 + $0xc] sm:$0xf]
  %v27 = vld [vmem:[%s1 + $0x10] sm:$0xf]
  %v28 = vld [vmem:[%s1 + $0x14] sm:$0xf]
  %v29 = vld [vmem:[%s1 + $0x18] sm:$0xf]
  %v30 = vld [vmem:[%s1 + $0x1c] sm:$0xf]
  %v33 = vunpack.c.l.b16 %v21
  %v34 = vunpack.c.l.b16 %v22
  %v35 = vpack.c.b16 %v34, %v33
  %v44 = vunpack.c.l.b16 %v23
  %v45 = vunpack.c.l.b16 %v24
  %v46 = vunpack.c.l.b16 %v25
  %v47 = vunpack.c.l.b16 %v26
  %v48 = vunpack.c.l.b16 %v27
  %v49 = vunpack.c.l.b16 %v28
  %v50 = vunpack.c.l.b16 %v29
  %v51 = vunpack.c.l.b16 %v30
  %v52 = vpack.c.b16 %v45, %v44
  %v53 = vpack.c.b16 %v47, %v46
  %v54 = vpack.c.b16 %v49, %v48
  %v55 = vpack.c.b16 %v51, %v50
  %vm60 = vcmask 523264
  %v62 = vsel %vm60, %v35, 0
  %64 = vmatprep.subr.bf16.mxu0 0
  %65 = vmatpush1.bf16.msra.mxu0 %v52
  %66 = vmatprep.subr.bf16.mxu0 0
  %67 = vmatpush1.bf16.msra.mxu0 %v53
  %68 = vmatprep.subr.bf16.mxu0 0
  %69 = vmatpush1.bf16.msra.mxu0 %v54
  %70 = vmatprep.subr.bf16.mxu0 0
  %71 = vmatpush1.bf16.msra.mxu0 %v55
  %72 = vmatprep.subr.bf16.mxu0 0
  %73 = vmatpush1.bf16.msra.mxu0 0
  %74 = vmatprep.subr.bf16.mxu0 0
  %75 = vmatpush1.bf16.msra.mxu0 0
  %76 = vmatprep.subr.bf16.mxu0 0
  %77 = vmatpush1.bf16.msra.mxu0 0
  %78 = vmatprep.subr.bf16.mxu0 0
  %79 = vmatpush1.bf16.msra.mxu0 0
  %80 = vmatprep.subr.bf16.mxu0 0
  %81 = vmatpush1.bf16.msra.mxu0 0
  %82 = vmatprep.subr.bf16.mxu0 0
  %83 = vmatpush1.bf16.msra.mxu0 0
  %84 = vmatprep.subr.bf16.mxu0 0
  %85 = vmatpush1.bf16.msra.mxu0 0
  %86 = vmatprep.subr.bf16.mxu0 0
  %87 = vmatpush1.bf16.msra.mxu0 0
  %88 = vmatprep.subr.bf16.mxu0 0
  %89 = vmatpush1.bf16.msra.mxu0 0
  %90 = vmatprep.subr.bf16.mxu0 0
  %91 = vmatpush1.bf16.msra.mxu0 0
  %92 = vmatprep.subr.bf16.mxu0 0
  %93 = vmatpush1.bf16.msra.mxu0 0
  %94 = vmatprep.subr.bf16.mxu0 0
  %95 = vmatpush1.bf16.msra.mxu0 0
  %96 = vmatprep.mubr.bf16.mxu0 0
  %97 = vmatmul.mubr.bf16.gmra.mrb[0].mxu0 %v62
  %v98 = vpop.f32.mrb[0].mxu0
  %v99 = vadd.f32 0.0, %v98
  %v100 = vpop.f32.mrb[0].mxu0
  %v101 = vpop.f32.mrb[0].mxu0
  %v102 = vadd.f32 0.0, %v101
  %v103 = vpop.f32.mrb[0].mxu0
  %104 = vdwg.mxu0
  %v105 = vadd.f32 %v19, %v99
  %v106 = vadd.f32 %v20, %v102
  %vm107 = vcmask 261120
  %108 = vst.msk [vmem:[#allocation2] sm:$0xff] %vm107, %v105
  %109 = vst.msk [vmem:[#allocation2 + $0x8] sm:$0xff] %vm107, %v106
  // Predicated region
  $region14: #{token_former_forward.18} parent=0 // pred_check
    %p110 = pneg %p12
  $region15: #{token_former_forward.18} parent=0 // pred_check_branch
    %112 = sbr.rel (%p110) target = $region17
  $region16: #{token_former_forward.18} parent=0 // pred_region
    %v113 = vld [vmem:[#allocation2] sm:$0xff]
    %v114 = vld [vmem:[#allocation2 + $0x8] sm:$0xff]
    %v115 = vpack.c.bf16 %v114, %v113
    %v117 = vunpack.c.l.b16 %v115
    %v118 = vunpack.c.h.b16 %v115
    %v119 = vpack.c.b16 %v117, %v117
    %v120 = vpack.c.b16 %v118, %v118
    %vm123 = vcmask 257024
    %124 = vst.msk [vmem:[%s2] sm:$0xf] %vm123, %v119
    %125 = vst.msk [vmem:[%s2 + $0x4] sm:$0xf] %vm123, %v120
  $region17: #{token_former_forward.18} parent=0 // pred_fallthru
    _
  // Predicated region
  $region18: #{token_former_forward.18} parent=0 // pred_check
    _
  $region19: #{token_former_forward.18} parent=0 // pred_check_branch
    %127 = sbr.rel (0) target = $region21
  $region20: #{token_former_forward.18} parent=0 // pred_region
    _
  $region21: #{token_former_forward.18} parent=0 // pred_fallthru
    _
  // Predicated region
  $region22: #{token_former_forward.18} parent=0 // pred_check
    _
  $region23: #{token_former_forward.18} parent=0 // pred_check_branch
    %129 = sbr.rel (0) target = $region25
  $region24: #{token_former_forward.18} parent=0 // pred_region
    _
  $region25: #{token_former_forward.18} parent=0 // pred_fallthru
    _

// kernel: token_former_forward.26
$region0: #{token_former_forward.26}
  #allocation0 [shape = 'u32[]', space=smem, size = 0x4, offset = 0x4, fixed_abs, tag = 'smem constant byte address 0x4 - core index']
  #allocation1 [shape = 'u32[144,128]{1,0:T(1,128)}', space=vmem, size = 0x12000, scoped, tag = 'internal scratch']
  %s0 = inlined_call_operand.vmem [shape: bf16[16,32], index: 0, kind: input, shape index: {}]
  %s1 = inlined_call_operand.vmem [shape: f32[1,32], index: 1, kind: input, shape index: {}]
  %s2 = inlined_call_operand.vmem [shape: f32[1,32], index: 2, kind: input, shape index: {}]
  %s3 = inlined_call_operand.vmem [shape: bf16[16,32], index: 3, kind: output, shape index: {}]
  %s4 = sld [smem:[#allocation0]]
  $region22: #{token_former_forward.26} parent=0
    _
  %s6 = ssub.s32 1, %s4
  %s7 = scalar_select 0, %s6, %s4
  // Predicated region
  $region2: #{token_former_forward.26} parent=0 // pred_check
    _
  $region3: #{token_former_forward.26} parent=0 // pred_check_branch
    %9 = sbr.rel (0) target = $region5
  $region4: #{token_former_forward.26} parent=0 // pred_region
    _
  $region5: #{token_former_forward.26} parent=0 // pred_fallthru
    _
  // Predicated region
  $region6: #{token_former_forward.26} parent=0 // pred_check
    _
  $region7: #{token_former_forward.26} parent=0 // pred_check_branch
    %11 = sbr.rel (0) target = $region9
  $region8: #{token_former_forward.26} parent=0 // pred_region
    _
  $region9: #{token_former_forward.26} parent=0 // pred_fallthru
    _
  // Predicated region
  $region10: #{token_former_forward.26} parent=0 // pred_check
    _
  $region11: #{token_former_forward.26} parent=0 // pred_check_branch
    %13 = sbr.rel (0) target = $region13
  $region12: #{token_former_forward.26} parent=0 // pred_region
    _
  $region13: #{token_former_forward.26} parent=0 // pred_fallthru
    _
  %v14 = vld [vmem:[%s0] sm:$0xf]
  %v15 = vld [vmem:[%s0 + $0x4] sm:$0xf]
  %v16 = vunpack.c.l.bf16 %v14
  %v17 = vunpack.c.l.bf16 %v15
  %vm18 = vcmask 261120
  %v19 = vsel %vm18, %v16, 0.0
  %20 = vadd.xlane.f32.xlu0 %v19
  %v21 = vpop.xlane.xlu0 %20
  %v22 = vsel %vm18, %v17, 0.0
  %23 = vadd.xlane.f32.xlu0 %v22
  %v24 = vpop.xlane.xlu0 %23
  %v25 = vrcp.pop 32.0
  %v26 = vmul.f32 %v21, %v25
  %v27 = vmul.f32 %v24, %v25
  %v28 = vsub.f32 %v16, %v26
  %v29 = vsub.f32 %v17, %v27
  %v30 = vmul.f32 %v28, %v28
  %v31 = vmul.f32 %v29, %v29
  %v32 = vsel %vm18, %v30, 0.0
  %33 = vadd.xlane.f32.xlu0 %v32
  %v34 = vpop.xlane.xlu0 %33
  %v35 = vsel %vm18, %v31, 0.0
  %36 = vadd.xlane.f32.xlu0 %v35
  %v37 = vpop.xlane.xlu0 %36
  %v38 = vmul.f32 %v34, %v25
  %v39 = vmul.f32 %v37, %v25
  %v40 = vadd.f32 %v38, 1e-05
  %v41 = vadd.f32 %v39, 1e-05
  %v42 = vrsqrt.pop %v40
  %v43 = vrsqrt.pop %v41
  %v44 = vmul.f32 %v28, %v42
  %v45 = vmul.f32 %v29, %v43
  %v46 = vld [vmem:[%s1] sm:$0x1]
  %v48 = vlaneseq
  %v49 = vshrl.u32 %v48, 7
  %v50 = vsub.s32 0, %v49
  %v51 = vrot.slane %v46, %v50
  %v53 = vmul.f32 %v44, %v51
  %v54 = vmul.f32 %v45, %v51
  %v55 = vld [vmem:[%s2] sm:$0x1]
  %v57 = vlaneseq
  %v58 = vshrl.u32 %v57, 7
  %v59 = vsub.s32 0, %v58
  %v60 = vrot.slane %v55, %v59
  %v62 = vadd.f32 %v53, %v60
  %v63 = vadd.f32 %v54, %v60
  %v64 = vpack.c.bf16 %v63, %v62
  %v66 = vunpack.c.l.b16 %v64
  %v67 = vunpack.c.h.b16 %v64
  %v68 = vpack.c.b16 %v66, %v66
  %v69 = vpack.c.b16 %v67, %v67
  %vm72 = vcmask 257024
  %73 = vst.msk [vmem:[%s3] sm:$0xf] %vm72, %v68
  %74 = vst.msk [vmem:[%s3 + $0x4] sm:$0xf] %vm72, %v69
  // Predicated region
  $region14: #{token_former_forward.26} parent=0 // pred_check
    _
  $region15: #{token_former_forward.26} parent=0 // pred_check_branch
    %76 = sbr.rel (0) target = $region17
  $region16: #{token_former_forward.26} parent=0 // pred_region
    _
  $region17: #{token_former_forward.26} parent=0 // pred_fallthru
    _
  // Predicated region
  $region18: #{token_former_forward.26} parent=0 // pred_check
    _
  $region19: #{token_former_forward.26} parent=0 // pred_check_branch
    %78 = sbr.rel (0) target = $region21
  $region20: #{token_former_forward.26} parent=0 // pred_region
    _
  $region21: #{token_former_forward.26} parent=0 // pred_fallthru
    _

</llo_original>
